<compile_context>
chip_gen: v7x
topology: tpu7x:2x2x1
jax: 0.10.0
libtpu: 0.0.40
codegen_flags: <defaults>
</compile_context>

<pallas_src>
import functools

import jax
import jax.numpy as jnp
from jax.experimental import pallas as pl
from jax.experimental.pallas import tpu as pltpu

LATENT_DIM = 16
NUM_CLASSES = 10
IMG_C, IMG_H, IMG_W = 3, 32, 32
HW = IMG_H * IMG_W                 # 1024
D_IN = IMG_C * HW                  # 3072  (lane-dense: multiple of 128)
ENC_HIDDEN = 64
DEC_HIDDEN = 64
ROW_BLOCK = 8                      # f32 sublane multiple; raise for big batches


# ----------------------------------------------------------------------------
# Fused Pallas kernel: full VAE forward for one batch tile
# ----------------------------------------------------------------------------
def _vae_fused_kernel(
    x_ref, y_ref, eps_ref,
    w_enc_x_ref, w_enc_y_ref, b_enc1_ref,
    w_head_ref, b_head_ref,
    w_dec_z_ref, w_dec_y_ref, b_dec1_ref,
    w_dec2_ref, b_dec2_ref,
    recon_ref, mu_ref, logvar_ref,
):
    y = y_ref[...]                                     # (RB, 10) f32

    # ---- encoder fc1 (embed_data 1x1-conv + embed_class + concat folded in)
    h = jnp.dot(x_ref[...].astype(jnp.bfloat16), w_enc_x_ref[...],
                preferred_element_type=jnp.float32)    # (RB, 64)
    h = h + jnp.dot(y, w_enc_y_ref[...], preferred_element_type=jnp.float32)
    h = jnp.maximum(h + b_enc1_ref[...], 0.0)

    # ---- fused (mu | logvar) head: one (64, 32) matmul
    ml = jnp.dot(h, w_head_ref[...], preferred_element_type=jnp.float32)
    ml = ml + b_head_ref[...]                          # (RB, 32)
    mu = ml[:, :LATENT_DIM]
    logvar = ml[:, LATENT_DIM:]
    mu_ref[...] = mu
    logvar_ref[...] = logvar

    # ---- reparameterize: z = eps * exp(0.5*logvar) + mu   (f32, EUP exp)
    z = eps_ref[...] * jnp.exp(0.5 * logvar) + mu      # (RB, 16)

    # ---- decoder fc1 (latent concat folded into split weights)
    hd = jnp.dot(z, w_dec_z_ref[...], preferred_element_type=jnp.float32)
    hd = hd + jnp.dot(y, w_dec_y_ref[...], preferred_element_type=jnp.float32)
    hd = jnp.maximum(hd + b_dec1_ref[...], 0.0)        # (RB, 64)

    # ---- decoder fc2 + sigmoid, lane-dense (RB, 3072) output
    out = jnp.dot(hd.astype(jnp.bfloat16), w_dec2_ref[...],
                  preferred_element_type=jnp.float32)
    recon_ref[...] = jax.nn.sigmoid(out + b_dec2_ref[...])


def _fused_forward(kp, x_flat, y, eps, *, block_rows):
    bp = x_flat.shape[0]
    nb = bp // block_rows

    def row_spec(feat):
        return pl.BlockSpec((block_rows, feat), lambda i: (i, 0))

    def full_spec(arr):
        return pl.BlockSpec(arr.shape, lambda i: (0, 0))

    out_shape = (
        jax.ShapeDtypeStruct((bp, D_IN), jnp.float32),       # recon (lane-dense)
        jax.ShapeDtypeStruct((bp, LATENT_DIM), jnp.float32),  # mu
        jax.ShapeDtypeStruct((bp, LATENT_DIM), jnp.float32),  # logvar
    )
    return pl.pallas_call(
        _vae_fused_kernel,
        out_shape=out_shape,
        grid_spec=pltpu.PrefetchScalarGridSpec(
            num_scalar_prefetch=0,
            grid=(nb,),
            in_specs=[
                row_spec(D_IN), row_spec(NUM_CLASSES), row_spec(LATENT_DIM),
                full_spec(kp["w_enc_x"]), full_spec(kp["w_enc_y"]),
                full_spec(kp["b_enc1"]),
                full_spec(kp["w_head"]), full_spec(kp["b_head"]),
                full_spec(kp["w_dec_z"]), full_spec(kp["w_dec_y"]),
                full_spec(kp["b_dec1"]),
                full_spec(kp["w_dec2"]), full_spec(kp["b_dec2"]),
            ],
            out_specs=[row_spec(D_IN), row_spec(LATENT_DIM),
                       row_spec(LATENT_DIM)],
        ),
        compiler_params=pltpu.CompilerParams(
            dimension_semantics=("parallel",),
        ),
    )(x_flat, y, eps,
      kp["w_enc_x"], kp["w_enc_y"], kp["b_enc1"],
      kp["w_head"], kp["b_head"],
      kp["w_dec_z"], kp["w_dec_y"], kp["b_dec1"],
      kp["w_dec2"], kp["b_dec2"])


# ----------------------------------------------------------------------------
# Parameters (deterministic synthetic init) and offline weight folding
# ----------------------------------------------------------------------------
def init_params(key):
    ks = jax.random.split(key, 8)

    def w(k, shape, scale=0.05):
        return (scale * jax.random.normal(k, shape)).astype(jnp.float32)

    flat_in = (IMG_C + 1) * HW  # 4*32*32
    return {
        # VAE's own layers (stored (in, out))
        "embed_class_w": w(ks[0], (NUM_CLASSES, HW)),      # Linear(10, 32*32)
        "embed_class_b": jnp.zeros((HW,), jnp.float32),
        "embed_data_w": w(ks[1], (IMG_C, IMG_C)),          # Conv2d(3,3,k=1) == channel matmul
        "embed_data_b": jnp.zeros((IMG_C,), jnp.float32),
        # encoder MLP (stand-in)
        "enc_fc1_w": w(ks[2], (flat_in, ENC_HIDDEN)),
        "enc_fc1_b": jnp.zeros((ENC_HIDDEN,), jnp.float32),
        "enc_mu_w": w(ks[3], (ENC_HIDDEN, LATENT_DIM)),
        "enc_mu_b": jnp.zeros((LATENT_DIM,), jnp.float32),
        "enc_lv_w": w(ks[4], (ENC_HIDDEN, LATENT_DIM)),
        "enc_lv_b": jnp.zeros((LATENT_DIM,), jnp.float32),
        # decoder MLP (stand-in; input = latent 16 + one-hot 10 = 26)
        "dec_fc1_w": w(ks[5], (LATENT_DIM + NUM_CLASSES, DEC_HIDDEN)),
        "dec_fc1_b": jnp.zeros((DEC_HIDDEN,), jnp.float32),
        "dec_fc2_w": w(ks[6], (DEC_HIDDEN, D_IN)),
        "dec_fc2_b": jnp.zeros((D_IN,), jnp.float32),
    }


def fuse_params(p):
    """Compose linear maps offline so the kernel sees lane-dense fused weights."""
    wd, bd = p["embed_data_w"], p["embed_data_b"]        # (3,3) [cin,cout], (3,)
    w1 = p["enc_fc1_w"]                                   # (4096, 64), rows = [c*1024 + pix]
    w1_img = w1[: IMG_C * HW].reshape(IMG_C, HW, ENC_HIDDEN)   # [cout, pix, h]
    w1_cls = w1[IMG_C * HW:]                                    # (1024, 64)

    # fold embed_data (1x1 conv) into the image part of enc_fc1
    w_enc_x = jnp.einsum("io,oph->iph", wd, w1_img).reshape(IMG_C * HW, ENC_HIDDEN)
    b_img = jnp.einsum("o,oph->h", bd, w1_img)

    # fold embed_class (Linear(10, 1024)) into the class part of enc_fc1
    w_enc_y = p["embed_class_w"] @ w1_cls                 # (10, 64)
    b_cls = p["embed_class_b"] @ w1_cls                   # (64,)

    b_enc1 = p["enc_fc1_b"] + b_img + b_cls

    # fused mu|logvar head
    w_head = jnp.concatenate([p["enc_mu_w"], p["enc_lv_w"]], axis=1)      # (64, 32)
    b_head = jnp.concatenate([p["enc_mu_b"], p["enc_lv_b"]], axis=0)      # (32,)

    # split decoder fc1 so the [z, y] concat is a free accumulation
    w_dec_z = p["dec_fc1_w"][:LATENT_DIM]                 # (16, 64)
    w_dec_y = p["dec_fc1_w"][LATENT_DIM:]                 # (10, 64)

    return {
        # big matmul weights in bf16 (f32 accumulation inside the kernel)
        "w_enc_x": w_enc_x.astype(jnp.bfloat16),          # (3072, 64)
        "w_dec2": p["dec_fc2_w"].astype(jnp.bfloat16),    # (64, 3072)
        # small weights / biases stay f32
        "w_enc_y": w_enc_y,
        "b_enc1": b_enc1.reshape(1, ENC_HIDDEN),
        "w_head": w_head,
        "b_head": b_head.reshape(1, 2 * LATENT_DIM),
        "w_dec_z": w_dec_z,
        "w_dec_y": w_dec_y,
        "b_dec1": p["dec_fc1_b"].reshape(1, DEC_HIDDEN),
        "b_dec2": p["dec_fc2_b"].reshape(1, D_IN),
    }


# ----------------------------------------------------------------------------
# Forward pass (mirrors VAE.forward)
# ----------------------------------------------------------------------------
def vae_forward(kparams, x, y, eps):
    """x: (B,3,32,32) NCHW f32, y: (B,10) one-hot f32, eps: (B,16) f32."""
    b = x.shape[0]
    x_flat = x.reshape(b, D_IN)                           # NCHW flatten, lane-dense

    bp = ((b + ROW_BLOCK - 1) // ROW_BLOCK) * ROW_BLOCK
    if bp != b:
        pad = ((0, bp - b), (0, 0))
        x_flat = jnp.pad(x_flat, pad)
        y_p = jnp.pad(y, pad)
        eps_p = jnp.pad(eps, pad)
    else:
        y_p, eps_p = y, eps

    recon, mu, logvar = _fused_forward(kparams, x_flat, y_p, eps_p,
                                       block_rows=ROW_BLOCK)
    recon = recon[:b].reshape(b, IMG_C, IMG_H, IMG_W)
    return [recon, x, mu[:b], logvar[:b]]


# Pure-JAX reference of the unfused/unfolded forward (for a numerical sanity check).
def vae_forward_reference(p, x, y, eps):
    b = x.shape[0]
    emb_cls = (y @ p["embed_class_w"] + p["embed_class_b"]).reshape(b, 1, IMG_H, IMG_W)
    x_rows = jnp.transpose(x, (0, 2, 3, 1)).reshape(-1, IMG_C)
    emb_in = x_rows @ p["embed_data_w"] + p["embed_data_b"]
    emb_in = jnp.transpose(emb_in.reshape(b, IMG_H, IMG_W, IMG_C), (0, 3, 1, 2))
    xc = jnp.concatenate([emb_in, emb_cls], axis=1).reshape(b, -1)
    h = jnp.maximum(xc @ p["enc_fc1_w"] + p["enc_fc1_b"], 0.0)
    mu = h @ p["enc_mu_w"] + p["enc_mu_b"]
    logvar = h @ p["enc_lv_w"] + p["enc_lv_b"]
    z = eps * jnp.exp(0.5 * logvar) + mu
    zy = jnp.concatenate([z, y], axis=1)
    hd = jnp.maximum(zy @ p["dec_fc1_w"] + p["dec_fc1_b"], 0.0)
    recon = jax.nn.sigmoid(hd @ p["dec_fc2_w"] + p["dec_fc2_b"])
    return recon.reshape(b, IMG_C, IMG_H, IMG_W), mu, logvar


# ----------------------------------------------------------------------------
if __name__ == "__main__":
    key = jax.random.PRNGKey(0)
    k_x, k_p, k_eps = jax.random.split(key, 3)

    B = 2
    x = jax.random.normal(k_x, (B, IMG_C, IMG_H, IMG_W), jnp.float32)   # NCHW input
    y = jax.nn.one_hot(jnp.array([3, 7]), NUM_CLASSES).astype(jnp.float32)  # (B, 10)
    eps = jax.random.normal(k_eps, (B, LATENT_DIM), jnp.float32)        # randn_like(std)

    params = init_params(k_p)
    kparams = fuse_params(params)

    fwd = jax.jit(vae_forward)
    recon, inp, mu, logvar = fwd(kparams, x, y, eps)
    jax.block_until_ready(recon)
    jax.block_until_ready(mu)
    jax.block_until_ready(logvar)

    assert recon.shape == (B, IMG_C, IMG_H, IMG_W)
    assert inp.shape == (B, IMG_C, IMG_H, IMG_W)
    assert mu.shape == (B, LATENT_DIM)
    assert logvar.shape == (B, LATENT_DIM)

    # numerical sanity vs. the unfused f32 reference (bf16 weights -> loose tol)
    r_ref, mu_ref_, lv_ref_ = vae_forward_reference(params, x, y, eps)
    def _maxdiff(a, b_):
        return float(jnp.max(jnp.abs(a - b_)))
    assert _maxdiff(recon, r_ref) < 5e-2, _maxdiff(recon, r_ref)
    assert _maxdiff(mu, mu_ref_) < 5e-2, _maxdiff(mu, mu_ref_)
    assert _maxdiff(logvar, lv_ref_) < 5e-2, _maxdiff(logvar, lv_ref_)

    print("KERNEL_OK")
</pallas_src>

<mosaic_0001>
module attributes {stable_mosaic.version = 11 : i64} {
  func.func @_vae_fused_kernel(%arg0: i32, %arg1: memref<8x3072xf32, #tpu.memory_space<vmem>>, %arg2: memref<8x10xf32, #tpu.memory_space<vmem>>, %arg3: memref<8x16xf32, #tpu.memory_space<vmem>>, %arg4: memref<3072x64xbf16, #tpu.memory_space<vmem>>, %arg5: memref<10x64xf32, #tpu.memory_space<vmem>>, %arg6: memref<1x64xf32, #tpu.memory_space<vmem>>, %arg7: memref<64x32xf32, #tpu.memory_space<vmem>>, %arg8: memref<1x32xf32, #tpu.memory_space<vmem>>, %arg9: memref<16x64xf32, #tpu.memory_space<vmem>>, %arg10: memref<10x64xf32, #tpu.memory_space<vmem>>, %arg11: memref<1x64xf32, #tpu.memory_space<vmem>>, %arg12: memref<64x3072xbf16, #tpu.memory_space<vmem>>, %arg13: memref<1x3072xf32, #tpu.memory_space<vmem>>, %arg14: memref<8x3072xf32, #tpu.memory_space<vmem>>, %arg15: memref<8x16xf32, #tpu.memory_space<vmem>>, %arg16: memref<8x16xf32, #tpu.memory_space<vmem>>) attributes {dimension_semantics = [#tpu.dimension_semantics<parallel>], iteration_bounds = array<i64: 1>, scalar_prefetch = 0 : i64, scratch_operands = 0 : i64, tpu.core_type = #tpu.core_type<tc>, window_params = [{transform_indices = @transform_0, window_bounds = array<i64: 8, 3072>}, {transform_indices = @transform_1, window_bounds = array<i64: 8, 10>}, {transform_indices = @transform_2, window_bounds = array<i64: 8, 16>}, {pipeline_mode = #tpu.pipeline_mode<synchronous>, transform_indices = @transform_3, window_bounds = array<i64: 3072, 64>}, {pipeline_mode = #tpu.pipeline_mode<synchronous>, transform_indices = @transform_4, window_bounds = array<i64: 10, 64>}, {pipeline_mode = #tpu.pipeline_mode<synchronous>, transform_indices = @transform_5, window_bounds = array<i64: 1, 64>}, {pipeline_mode = #tpu.pipeline_mode<synchronous>, transform_indices = @transform_6, window_bounds = array<i64: 64, 32>}, {pipeline_mode = #tpu.pipeline_mode<synchronous>, transform_indices = @transform_7, window_bounds = array<i64: 1, 32>}, {pipeline_mode = #tpu.pipeline_mode<synchronous>, transform_indices = @transform_8, window_bounds = array<i64: 16, 64>}, {pipeline_mode = #tpu.pipeline_mode<synchronous>, transform_indices = @transform_9, window_bounds = array<i64: 10, 64>}, {pipeline_mode = #tpu.pipeline_mode<synchronous>, transform_indices = @transform_10, window_bounds = array<i64: 1, 64>}, {pipeline_mode = #tpu.pipeline_mode<synchronous>, transform_indices = @transform_11, window_bounds = array<i64: 64, 3072>}, {pipeline_mode = #tpu.pipeline_mode<synchronous>, transform_indices = @transform_12, window_bounds = array<i64: 1, 3072>}, {transform_indices = @transform_13, window_bounds = array<i64: 8, 3072>}, {transform_indices = @transform_14, window_bounds = array<i64: 8, 16>}, {transform_indices = @transform_15, window_bounds = array<i64: 8, 16>}]} {
    %c0 = arith.constant 0 : index
    %c0_0 = arith.constant 0 : index
    %0 = vector.load %arg2[%c0, %c0_0] : memref<8x10xf32, #tpu.memory_space<vmem>>, vector<8x10xf32>
    %c0_1 = arith.constant 0 : index
    %c0_2 = arith.constant 0 : index
    %1 = vector.load %arg1[%c0_1, %c0_2] : memref<8x3072xf32, #tpu.memory_space<vmem>>, vector<8x3072xf32>
    %2 = arith.truncf %1 : vector<8x3072xf32> to vector<8x3072xbf16>
    %c0_3 = arith.constant 0 : index
    %c0_4 = arith.constant 0 : index
    %3 = vector.load %arg4[%c0_3, %c0_4] : memref<3072x64xbf16, #tpu.memory_space<vmem>>, vector<3072x64xbf16>
    %cst = arith.constant dense<0.000000e+00> : vector<8x64xf32>
    %4 = tpu.matmul %2, %3, %cst {dimension_numbers = #tpu.dot_dimension_numbers<[1], [0], [0], [1], [0, 0, 1, 1], [], []>} : vector<8x3072xbf16>, vector<3072x64xbf16>, vector<8x64xf32> -> vector<8x64xf32>
    %c0_5 = arith.constant 0 : index
    %c0_6 = arith.constant 0 : index
    %5 = vector.load %arg5[%c0_5, %c0_6] : memref<10x64xf32, #tpu.memory_space<vmem>>, vector<10x64xf32>
    %cst_7 = arith.constant dense<0.000000e+00> : vector<8x64xf32>
    %6 = tpu.matmul %0, %5, %cst_7 {dimension_numbers = #tpu.dot_dimension_numbers<[1], [0], [0], [1], [0, 0, 1, 1], [], []>} : vector<8x10xf32>, vector<10x64xf32>, vector<8x64xf32> -> vector<8x64xf32>
    %7 = arith.addf %4, %6 : vector<8x64xf32>
    %c0_8 = arith.constant 0 : index
    %c0_9 = arith.constant 0 : index
    %8 = vector.load %arg6[%c0_8, %c0_9] : memref<1x64xf32, #tpu.memory_space<vmem>>, vector<1x64xf32>
    %9 = vector.broadcast %8 : vector<1x64xf32> to vector<8x64xf32>
    %10 = arith.addf %7, %9 : vector<8x64xf32>
    %cst_10 = arith.constant 0.000000e+00 : f32
    %11 = vector.broadcast %cst_10 : f32 to vector<8x64xf32>
    %12 = arith.maximumf %10, %11 : vector<8x64xf32>
    %c0_11 = arith.constant 0 : index
    %c0_12 = arith.constant 0 : index
    %13 = vector.load %arg7[%c0_11, %c0_12] : memref<64x32xf32, #tpu.memory_space<vmem>>, vector<64x32xf32>
    %cst_13 = arith.constant dense<0.000000e+00> : vector<8x32xf32>
    %14 = tpu.matmul %12, %13, %cst_13 {dimension_numbers = #tpu.dot_dimension_numbers<[1], [0], [0], [1], [0, 0, 1, 1], [], []>} : vector<8x64xf32>, vector<64x32xf32>, vector<8x32xf32> -> vector<8x32xf32>
    %c0_14 = arith.constant 0 : index
    %c0_15 = arith.constant 0 : index
    %15 = vector.load %arg8[%c0_14, %c0_15] : memref<1x32xf32, #tpu.memory_space<vmem>>, vector<1x32xf32>
    %16 = vector.broadcast %15 : vector<1x32xf32> to vector<8x32xf32>
    %17 = arith.addf %14, %16 : vector<8x32xf32>
    %18 = vector.extract_strided_slice %17 {offsets = [0, 0], sizes = [8, 16], strides = [1, 1]} : vector<8x32xf32> to vector<8x16xf32>
    %19 = vector.extract_strided_slice %17 {offsets = [0, 16], sizes = [8, 16], strides = [1, 1]} : vector<8x32xf32> to vector<8x16xf32>
    %c0_16 = arith.constant 0 : index
    %c0_17 = arith.constant 0 : index
    %20 = vector.load %arg15[%c0_16, %c0_17] : memref<8x16xf32, #tpu.memory_space<vmem>>, vector<8x16xf32>
    tpu.vector_store %arg15[%c0_16, %c0_17], %18 {strides = array<i32>} : memref<8x16xf32, #tpu.memory_space<vmem>>, vector<8x16xf32>,
    %c0_18 = arith.constant 0 : index
    %c0_19 = arith.constant 0 : index
    %21 = vector.load %arg16[%c0_18, %c0_19] : memref<8x16xf32, #tpu.memory_space<vmem>>, vector<8x16xf32>
    tpu.vector_store %arg16[%c0_18, %c0_19], %19 {strides = array<i32>} : memref<8x16xf32, #tpu.memory_space<vmem>>, vector<8x16xf32>,
    %c0_20 = arith.constant 0 : index
    %c0_21 = arith.constant 0 : index
    %22 = vector.load %arg3[%c0_20, %c0_21] : memref<8x16xf32, #tpu.memory_space<vmem>>, vector<8x16xf32>
    %cst_22 = arith.constant 5.000000e-01 : f32
    %23 = vector.broadcast %cst_22 : f32 to vector<8x16xf32>
    %24 = arith.mulf %23, %19 : vector<8x16xf32>
    %25 = math.exp %24 : vector<8x16xf32>
    %26 = arith.mulf %22, %25 : vector<8x16xf32>
    %27 = arith.addf %26, %18 : vector<8x16xf32>
    %c0_23 = arith.constant 0 : index
    %c0_24 = arith.constant 0 : index
    %28 = vector.load %arg9[%c0_23, %c0_24] : memref<16x64xf32, #tpu.memory_space<vmem>>, vector<16x64xf32>
    %cst_25 = arith.constant dense<0.000000e+00> : vector<8x64xf32>
    %29 = tpu.matmul %27, %28, %cst_25 {dimension_numbers = #tpu.dot_dimension_numbers<[1], [0], [0], [1], [0, 0, 1, 1], [], []>} : vector<8x16xf32>, vector<16x64xf32>, vector<8x64xf32> -> vector<8x64xf32>
    %c0_26 = arith.constant 0 : index
    %c0_27 = arith.constant 0 : index
    %30 = vector.load %arg10[%c0_26, %c0_27] : memref<10x64xf32, #tpu.memory_space<vmem>>, vector<10x64xf32>
    %cst_28 = arith.constant dense<0.000000e+00> : vector<8x64xf32>
    %31 = tpu.matmul %0, %30, %cst_28 {dimension_numbers = #tpu.dot_dimension_numbers<[1], [0], [0], [1], [0, 0, 1, 1], [], []>} : vector<8x10xf32>, vector<10x64xf32>, vector<8x64xf32> -> vector<8x64xf32>
    %32 = arith.addf %29, %31 : vector<8x64xf32>
    %c0_29 = arith.constant 0 : index
    %c0_30 = arith.constant 0 : index
    %33 = vector.load %arg11[%c0_29, %c0_30] : memref<1x64xf32, #tpu.memory_space<vmem>>, vector<1x64xf32>
    %34 = vector.broadcast %33 : vector<1x64xf32> to vector<8x64xf32>
    %35 = arith.addf %32, %34 : vector<8x64xf32>
    %cst_31 = arith.constant 0.000000e+00 : f32
    %36 = vector.broadcast %cst_31 : f32 to vector<8x64xf32>
    %37 = arith.maximumf %35, %36 : vector<8x64xf32>
    %38 = arith.truncf %37 : vector<8x64xf32> to vector<8x64xbf16>
    %c0_32 = arith.constant 0 : index
    %c0_33 = arith.constant 0 : index
    %39 = vector.load %arg12[%c0_32, %c0_33] : memref<64x3072xbf16, #tpu.memory_space<vmem>>, vector<64x3072xbf16>
    %cst_34 = arith.constant dense<0.000000e+00> : vector<8x3072xf32>
    %40 = tpu.matmul %38, %39, %cst_34 {dimension_numbers = #tpu.dot_dimension_numbers<[1], [0], [0], [1], [0, 0, 1, 1], [], []>} : vector<8x64xbf16>, vector<64x3072xbf16>, vector<8x3072xf32> -> vector<8x3072xf32>
    %c0_35 = arith.constant 0 : index
    %c0_36 = arith.constant 0 : index
    %41 = vector.load %arg13[%c0_35, %c0_36] : memref<1x3072xf32, #tpu.memory_space<vmem>>, vector<1x3072xf32>
    %42 = vector.broadcast %41 : vector<1x3072xf32> to vector<8x3072xf32>
    %43 = arith.addf %40, %42 : vector<8x3072xf32>
    %44 = arith.negf %43 : vector<8x3072xf32>
    %45 = math.exp %44 : vector<8x3072xf32>
    %cst_37 = arith.constant 1.000000e+00 : f32
    %46 = vector.broadcast %cst_37 : f32 to vector<8x3072xf32>
    %47 = arith.addf %46, %45 : vector<8x3072xf32>
    %48 = arith.divf %46, %47 : vector<8x3072xf32>
    %c0_38 = arith.constant 0 : index
    %c0_39 = arith.constant 0 : index
    %49 = vector.load %arg14[%c0_38, %c0_39] : memref<8x3072xf32, #tpu.memory_space<vmem>>, vector<8x3072xf32>
    tpu.vector_store %arg14[%c0_38, %c0_39], %48 {strides = array<i32>} : memref<8x3072xf32, #tpu.memory_space<vmem>>, vector<8x3072xf32>,
    return
  }
  func.func @transform_0(%arg0: i32) -> (i32, i32) {
    %c0_i32 = arith.constant 0 : i32
    %c0_i32_0 = arith.constant 0 : i32
    return %arg0, %c0_i32 : i32, i32
  }
  func.func @transform_1(%arg0: i32) -> (i32, i32) {
    %c0_i32 = arith.constant 0 : i32
    %c0_i32_0 = arith.constant 0 : i32
    return %arg0, %c0_i32 : i32, i32
  }
  func.func @transform_2(%arg0: i32) -> (i32, i32) {
    %c0_i32 = arith.constant 0 : i32
    %c0_i32_0 = arith.constant 0 : i32
    return %arg0, %c0_i32 : i32, i32
  }
  func.func @transform_3(%arg0: i32) -> (i32, i32) {
    %c0_i32 = arith.constant 0 : i32
    %c0_i32_0 = arith.constant 0 : i32
    %c0_i32_1 = arith.constant 0 : i32
    return %c0_i32, %c0_i32_0 : i32, i32
  }
  func.func @transform_4(%arg0: i32) -> (i32, i32) {
    %c0_i32 = arith.constant 0 : i32
    %c0_i32_0 = arith.constant 0 : i32
    %c0_i32_1 = arith.constant 0 : i32
    return %c0_i32, %c0_i32_0 : i32, i32
  }
  func.func @transform_5(%arg0: i32) -> (i32, i32) {
    %c0_i32 = arith.constant 0 : i32
    %c0_i32_0 = arith.constant 0 : i32
    %c0_i32_1 = arith.constant 0 : i32
    return %c0_i32, %c0_i32_0 : i32, i32
  }
  func.func @transform_6(%arg0: i32) -> (i32, i32) {
    %c0_i32 = arith.constant 0 : i32
    %c0_i32_0 = arith.constant 0 : i32
    %c0_i32_1 = arith.constant 0 : i32
    return %c0_i32, %c0_i32_0 : i32, i32
  }
  func.func @transform_7(%arg0: i32) -> (i32, i32) {
    %c0_i32 = arith.constant 0 : i32
    %c0_i32_0 = arith.constant 0 : i32
    %c0_i32_1 = arith.constant 0 : i32
    return %c0_i32, %c0_i32_0 : i32, i32
  }
  func.func @transform_8(%arg0: i32) -> (i32, i32) {
    %c0_i32 = arith.constant 0 : i32
    %c0_i32_0 = arith.constant 0 : i32
    %c0_i32_1 = arith.constant 0 : i32
    return %c0_i32, %c0_i32_0 : i32, i32
  }
  func.func @transform_9(%arg0: i32) -> (i32, i32) {
    %c0_i32 = arith.constant 0 : i32
    %c0_i32_0 = arith.constant 0 : i32
    %c0_i32_1 = arith.constant 0 : i32
    return %c0_i32, %c0_i32_0 : i32, i32
  }
  func.func @transform_10(%arg0: i32) -> (i32, i32) {
    %c0_i32 = arith.constant 0 : i32
    %c0_i32_0 = arith.constant 0 : i32
    %c0_i32_1 = arith.constant 0 : i32
    return %c0_i32, %c0_i32_0 : i32, i32
  }
  func.func @transform_11(%arg0: i32) -> (i32, i32) {
    %c0_i32 = arith.constant 0 : i32
    %c0_i32_0 = arith.constant 0 : i32
    %c0_i32_1 = arith.constant 0 : i32
    return %c0_i32, %c0_i32_0 : i32, i32
  }
  func.func @transform_12(%arg0: i32) -> (i32, i32) {
    %c0_i32 = arith.constant 0 : i32
    %c0_i32_0 = arith.constant 0 : i32
    %c0_i32_1 = arith.constant 0 : i32
    return %c0_i32, %c0_i32_0 : i32, i32
  }
  func.func @transform_13(%arg0: i32) -> (i32, i32) {
    %c0_i32 = arith.constant 0 : i32
    %c0_i32_0 = arith.constant 0 : i32
    return %arg0, %c0_i32 : i32, i32
  }
  func.func @transform_14(%arg0: i32) -> (i32, i32) {
    %c0_i32 = arith.constant 0 : i32
    %c0_i32_0 = arith.constant 0 : i32
    return %arg0, %c0_i32 : i32, i32
  }
  func.func @transform_15(%arg0: i32) -> (i32, i32) {
    %c0_i32 = arith.constant 0 : i32
    %c0_i32_0 = arith.constant 0 : i32
    return %arg0, %c0_i32 : i32, i32
  }
}

</mosaic_0001>

<llo_original>
// kernel: vae_forward.1
$region0: #{vae_forward.1}
  #allocation0 [shape = 'u32[]', space=smem, size = 0x4, offset = 0x4, fixed_abs, tag = 'smem constant byte address 0x4 - core index']
  #allocation1 [shape = 'u32[144,128]{1,0:T(1,128)}', space=vmem, size = 0x12000, scoped, tag = 'internal scratch']
  %s0 = inlined_call_operand.vmem [shape: f32[8,3072], index: 0, kind: input, shape index: {}]
  %s1 = inlined_call_operand.vmem [shape: f32[8,10], index: 1, kind: input, shape index: {}]
  %s2 = inlined_call_operand.vmem [shape: f32[8,16], index: 2, kind: input, shape index: {}]
  %s3 = inlined_call_operand.vmem [shape: bf16[3072,64], index: 3, kind: input, shape index: {}]
  %s4 = inlined_call_operand.vmem [shape: f32[10,64], index: 4, kind: input, shape index: {}]
  %s5 = inlined_call_operand.vmem [shape: f32[1,64], index: 5, kind: input, shape index: {}]
  %s6 = inlined_call_operand.vmem [shape: f32[64,32], index: 6, kind: input, shape index: {}]
  %s7 = inlined_call_operand.vmem [shape: f32[1,32], index: 7, kind: input, shape index: {}]
  %s8 = inlined_call_operand.vmem [shape: f32[16,64], index: 8, kind: input, shape index: {}]
  %s9 = inlined_call_operand.vmem [shape: f32[10,64], index: 9, kind: input, shape index: {}]
  %s10 = inlined_call_operand.vmem [shape: f32[1,64], index: 10, kind: input, shape index: {}]
  %s11 = inlined_call_operand.vmem [shape: bf16[64,3072], index: 11, kind: input, shape index: {}]
  %s12 = inlined_call_operand.vmem [shape: f32[1,3072], index: 12, kind: input, shape index: {}]
  %s13 = inlined_call_operand.vmem [shape: f32[8,3072], index: 13, kind: output, shape index: {0}]
  %s14 = inlined_call_operand.vmem [shape: f32[8,16], index: 14, kind: output, shape index: {1}]
  %s15 = inlined_call_operand.vmem [shape: f32[8,16], index: 15, kind: output, shape index: {2}]
  %16 = xla_tuple %s13, %s14, %s15
  %s17 = sld [smem:[#allocation0]]
  $region78: #{vae_forward.1} parent=0
    _
  %s19 = ssub.s32 1, %s17
  %s20 = scalar_select 0, %s19, %s17
  // Predicated region
  $region2: #{vae_forward.1} parent=0 // pred_check
    _
  $region3: #{vae_forward.1} parent=0 // pred_check_branch
    %22 = sbr.rel (0) target = $region5
  $region4: #{vae_forward.1} parent=0 // pred_region
    _
  $region5: #{vae_forward.1} parent=0 // pred_fallthru
    _
  // Predicated region
  $region6: #{vae_forward.1} parent=0 // pred_check
    _
  $region7: #{vae_forward.1} parent=0 // pred_check_branch
    %24 = sbr.rel (0) target = $region9
  $region8: #{vae_forward.1} parent=0 // pred_region
    _
  $region9: #{vae_forward.1} parent=0 // pred_fallthru
    _
  // Predicated region
  $region10: #{vae_forward.1} parent=0 // pred_check
    _
  $region11: #{vae_forward.1} parent=0 // pred_check_branch
    %26 = sbr.rel (0) target = $region13
  $region12: #{vae_forward.1} parent=0 // pred_region
    _
  $region13: #{vae_forward.1} parent=0 // pred_fallthru
    _
  // Predicated region
  $region14: #{vae_forward.1} parent=0 // pred_check
    _
  $region15: #{vae_forward.1} parent=0 // pred_check_branch
    %28 = sbr.rel (0) target = $region17
  $region16: #{vae_forward.1} parent=0 // pred_region
    _
  $region17: #{vae_forward.1} parent=0 // pred_fallthru
    _
  // Predicated region
  $region18: #{vae_forward.1} parent=0 // pred_check
    _
  $region19: #{vae_forward.1} parent=0 // pred_check_branch
    %30 = sbr.rel (0) target = $region21
  $region20: #{vae_forward.1} parent=0 // pred_region
    _
  $region21: #{vae_forward.1} parent=0 // pred_fallthru
    _
  // Predicated region
  $region22: #{vae_forward.1} parent=0 // pred_check
    _
  $region23: #{vae_forward.1} parent=0 // pred_check_branch
    %32 = sbr.rel (0) target = $region25
  $region24: #{vae_forward.1} parent=0 // pred_region
    _
  $region25: #{vae_forward.1} parent=0 // pred_fallthru
    _
  // Predicated region
  $region26: #{vae_forward.1} parent=0 // pred_check
    _
  $region27: #{vae_forward.1} parent=0 // pred_check_branch
    %34 = sbr.rel (0) target = $region29
  $region28: #{vae_forward.1} parent=0 // pred_region
    _
  $region29: #{vae_forward.1} parent=0 // pred_fallthru
    _
  // Predicated region
  $region30: #{vae_forward.1} parent=0 // pred_check
    _
  $region31: #{vae_forward.1} parent=0 // pred_check_branch
    %36 = sbr.rel (0) target = $region33
  $region32: #{vae_forward.1} parent=0 // pred_region
    _
  $region33: #{vae_forward.1} parent=0 // pred_fallthru
    _
  // Predicated region
  $region34: #{vae_forward.1} parent=0 // pred_check
    _
  $region35: #{vae_forward.1} parent=0 // pred_check_branch
    %38 = sbr.rel (0) target = $region37
  $region36: #{vae_forward.1} parent=0 // pred_region
    _
  $region37: #{vae_forward.1} parent=0 // pred_fallthru
    _
  // Predicated region
  $region38: #{vae_forward.1} parent=0 // pred_check
    _
  $region39: #{vae_forward.1} parent=0 // pred_check_branch
    %40 = sbr.rel (0) target = $region41
  $region40: #{vae_forward.1} parent=0 // pred_region
    _
  $region41: #{vae_forward.1} parent=0 // pred_fallthru
    _
  // Predicated region
  $region42: #{vae_forward.1} parent=0 // pred_check
    _
  $region43: #{vae_forward.1} parent=0 // pred_check_branch
    %42 = sbr.rel (0) target = $region45
  $region44: #{vae_forward.1} parent=0 // pred_region
    _
  $region45: #{vae_forward.1} parent=0 // pred_fallthru
    _
  // Predicated region
  $region46: #{vae_forward.1} parent=0 // pred_check
    _
  $region47: #{vae_forward.1} parent=0 // pred_check_branch
    %44 = sbr.rel (0) target = $region49
  $region48: #{vae_forward.1} parent=0 // pred_region
    _
  $region49: #{vae_forward.1} parent=0 // pred_fallthru
    _
  // Predicated region
  $region50: #{vae_forward.1} parent=0 // pred_check
    _
  $region51: #{vae_forward.1} parent=0 // pred_check_branch
    %46 = sbr.rel (0) target = $region53
  $region52: #{vae_forward.1} parent=0 // pred_region
    _
  $region53: #{vae_forward.1} parent=0 // pred_fallthru
    _
  %v48 = vld [vmem:[%s1] sm:$0xff]
  %v49 = vld [vmem:[%s0] sm:$0xff]
  %v50 = vld [vmem:[%s0 + $0x8] sm:$0xff]
  %v51 = vld [vmem:[%s0 + $0x10] sm:$0xff]
  %v52 = vld [vmem:[%s0 + $0x18] sm:$0xff]
  %v53 = vld [vmem:[%s0 + $0x20] sm:$0xff]
  %v54 = vld [vmem:[%s0 + $0x28] sm:$0xff]
  %v55 = vld [vmem:[%s0 + $0x30] sm:$0xff]
  %v56 = vld [vmem:[%s0 + $0x38] sm:$0xff]
  %v57 = vld [vmem:[%s0 + $0x40] sm:$0xff]
  %v58 = vld [vmem:[%s0 + $0x48] sm:$0xff]
  %v59 = vld [vmem:[%s0 + $0x50] sm:$0xff]
  %v60 = vld [vmem:[%s0 + $0x58] sm:$0xff]
  %v61 = vld [vmem:[%s0 + $0x60] sm:$0xff]
  %v62 = vld [vmem:[%s0 + $0x68] sm:$0xff]
  %v63 = vld [vmem:[%s0 + $0x70] sm:$0xff]
  %v64 = vld [vmem:[%s0 + $0x78] sm:$0xff]
  %v65 = vld [vmem:[%s0 + $0x80] sm:$0xff]
  %v66 = vld [vmem:[%s0 + $0x88] sm:$0xff]
  %v67 = vld [vmem:[%s0 + $0x90] sm:$0xff]
  %v68 = vld [vmem:[%s0 + $0x98] sm:$0xff]
  %v69 = vld [vmem:[%s0 + $0xa0] sm:$0xff]
  %v70 = vld [vmem:[%s0 + $0xa8] sm:$0xff]
  %v71 = vld [vmem:[%s0 + $0xb0] sm:$0xff]
  %v72 = vld [vmem:[%s0 + $0xb8] sm:$0xff]
  %v73 = vpack.c.bf16 %v49, %v49
  %v74 = vpack.c.bf16 %v50, %v50
  %v75 = vpack.c.bf16 %v51, %v51
  %v76 = vpack.c.bf16 %v52, %v52
  %v77 = vpack.c.bf16 %v53, %v53
  %v78 = vpack.c.bf16 %v54, %v54
  %v79 = vpack.c.bf16 %v55, %v55
  %v80 = vpack.c.bf16 %v56, %v56
  %v81 = vpack.c.bf16 %v57, %v57
  %v82 = vpack.c.bf16 %v58, %v58
  %v83 = vpack.c.bf16 %v59, %v59
  %v84 = vpack.c.bf16 %v60, %v60
  %v85 = vpack.c.bf16 %v61, %v61
  %v86 = vpack.c.bf16 %v62, %v62
  %v87 = vpack.c.bf16 %v63, %v63
  %v88 = vpack.c.bf16 %v64, %v64
  %v89 = vpack.c.bf16 %v65, %v65
  %v90 = vpack.c.bf16 %v66, %v66
  %v91 = vpack.c.bf16 %v67, %v67
  %v92 = vpack.c.bf16 %v68, %v68
  %v93 = vpack.c.bf16 %v69, %v69
  %v94 = vpack.c.bf16 %v70, %v70
  %v95 = vpack.c.bf16 %v71, %v71
  %v96 = vpack.c.bf16 %v72, %v72
  %v97 = vld [vmem:[%s3] sm:$0xf]
  %v98 = vld [vmem:[%s3 + $0x4] sm:$0xf]
  %v99 = vld [vmem:[%s3 + $0x8] sm:$0xf]
  %v100 = vld [vmem:[%s3 + $0xc] sm:$0xf]
  %v101 = vld [vmem:[%s3 + $0x10] sm:$0xf]
  %v102 = vld [vmem:[%s3 + $0x14] sm:$0xf]
  %v103 = vld [vmem:[%s3 + $0x18] sm:$0xf]
  %v104 = vld [vmem:[%s3 + $0x1c] sm:$0xf]
  %v105 = vld [vmem:[%s3 + $0x20] sm:$0xf]
  %v106 = vld [vmem:[%s3 + $0x24] sm:$0xf]
  %v107 = vld [vmem:[%s3 + $0x28] sm:$0xf]
  %v108 = vld [vmem:[%s3 + $0x2c] sm:$0xf]
  %v109 = vld [vmem:[%s3 + $0x30] sm:$0xf]
  %v110 = vld [vmem:[%s3 + $0x34] sm:$0xf]
  %v111 = vld [vmem:[%s3 + $0x38] sm:$0xf]
  %v112 = vld [vmem:[%s3 + $0x3c] sm:$0xf]
  %v113 = vld [vmem:[%s3 + $0x40] sm:$0xf]
  %v114 = vld [vmem:[%s3 + $0x44] sm:$0xf]
  %v115 = vld [vmem:[%s3 + $0x48] sm:$0xf]
  %v116 = vld [vmem:[%s3 + $0x4c] sm:$0xf]
  %v117 = vld [vmem:[%s3 + $0x50] sm:$0xf]
  %v118 = vld [vmem:[%s3 + $0x54] sm:$0xf]
  %v119 = vld [vmem:[%s3 + $0x58] sm:$0xf]
  %v120 = vld [vmem:[%s3 + $0x5c] sm:$0xf]
  %v121 = vld [vmem:[%s3 + $0x60] sm:$0xf]
  %v122 = vld [vmem:[%s3 + $0x64] sm:$0xf]
  %v123 = vld [vmem:[%s3 + $0x68] sm:$0xf]
  %v124 = vld [vmem:[%s3 + $0x6c] sm:$0xf]
  %v125 = vld [vmem:[%s3 + $0x70] sm:$0xf]
  %v126 = vld [vmem:[%s3 + $0x74] sm:$0xf]
  %v127 = vld [vmem:[%s3 + $0x78] sm:$0xf]
  %v128 = vld [vmem:[%s3 + $0x7c] sm:$0xf]
  %v129 = vld [vmem:[%s3 + $0x80] sm:$0xf]
  %v130 = vld [vmem:[%s3 + $0x84] sm:$0xf]
  %v131 = vld [vmem:[%s3 + $0x88] sm:$0xf]
  %v132 = vld [vmem:[%s3 + $0x8c] sm:$0xf]
  %v133 = vld [vmem:[%s3 + $0x90] sm:$0xf]
  %v134 = vld [vmem:[%s3 + $0x94] sm:$0xf]
  %v135 = vld [vmem:[%s3 + $0x98] sm:$0xf]
  %v136 = vld [vmem:[%s3 + $0x9c] sm:$0xf]
  %v137 = vld [vmem:[%s3 + $0xa0] sm:$0xf]
  %v138 = vld [vmem:[%s3 + $0xa4] sm:$0xf]
  %v139 = vld [vmem:[%s3 + $0xa8] sm:$0xf]
  %v140 = vld [vmem:[%s3 + $0xac] sm:$0xf]
  %v141 = vld [vmem:[%s3 + $0xb0] sm:$0xf]
  %v142 = vld [vmem:[%s3 + $0xb4] sm:$0xf]
  %v143 = vld [vmem:[%s3 + $0xb8] sm:$0xf]
  %v144 = vld [vmem:[%s3 + $0xbc] sm:$0xf]
  %v145 = vld [vmem:[%s3 + $0xc0] sm:$0xf]
  %v146 = vld [vmem:[%s3 + $0xc4] sm:$0xf]
  %v147 = vld [vmem:[%s3 + $0xc8] sm:$0xf]
  %v148 = vld [vmem:[%s3 + $0xcc] sm:$0xf]
  %v149 = vld [vmem:[%s3 + $0xd0] sm:$0xf]
  %v150 = vld [vmem:[%s3 + $0xd4] sm:$0xf]
  %v151 = vld [vmem:[%s3 + $0xd8] sm:$0xf]
  %v152 = vld [vmem:[%s3 + $0xdc] sm:$0xf]
  %v153 = vld [vmem:[%s3 + $0xe0] sm:$0xf]
  %v154 = vld [vmem:[%s3 + $0xe4] sm:$0xf]
  %v155 = vld [vmem:[%s3 + $0xe8] sm:$0xf]
  %v156 = vld [vmem:[%s3 + $0xec] sm:$0xf]
  %v157 = vld [vmem:[%s3 + $0xf0] sm:$0xf]
  %v158 = vld [vmem:[%s3 + $0xf4] sm:$0xf]
  %v159 = vld [vmem:[%s3 + $0xf8] sm:$0xf]
  %v160 = vld [vmem:[%s3 + $0xfc] sm:$0xf]
  %v161 = vld [vmem:[%s3 + $0x100] sm:$0xf]
  %v162 = vld [vmem:[%s3 + $0x104] sm:$0xf]
  %v163 = vld [vmem:[%s3 + $0x108] sm:$0xf]
  %v164 = vld [vmem:[%s3 + $0x10c] sm:$0xf]
  %v165 = vld [vmem:[%s3 + $0x110] sm:$0xf]
  %v166 = vld [vmem:[%s3 + $0x114] sm:$0xf]
  %v167 = vld [vmem:[%s3 + $0x118] sm:$0xf]
  %v168 = vld [vmem:[%s3 + $0x11c] sm:$0xf]
  %v169 = vld [vmem:[%s3 + $0x120] sm:$0xf]
  %v170 = vld [vmem:[%s3 + $0x124] sm:$0xf]
  %v171 = vld [vmem:[%s3 + $0x128] sm:$0xf]
  %v172 = vld [vmem:[%s3 + $0x12c] sm:$0xf]
  %v173 = vld [vmem:[%s3 + $0x130] sm:$0xf]
  %v174 = vld [vmem:[%s3 + $0x134] sm:$0xf]
  %v175 = vld [vmem:[%s3 + $0x138] sm:$0xf]
  %v176 = vld [vmem:[%s3 + $0x13c] sm:$0xf]
  %v177 = vld [vmem:[%s3 + $0x140] sm:$0xf]
  %v178 = vld [vmem:[%s3 + $0x144] sm:$0xf]
  %v179 = vld [vmem:[%s3 + $0x148] sm:$0xf]
  %v180 = vld [vmem:[%s3 + $0x14c] sm:$0xf]
  %v181 = vld [vmem:[%s3 + $0x150] sm:$0xf]
  %v182 = vld [vmem:[%s3 + $0x154] sm:$0xf]
  %v183 = vld [vmem:[%s3 + $0x158] sm:$0xf]
  %v184 = vld [vmem:[%s3 + $0x15c] sm:$0xf]
  %v185 = vld [vmem:[%s3 + $0x160] sm:$0xf]
  %v186 = vld [vmem:[%s3 + $0x164] sm:$0xf]
  %v187 = vld [vmem:[%s3 + $0x168] sm:$0xf]
  %v188 = vld [vmem:[%s3 + $0x16c] sm:$0xf]
  %v189 = vld [vmem:[%s3 + $0x170] sm:$0xf]
  %v190 = vld [vmem:[%s3 + $0x174] sm:$0xf]
  %v191 = vld [vmem:[%s3 + $0x178] sm:$0xf]
  %v192 = vld [vmem:[%s3 + $0x17c] sm:$0xf]
  %v193 = vld [vmem:[%s3 + $0x180] sm:$0xf]
  %v194 = vld [vmem:[%s3 + $0x184] sm:$0xf]
  %v195 = vld [vmem:[%s3 + $0x188] sm:$0xf]
  %v196 = vld [vmem:[%s3 + $0x18c] sm:$0xf]
  %v197 = vld [vmem:[%s3 + $0x190] sm:$0xf]
  %v198 = vld [vmem:[%s3 + $0x194] sm:$0xf]
  %v199 = vld [vmem:[%s3 + $0x198] sm:$0xf]
  %v200 = vld [vmem:[%s3 + $0x19c] sm:$0xf]
  %v201 = vld [vmem:[%s3 + $0x1a0] sm:$0xf]
  %v202 = vld [vmem:[%s3 + $0x1a4] sm:$0xf]
  %v203 = vld [vmem:[%s3 + $0x1a8] sm:$0xf]
  %v204 = vld [vmem:[%s3 + $0x1ac] sm:$0xf]
  %v205 = vld [vmem:[%s3 + $0x1b0] sm:$0xf]
  %v206 = vld [vmem:[%s3 + $0x1b4] sm:$0xf]
  %v207 = vld [vmem:[%s3 + $0x1b8] sm:$0xf]
  %v208 = vld [vmem:[%s3 + $0x1bc] sm:$0xf]
  %v209 = vld [vmem:[%s3 + $0x1c0] sm:$0xf]
  %v210 = vld [vmem:[%s3 + $0x1c4] sm:$0xf]
  %v211 = vld [vmem:[%s3 + $0x1c8] sm:$0xf]
  %v212 = vld [vmem:[%s3 + $0x1cc] sm:$0xf]
  %v213 = vld [vmem:[%s3 + $0x1d0] sm:$0xf]
  %v214 = vld [vmem:[%s3 + $0x1d4] sm:$0xf]
  %v215 = vld [vmem:[%s3 + $0x1d8] sm:$0xf]
  %v216 = vld [vmem:[%s3 + $0x1dc] sm:$0xf]
  %v217 = vld [vmem:[%s3 + $0x1e0] sm:$0xf]
  %v218 = vld [vmem:[%s3 + $0x1e4] sm:$0xf]
  %v219 = vld [vmem:[%s3 + $0x1e8] sm:$0xf]
  %v220 = vld [vmem:[%s3 + $0x1ec] sm:$0xf]
  %v221 = vld [vmem:[%s3 + $0x1f0] sm:$0xf]
  %v222 = vld [vmem:[%s3 + $0x1f4] sm:$0xf]
  %v223 = vld [vmem:[%s3 + $0x1f8] sm:$0xf]
  %v224 = vld [vmem:[%s3 + $0x1fc] sm:$0xf]
  %v225 = vld [vmem:[%s3 + $0x200] sm:$0xf]
  %v226 = vld [vmem:[%s3 + $0x204] sm:$0xf]
  %v227 = vld [vmem:[%s3 + $0x208] sm:$0xf]
  %v228 = vld [vmem:[%s3 + $0x20c] sm:$0xf]
  %v229 = vld [vmem:[%s3 + $0x210] sm:$0xf]
  %v230 = vld [vmem:[%s3 + $0x214] sm:$0xf]
  %v231 = vld [vmem:[%s3 + $0x218] sm:$0xf]
  %v232 = vld [vmem:[%s3 + $0x21c] sm:$0xf]
  %v233 = vld [vmem:[%s3 + $0x220] sm:$0xf]
  %v234 = vld [vmem:[%s3 + $0x224] sm:$0xf]
  %v235 = vld [vmem:[%s3 + $0x228] sm:$0xf]
  %v236 = vld [vmem:[%s3 + $0x22c] sm:$0xf]
  %v237 = vld [vmem:[%s3 + $0x230] sm:$0xf]
  %v238 = vld [vmem:[%s3 + $0x234] sm:$0xf]
  %v239 = vld [vmem:[%s3 + $0x238] sm:$0xf]
  %v240 = vld [vmem:[%s3 + $0x23c] sm:$0xf]
  %v241 = vld [vmem:[%s3 + $0x240] sm:$0xf]
  %v242 = vld [vmem:[%s3 + $0x244] sm:$0xf]
  %v243 = vld [vmem:[%s3 + $0x248] sm:$0xf]
  %v244 = vld [vmem:[%s3 + $0x24c] sm:$0xf]
  %v245 = vld [vmem:[%s3 + $0x250] sm:$0xf]
  %v246 = vld [vmem:[%s3 + $0x254] sm:$0xf]
  %v247 = vld [vmem:[%s3 + $0x258] sm:$0xf]
  %v248 = vld [vmem:[%s3 + $0x25c] sm:$0xf]
  %v249 = vld [vmem:[%s3 + $0x260] sm:$0xf]
  %v250 = vld [vmem:[%s3 + $0x264] sm:$0xf]
  %v251 = vld [vmem:[%s3 + $0x268] sm:$0xf]
  %v252 = vld [vmem:[%s3 + $0x26c] sm:$0xf]
  %v253 = vld [vmem:[%s3 + $0x270] sm:$0xf]
  %v254 = vld [vmem:[%s3 + $0x274] sm:$0xf]
  %v255 = vld [vmem:[%s3 + $0x278] sm:$0xf]
  %v256 = vld [vmem:[%s3 + $0x27c] sm:$0xf]
  %v257 = vld [vmem:[%s3 + $0x280] sm:$0xf]
  %v258 = vld [vmem:[%s3 + $0x284] sm:$0xf]
  %v259 = vld [vmem:[%s3 + $0x288] sm:$0xf]
  %v260 = vld [vmem:[%s3 + $0x28c] sm:$0xf]
  %v261 = vld [vmem:[%s3 + $0x290] sm:$0xf]
  %v262 = vld [vmem:[%s3 + $0x294] sm:$0xf]
  %v263 = vld [vmem:[%s3 + $0x298] sm:$0xf]
  %v264 = vld [vmem:[%s3 + $0x29c] sm:$0xf]
  %v265 = vld [vmem:[%s3 + $0x2a0] sm:$0xf]
  %v266 = vld [vmem:[%s3 + $0x2a4] sm:$0xf]
  %v267 = vld [vmem:[%s3 + $0x2a8] sm:$0xf]
  %v268 = vld [vmem:[%s3 + $0x2ac] sm:$0xf]
  %v269 = vld [vmem:[%s3 + $0x2b0] sm:$0xf]
  %v270 = vld [vmem:[%s3 + $0x2b4] sm:$0xf]
  %v271 = vld [vmem:[%s3 + $0x2b8] sm:$0xf]
  %v272 = vld [vmem:[%s3 + $0x2bc] sm:$0xf]
  %v273 = vld [vmem:[%s3 + $0x2c0] sm:$0xf]
  %v274 = vld [vmem:[%s3 + $0x2c4] sm:$0xf]
  %v275 = vld [vmem:[%s3 + $0x2c8] sm:$0xf]
  %v276 = vld [vmem:[%s3 + $0x2cc] sm:$0xf]
  %v277 = vld [vmem:[%s3 + $0x2d0] sm:$0xf]
  %v278 = vld [vmem:[%s3 + $0x2d4] sm:$0xf]
  %v279 = vld [vmem:[%s3 + $0x2d8] sm:$0xf]
  %v280 = vld [vmem:[%s3 + $0x2dc] sm:$0xf]
  %v281 = vld [vmem:[%s3 + $0x2e0] sm:$0xf]
  %v282 = vld [vmem:[%s3 + $0x2e4] sm:$0xf]
  %v283 = vld [vmem:[%s3 + $0x2e8] sm:$0xf]
  %v284 = vld [vmem:[%s3 + $0x2ec] sm:$0xf]
  %v285 = vld [vmem:[%s3 + $0x2f0] sm:$0xf]
  %v286 = vld [vmem:[%s3 + $0x2f4] sm:$0xf]
  %v287 = vld [vmem:[%s3 + $0x2f8] sm:$0xf]
  %v288 = vld [vmem:[%s3 + $0x2fc] sm:$0xf]
  %v289 = vld [vmem:[%s3 + $0x300] sm:$0xf]
  %v290 = vld [vmem:[%s3 + $0x304] sm:$0xf]
  %v291 = vld [vmem:[%s3 + $0x308] sm:$0xf]
  %v292 = vld [vmem:[%s3 + $0x30c] sm:$0xf]
  %v293 = vld [vmem:[%s3 + $0x310] sm:$0xf]
  %v294 = vld [vmem:[%s3 + $0x314] sm:$0xf]
  %v295 = vld [vmem:[%s3 + $0x318] sm:$0xf]
  %v296 = vld [vmem:[%s3 + $0x31c] sm:$0xf]
  %v297 = vld [vmem:[%s3 + $0x320] sm:$0xf]
  %v298 = vld [vmem:[%s3 + $0x324] sm:$0xf]
  %v299 = vld [vmem:[%s3 + $0x328] sm:$0xf]
  %v300 = vld [vmem:[%s3 + $0x32c] sm:$0xf]
  %v301 = vld [vmem:[%s3 + $0x330] sm:$0xf]
  %v302 = vld [vmem:[%s3 + $0x334] sm:$0xf]
  %v303 = vld [vmem:[%s3 + $0x338] sm:$0xf]
  %v304 = vld [vmem:[%s3 + $0x33c] sm:$0xf]
  %v305 = vld [vmem:[%s3 + $0x340] sm:$0xf]
  %v306 = vld [vmem:[%s3 + $0x344] sm:$0xf]
  %v307 = vld [vmem:[%s3 + $0x348] sm:$0xf]
  %v308 = vld [vmem:[%s3 + $0x34c] sm:$0xf]
  %v309 = vld [vmem:[%s3 + $0x350] sm:$0xf]
  %v310 = vld [vmem:[%s3 + $0x354] sm:$0xf]
  %v311 = vld [vmem:[%s3 + $0x358] sm:$0xf]
  %v312 = vld [vmem:[%s3 + $0x35c] sm:$0xf]
  %v313 = vld [vmem:[%s3 + $0x360] sm:$0xf]
  %v314 = vld [vmem:[%s3 + $0x364] sm:$0xf]
  %v315 = vld [vmem:[%s3 + $0x368] sm:$0xf]
  %v316 = vld [vmem:[%s3 + $0x36c] sm:$0xf]
  %v317 = vld [vmem:[%s3 + $0x370] sm:$0xf]
  %v318 = vld [vmem:[%s3 + $0x374] sm:$0xf]
  %v319 = vld [vmem:[%s3 + $0x378] sm:$0xf]
  %v320 = vld [vmem:[%s3 + $0x37c] sm:$0xf]
  %v321 = vld [vmem:[%s3 + $0x380] sm:$0xf]
  %v322 = vld [vmem:[%s3 + $0x384] sm:$0xf]
  %v323 = vld [vmem:[%s3 + $0x388] sm:$0xf]
  %v324 = vld [vmem:[%s3 + $0x38c] sm:$0xf]
  %v325 = vld [vmem:[%s3 + $0x390] sm:$0xf]
  %v326 = vld [vmem:[%s3 + $0x394] sm:$0xf]
  %v327 = vld [vmem:[%s3 + $0x398] sm:$0xf]
  %v328 = vld [vmem:[%s3 + $0x39c] sm:$0xf]
  %v329 = vld [vmem:[%s3 + $0x3a0] sm:$0xf]
  %v330 = vld [vmem:[%s3 + $0x3a4] sm:$0xf]
  %v331 = vld [vmem:[%s3 + $0x3a8] sm:$0xf]
  %v332 = vld [vmem:[%s3 + $0x3ac] sm:$0xf]
  %v333 = vld [vmem:[%s3 + $0x3b0] sm:$0xf]
  %v334 = vld [vmem:[%s3 + $0x3b4] sm:$0xf]
  %v335 = vld [vmem:[%s3 + $0x3b8] sm:$0xf]
  %v336 = vld [vmem:[%s3 + $0x3bc] sm:$0xf]
  %v337 = vld [vmem:[%s3 + $0x3c0] sm:$0xf]
  %v338 = vld [vmem:[%s3 + $0x3c4] sm:$0xf]
  %v339 = vld [vmem:[%s3 + $0x3c8] sm:$0xf]
  %v340 = vld [vmem:[%s3 + $0x3cc] sm:$0xf]
  %v341 = vld [vmem:[%s3 + $0x3d0] sm:$0xf]
  %v342 = vld [vmem:[%s3 + $0x3d4] sm:$0xf]
  %v343 = vld [vmem:[%s3 + $0x3d8] sm:$0xf]
  %v344 = vld [vmem:[%s3 + $0x3dc] sm:$0xf]
  %v345 = vld [vmem:[%s3 + $0x3e0] sm:$0xf]
  %v346 = vld [vmem:[%s3 + $0x3e4] sm:$0xf]
  %v347 = vld [vmem:[%s3 + $0x3e8] sm:$0xf]
  %v348 = vld [vmem:[%s3 + $0x3ec] sm:$0xf]
  %v349 = vld [vmem:[%s3 + $0x3f0] sm:$0xf]
  %v350 = vld [vmem:[%s3 + $0x3f4] sm:$0xf]
  %v351 = vld [vmem:[%s3 + $0x3f8] sm:$0xf]
  %v352 = vld [vmem:[%s3 + $0x3fc] sm:$0xf]
  %v353 = vld [vmem:[%s3 + $0x400] sm:$0xf]
  %v354 = vld [vmem:[%s3 + $0x404] sm:$0xf]
  %v355 = vld [vmem:[%s3 + $0x408] sm:$0xf]
  %v356 = vld [vmem:[%s3 + $0x40c] sm:$0xf]
  %v357 = vld [vmem:[%s3 + $0x410] sm:$0xf]
  %v358 = vld [vmem:[%s3 + $0x414] sm:$0xf]
  %v359 = vld [vmem:[%s3 + $0x418] sm:$0xf]
  %v360 = vld [vmem:[%s3 + $0x41c] sm:$0xf]
  %v361 = vld [vmem:[%s3 + $0x420] sm:$0xf]
  %v362 = vld [vmem:[%s3 + $0x424] sm:$0xf]
  %v363 = vld [vmem:[%s3 + $0x428] sm:$0xf]
  %v364 = vld [vmem:[%s3 + $0x42c] sm:$0xf]
  %v365 = vld [vmem:[%s3 + $0x430] sm:$0xf]
  %v366 = vld [vmem:[%s3 + $0x434] sm:$0xf]
  %v367 = vld [vmem:[%s3 + $0x438] sm:$0xf]
  %v368 = vld [vmem:[%s3 + $0x43c] sm:$0xf]
  %v369 = vld [vmem:[%s3 + $0x440] sm:$0xf]
  %v370 = vld [vmem:[%s3 + $0x444] sm:$0xf]
  %v371 = vld [vmem:[%s3 + $0x448] sm:$0xf]
  %v372 = vld [vmem:[%s3 + $0x44c] sm:$0xf]
  %v373 = vld [vmem:[%s3 + $0x450] sm:$0xf]
  %v374 = vld [vmem:[%s3 + $0x454] sm:$0xf]
  %v375 = vld [vmem:[%s3 + $0x458] sm:$0xf]
  %v376 = vld [vmem:[%s3 + $0x45c] sm:$0xf]
  %v377 = vld [vmem:[%s3 + $0x460] sm:$0xf]
  %v378 = vld [vmem:[%s3 + $0x464] sm:$0xf]
  %v379 = vld [vmem:[%s3 + $0x468] sm:$0xf]
  %v380 = vld [vmem:[%s3 + $0x46c] sm:$0xf]
  %v381 = vld [vmem:[%s3 + $0x470] sm:$0xf]
  %v382 = vld [vmem:[%s3 + $0x474] sm:$0xf]
  %v383 = vld [vmem:[%s3 + $0x478] sm:$0xf]
  %v384 = vld [vmem:[%s3 + $0x47c] sm:$0xf]
  %v385 = vld [vmem:[%s3 + $0x480] sm:$0xf]
  %v386 = vld [vmem:[%s3 + $0x484] sm:$0xf]
  %v387 = vld [vmem:[%s3 + $0x488] sm:$0xf]
  %v388 = vld [vmem:[%s3 + $0x48c] sm:$0xf]
  %v389 = vld [vmem:[%s3 + $0x490] sm:$0xf]
  %v390 = vld [vmem:[%s3 + $0x494] sm:$0xf]
  %v391 = vld [vmem:[%s3 + $0x498] sm:$0xf]
  %v392 = vld [vmem:[%s3 + $0x49c] sm:$0xf]
  %v393 = vld [vmem:[%s3 + $0x4a0] sm:$0xf]
  %v394 = vld [vmem:[%s3 + $0x4a4] sm:$0xf]
  %v395 = vld [vmem:[%s3 + $0x4a8] sm:$0xf]
  %v396 = vld [vmem:[%s3 + $0x4ac] sm:$0xf]
  %v397 = vld [vmem:[%s3 + $0x4b0] sm:$0xf]
  %v398 = vld [vmem:[%s3 + $0x4b4] sm:$0xf]
  %v399 = vld [vmem:[%s3 + $0x4b8] sm:$0xf]
  %v400 = vld [vmem:[%s3 + $0x4bc] sm:$0xf]
  %v401 = vld [vmem:[%s3 + $0x4c0] sm:$0xf]
  %v402 = vld [vmem:[%s3 + $0x4c4] sm:$0xf]
  %v403 = vld [vmem:[%s3 + $0x4c8] sm:$0xf]
  %v404 = vld [vmem:[%s3 + $0x4cc] sm:$0xf]
  %v405 = vld [vmem:[%s3 + $0x4d0] sm:$0xf]
  %v406 = vld [vmem:[%s3 + $0x4d4] sm:$0xf]
  %v407 = vld [vmem:[%s3 + $0x4d8] sm:$0xf]
  %v408 = vld [vmem:[%s3 + $0x4dc] sm:$0xf]
  %v409 = vld [vmem:[%s3 + $0x4e0] sm:$0xf]
  %v410 = vld [vmem:[%s3 + $0x4e4] sm:$0xf]
  %v411 = vld [vmem:[%s3 + $0x4e8] sm:$0xf]
  %v412 = vld [vmem:[%s3 + $0x4ec] sm:$0xf]
  %v413 = vld [vmem:[%s3 + $0x4f0] sm:$0xf]
  %v414 = vld [vmem:[%s3 + $0x4f4] sm:$0xf]
  %v415 = vld [vmem:[%s3 + $0x4f8] sm:$0xf]
  %v416 = vld [vmem:[%s3 + $0x4fc] sm:$0xf]
  %v417 = vld [vmem:[%s3 + $0x500] sm:$0xf]
  %v418 = vld [vmem:[%s3 + $0x504] sm:$0xf]
  %v419 = vld [vmem:[%s3 + $0x508] sm:$0xf]
  %v420 = vld [vmem:[%s3 + $0x50c] sm:$0xf]
  %v421 = vld [vmem:[%s3 + $0x510] sm:$0xf]
  %v422 = vld [vmem:[%s3 + $0x514] sm:$0xf]
  %v423 = vld [vmem:[%s3 + $0x518] sm:$0xf]
  %v424 = vld [vmem:[%s3 + $0x51c] sm:$0xf]
  %v425 = vld [vmem:[%s3 + $0x520] sm:$0xf]
  %v426 = vld [vmem:[%s3 + $0x524] sm:$0xf]
  %v427 = vld [vmem:[%s3 + $0x528] sm:$0xf]
  %v428 = vld [vmem:[%s3 + $0x52c] sm:$0xf]
  %v429 = vld [vmem:[%s3 + $0x530] sm:$0xf]
  %v430 = vld [vmem:[%s3 + $0x534] sm:$0xf]
  %v431 = vld [vmem:[%s3 + $0x538] sm:$0xf]
  %v432 = vld [vmem:[%s3 + $0x53c] sm:$0xf]
  %v433 = vld [vmem:[%s3 + $0x540] sm:$0xf]
  %v434 = vld [vmem:[%s3 + $0x544] sm:$0xf]
  %v435 = vld [vmem:[%s3 + $0x548] sm:$0xf]
  %v436 = vld [vmem:[%s3 + $0x54c] sm:$0xf]
  %v437 = vld [vmem:[%s3 + $0x550] sm:$0xf]
  %v438 = vld [vmem:[%s3 + $0x554] sm:$0xf]
  %v439 = vld [vmem:[%s3 + $0x558] sm:$0xf]
  %v440 = vld [vmem:[%s3 + $0x55c] sm:$0xf]
  %v441 = vld [vmem:[%s3 + $0x560] sm:$0xf]
  %v442 = vld [vmem:[%s3 + $0x564] sm:$0xf]
  %v443 = vld [vmem:[%s3 + $0x568] sm:$0xf]
  %v444 = vld [vmem:[%s3 + $0x56c] sm:$0xf]
  %v445 = vld [vmem:[%s3 + $0x570] sm:$0xf]
  %v446 = vld [vmem:[%s3 + $0x574] sm:$0xf]
  %v447 = vld [vmem:[%s3 + $0x578] sm:$0xf]
  %v448 = vld [vmem:[%s3 + $0x57c] sm:$0xf]
  %v449 = vld [vmem:[%s3 + $0x580] sm:$0xf]
  %v450 = vld [vmem:[%s3 + $0x584] sm:$0xf]
  %v451 = vld [vmem:[%s3 + $0x588] sm:$0xf]
  %v452 = vld [vmem:[%s3 + $0x58c] sm:$0xf]
  %v453 = vld [vmem:[%s3 + $0x590] sm:$0xf]
  %v454 = vld [vmem:[%s3 + $0x594] sm:$0xf]
  %v455 = vld [vmem:[%s3 + $0x598] sm:$0xf]
  %v456 = vld [vmem:[%s3 + $0x59c] sm:$0xf]
  %v457 = vld [vmem:[%s3 + $0x5a0] sm:$0xf]
  %v458 = vld [vmem:[%s3 + $0x5a4] sm:$0xf]
  %v459 = vld [vmem:[%s3 + $0x5a8] sm:$0xf]
  %v460 = vld [vmem:[%s3 + $0x5ac] sm:$0xf]
  %v461 = vld [vmem:[%s3 + $0x5b0] sm:$0xf]
  %v462 = vld [vmem:[%s3 + $0x5b4] sm:$0xf]
  %v463 = vld [vmem:[%s3 + $0x5b8] sm:$0xf]
  %v464 = vld [vmem:[%s3 + $0x5bc] sm:$0xf]
  %v465 = vld [vmem:[%s3 + $0x5c0] sm:$0xf]
  %v466 = vld [vmem:[%s3 + $0x5c4] sm:$0xf]
  %v467 = vld [vmem:[%s3 + $0x5c8] sm:$0xf]
  %v468 = vld [vmem:[%s3 + $0x5cc] sm:$0xf]
  %v469 = vld [vmem:[%s3 + $0x5d0] sm:$0xf]
  %v470 = vld [vmem:[%s3 + $0x5d4] sm:$0xf]
  %v471 = vld [vmem:[%s3 + $0x5d8] sm:$0xf]
  %v472 = vld [vmem:[%s3 + $0x5dc] sm:$0xf]
  %v473 = vld [vmem:[%s3 + $0x5e0] sm:$0xf]
  %v474 = vld [vmem:[%s3 + $0x5e4] sm:$0xf]
  %v475 = vld [vmem:[%s3 + $0x5e8] sm:$0xf]
  %v476 = vld [vmem:[%s3 + $0x5ec] sm:$0xf]
  %v477 = vld [vmem:[%s3 + $0x5f0] sm:$0xf]
  %v478 = vld [vmem:[%s3 + $0x5f4] sm:$0xf]
  %v479 = vld [vmem:[%s3 + $0x5f8] sm:$0xf]
  %v480 = vld [vmem:[%s3 + $0x5fc] sm:$0xf]
  %v481 = vld [vmem:[%s4] sm:$0xff]
  %v482 = vld [vmem:[%s4 + $0x8] sm:$0x3]
  %vm483 = vcmask 80896
  %v485 = vsel %vm483, %v48, 0
  %vm487 = vcmask 1041408
  %v489 = vsel %vm487, %v482, 0
  %491 = vmatprep.subr.mxu0 0.0
  %492 = vmatpush1.msra.mxu0 %v481
  %493 = vmatprep.subr.mxu0 0.0
  %494 = vmatpush1.msra.mxu0 %v489
  %495 = vmatprep.subr.mxu0 0.0
  %496 = vmatpush1.msra.mxu0 0.0
  %497 = vmatprep.subr.mxu0 0.0
  %498 = vmatpush1.msra.mxu0 0.0
  %499 = vmatprep.subr.mxu0 0.0
  %500 = vmatpush1.msra.mxu0 0.0
  %501 = vmatprep.subr.mxu0 0.0
  %502 = vmatpush1.msra.mxu0 0.0
  %503 = vmatprep.subr.mxu0 0.0
  %504 = vmatpush1.msra.mxu0 0.0
  %505 = vmatprep.subr.mxu0 0.0
  %506 = vmatpush1.msra.mxu0 0.0
  %507 = vmatprep.subr.mxu0 0.0
  %508 = vmatpush1.msra.mxu0 0.0
  %509 = vmatprep.subr.mxu0 0.0
  %510 = vmatpush1.msra.mxu0 0.0
  %511 = vmatprep.subr.mxu0 0.0
  %512 = vmatpush1.msra.mxu0 0.0
  %513 = vmatprep.subr.mxu0 0.0
  %514 = vmatpush1.msra.mxu0 0.0
  %515 = vmatprep.subr.mxu0 0.0
  %516 = vmatpush1.msra.mxu0 0.0
  %517 = vmatprep.subr.mxu0 0.0
  %518 = vmatpush1.msra.mxu0 0.0
  %519 = vmatprep.subr.mxu0 0.0
  %520 = vmatpush1.msra.mxu0 0.0
  %521 = vmatprep.subr.mxu0 0.0
  %522 = vmatpush1.msra.mxu0 0.0
  %523 = vmatprep.subr.mxu0 0.0
  %524 = vmatpush1.msra.mxu0 0.0
  %525 = vmatprep.subr.mxu0 0.0
  %526 = vmatpush1.msra.mxu0 0.0
  %527 = vmatprep.subr.mxu0 0.0
  %528 = vmatpush1.msra.mxu0 0.0
  %529 = vmatprep.subr.mxu0 0.0
  %530 = vmatpush1.msra.mxu0 0.0
  %531 = vmatprep.subr.mxu0 0.0
  %532 = vmatpush1.msra.mxu0 0.0
  %533 = vmatprep.subr.mxu0 0.0
  %534 = vmatpush1.msra.mxu0 0.0
  %535 = vmatprep.subr.mxu0 0.0
  %536 = vmatpush1.msra.mxu0 0.0
  %537 = vmatprep.subr.mxu0 0.0
  %538 = vmatpush1.msra.mxu0 0.0
  %539 = vmatprep.subr.mxu0 0.0
  %540 = vmatpush1.msra.mxu0 0.0
  %541 = vmatprep.subr.mxu0 0.0
  %542 = vmatpush1.msra.mxu0 0.0
  %543 = vmatprep.subr.mxu0 0.0
  %544 = vmatpush1.msra.mxu0 0.0
  %545 = vmatprep.subr.mxu0 0.0
  %546 = vmatpush1.msra.mxu0 0.0
  %547 = vmatprep.subr.mxu0 0.0
  %548 = vmatpush1.msra.mxu0 0.0
  %549 = vmatprep.subr.mxu0 0.0
  %550 = vmatpush1.msra.mxu0 0.0
  %551 = vmatprep.subr.mxu0 0.0
  %552 = vmatpush1.msra.mxu0 0.0
  %553 = vmatprep.subr.mxu0 0.0
  %554 = vmatpush1.msra.mxu0 0.0
  %555 = vmatprep.mubr.f32.mxu0 0.0
  %556 = vmatmul.mubr.f32.gmra.mrb[0].mxu0 %v485
  %v557 = vpop.f32.mrb[0].mxu0
  %v558 = vadd.f32 0.0, %v557
  %v559 = vpop.f32.mrb[0].mxu0
  %560 = vdwg.mxu0
  %v945 = vunpack.c.l.b16 %v97
  %v946 = vunpack.c.l.b16 %v98
  %v947 = vunpack.c.l.b16 %v99
  %v948 = vunpack.c.l.b16 %v100
  %v949 = vunpack.c.l.b16 %v101
  %v950 = vunpack.c.l.b16 %v102
  %v951 = vunpack.c.l.b16 %v103
  %v952 = vunpack.c.l.b16 %v104
  %v953 = vunpack.c.l.b16 %v105
  %v954 = vunpack.c.l.b16 %v106
  %v955 = vunpack.c.l.b16 %v107
  %v956 = vunpack.c.l.b16 %v108
  %v957 = vunpack.c.l.b16 %v109
  %v958 = vunpack.c.l.b16 %v110
  %v959 = vunpack.c.l.b16 %v111
  %v960 = vunpack.c.l.b16 %v112
  %v961 = vunpack.c.l.b16 %v113
  %v962 = vunpack.c.l.b16 %v114
  %v963 = vunpack.c.l.b16 %v115
  %v964 = vunpack.c.l.b16 %v116
  %v965 = vunpack.c.l.b16 %v117
  %v966 = vunpack.c.l.b16 %v118
  %v967 = vunpack.c.l.b16 %v119
  %v968 = vunpack.c.l.b16 %v120
  %v969 = vunpack.c.l.b16 %v121
  %v970 = vunpack.c.l.b16 %v122
  %v971 = vunpack.c.l.b16 %v123
  %v972 = vunpack.c.l.b16 %v124
  %v973 = vunpack.c.l.b16 %v125
  %v974 = vunpack.c.l.b16 %v126
  %v975 = vunpack.c.l.b16 %v127
  %v976 = vunpack.c.l.b16 %v128
  %v977 = vunpack.c.l.b16 %v129
  %v978 = vunpack.c.l.b16 %v130
  %v979 = vunpack.c.l.b16 %v131
  %v980 = vunpack.c.l.b16 %v132
  %v981 = vunpack.c.l.b16 %v133
  %v982 = vunpack.c.l.b16 %v134
  %v983 = vunpack.c.l.b16 %v135
  %v984 = vunpack.c.l.b16 %v136
  %v985 = vunpack.c.l.b16 %v137
  %v986 = vunpack.c.l.b16 %v138
  %v987 = vunpack.c.l.b16 %v139
  %v988 = vunpack.c.l.b16 %v140
  %v989 = vunpack.c.l.b16 %v141
  %v990 = vunpack.c.l.b16 %v142
  %v991 = vunpack.c.l.b16 %v143
  %v992 = vunpack.c.l.b16 %v144
  %v993 = vunpack.c.l.b16 %v145
  %v994 = vunpack.c.l.b16 %v146
  %v995 = vunpack.c.l.b16 %v147
  %v996 = vunpack.c.l.b16 %v148
  %v997 = vunpack.c.l.b16 %v149
  %v998 = vunpack.c.l.b16 %v150
  %v999 = vunpack.c.l.b16 %v151
  %v1000 = vunpack.c.l.b16 %v152
  %v1001 = vunpack.c.l.b16 %v153
  %v1002 = vunpack.c.l.b16 %v154
  %v1003 = vunpack.c.l.b16 %v155
  %v1004 = vunpack.c.l.b16 %v156
  %v1005 = vunpack.c.l.b16 %v157
  %v1006 = vunpack.c.l.b16 %v158
  %v1007 = vunpack.c.l.b16 %v159
  %v1008 = vunpack.c.l.b16 %v160
  %v1009 = vunpack.c.l.b16 %v161
  %v1010 = vunpack.c.l.b16 %v162
  %v1011 = vunpack.c.l.b16 %v163
  %v1012 = vunpack.c.l.b16 %v164
  %v1013 = vunpack.c.l.b16 %v165
  %v1014 = vunpack.c.l.b16 %v166
  %v1015 = vunpack.c.l.b16 %v167
  %v1016 = vunpack.c.l.b16 %v168
  %v1017 = vunpack.c.l.b16 %v169
  %v1018 = vunpack.c.l.b16 %v170
  %v1019 = vunpack.c.l.b16 %v171
  %v1020 = vunpack.c.l.b16 %v172
  %v1021 = vunpack.c.l.b16 %v173
  %v1022 = vunpack.c.l.b16 %v174
  %v1023 = vunpack.c.l.b16 %v175
  %v1024 = vunpack.c.l.b16 %v176
  %v1025 = vunpack.c.l.b16 %v177
  %v1026 = vunpack.c.l.b16 %v178
  %v1027 = vunpack.c.l.b16 %v179
  %v1028 = vunpack.c.l.b16 %v180
  %v1029 = vunpack.c.l.b16 %v181
  %v1030 = vunpack.c.l.b16 %v182
  %v1031 = vunpack.c.l.b16 %v183
  %v1032 = vunpack.c.l.b16 %v184
  %v1033 = vunpack.c.l.b16 %v185
  %v1034 = vunpack.c.l.b16 %v186
  %v1035 = vunpack.c.l.b16 %v187
  %v1036 = vunpack.c.l.b16 %v188
  %v1037 = vunpack.c.l.b16 %v189
  %v1038 = vunpack.c.l.b16 %v190
  %v1039 = vunpack.c.l.b16 %v191
  %v1040 = vunpack.c.l.b16 %v192
  %v1041 = vunpack.c.l.b16 %v193
  %v1042 = vunpack.c.l.b16 %v194
  %v1043 = vunpack.c.l.b16 %v195
  %v1044 = vunpack.c.l.b16 %v196
  %v1045 = vunpack.c.l.b16 %v197
  %v1046 = vunpack.c.l.b16 %v198
  %v1047 = vunpack.c.l.b16 %v199
  %v1048 = vunpack.c.l.b16 %v200
  %v1049 = vunpack.c.l.b16 %v201
  %v1050 = vunpack.c.l.b16 %v202
  %v1051 = vunpack.c.l.b16 %v203
  %v1052 = vunpack.c.l.b16 %v204
  %v1053 = vunpack.c.l.b16 %v205
  %v1054 = vunpack.c.l.b16 %v206
  %v1055 = vunpack.c.l.b16 %v207
  %v1056 = vunpack.c.l.b16 %v208
  %v1057 = vunpack.c.l.b16 %v209
  %v1058 = vunpack.c.l.b16 %v210
  %v1059 = vunpack.c.l.b16 %v211
  %v1060 = vunpack.c.l.b16 %v212
  %v1061 = vunpack.c.l.b16 %v213
  %v1062 = vunpack.c.l.b16 %v214
  %v1063 = vunpack.c.l.b16 %v215
  %v1064 = vunpack.c.l.b16 %v216
  %v1065 = vunpack.c.l.b16 %v217
  %v1066 = vunpack.c.l.b16 %v218
  %v1067 = vunpack.c.l.b16 %v219
  %v1068 = vunpack.c.l.b16 %v220
  %v1069 = vunpack.c.l.b16 %v221
  %v1070 = vunpack.c.l.b16 %v222
  %v1071 = vunpack.c.l.b16 %v223
  %v1072 = vunpack.c.l.b16 %v224
  %v1073 = vunpack.c.l.b16 %v225
  %v1074 = vunpack.c.l.b16 %v226
  %v1075 = vunpack.c.l.b16 %v227
  %v1076 = vunpack.c.l.b16 %v228
  %v1077 = vunpack.c.l.b16 %v229
  %v1078 = vunpack.c.l.b16 %v230
  %v1079 = vunpack.c.l.b16 %v231
  %v1080 = vunpack.c.l.b16 %v232
  %v1081 = vunpack.c.l.b16 %v233
  %v1082 = vunpack.c.l.b16 %v234
  %v1083 = vunpack.c.l.b16 %v235
  %v1084 = vunpack.c.l.b16 %v236
  %v1085 = vunpack.c.l.b16 %v237
  %v1086 = vunpack.c.l.b16 %v238
  %v1087 = vunpack.c.l.b16 %v239
  %v1088 = vunpack.c.l.b16 %v240
  %v1089 = vunpack.c.l.b16 %v241
  %v1090 = vunpack.c.l.b16 %v242
  %v1091 = vunpack.c.l.b16 %v243
  %v1092 = vunpack.c.l.b16 %v244
  %v1093 = vunpack.c.l.b16 %v245
  %v1094 = vunpack.c.l.b16 %v246
  %v1095 = vunpack.c.l.b16 %v247
  %v1096 = vunpack.c.l.b16 %v248
  %v1097 = vunpack.c.l.b16 %v249
  %v1098 = vunpack.c.l.b16 %v250
  %v1099 = vunpack.c.l.b16 %v251
  %v1100 = vunpack.c.l.b16 %v252
  %v1101 = vunpack.c.l.b16 %v253
  %v1102 = vunpack.c.l.b16 %v254
  %v1103 = vunpack.c.l.b16 %v255
  %v1104 = vunpack.c.l.b16 %v256
  %v1105 = vunpack.c.l.b16 %v257
  %v1106 = vunpack.c.l.b16 %v258
  %v1107 = vunpack.c.l.b16 %v259
  %v1108 = vunpack.c.l.b16 %v260
  %v1109 = vunpack.c.l.b16 %v261
  %v1110 = vunpack.c.l.b16 %v262
  %v1111 = vunpack.c.l.b16 %v263
  %v1112 = vunpack.c.l.b16 %v264
  %v1113 = vunpack.c.l.b16 %v265
  %v1114 = vunpack.c.l.b16 %v266
  %v1115 = vunpack.c.l.b16 %v267
  %v1116 = vunpack.c.l.b16 %v268
  %v1117 = vunpack.c.l.b16 %v269
  %v1118 = vunpack.c.l.b16 %v270
  %v1119 = vunpack.c.l.b16 %v271
  %v1120 = vunpack.c.l.b16 %v272
  %v1121 = vunpack.c.l.b16 %v273
  %v1122 = vunpack.c.l.b16 %v274
  %v1123 = vunpack.c.l.b16 %v275
  %v1124 = vunpack.c.l.b16 %v276
  %v1125 = vunpack.c.l.b16 %v277
  %v1126 = vunpack.c.l.b16 %v278
  %v1127 = vunpack.c.l.b16 %v279
  %v1128 = vunpack.c.l.b16 %v280
  %v1129 = vunpack.c.l.b16 %v281
  %v1130 = vunpack.c.l.b16 %v282
  %v1131 = vunpack.c.l.b16 %v283
  %v1132 = vunpack.c.l.b16 %v284
  %v1133 = vunpack.c.l.b16 %v285
  %v1134 = vunpack.c.l.b16 %v286
  %v1135 = vunpack.c.l.b16 %v287
  %v1136 = vunpack.c.l.b16 %v288
  %v1137 = vunpack.c.l.b16 %v289
  %v1138 = vunpack.c.l.b16 %v290
  %v1139 = vunpack.c.l.b16 %v291
  %v1140 = vunpack.c.l.b16 %v292
  %v1141 = vunpack.c.l.b16 %v293
  %v1142 = vunpack.c.l.b16 %v294
  %v1143 = vunpack.c.l.b16 %v295
  %v1144 = vunpack.c.l.b16 %v296
  %v1145 = vunpack.c.l.b16 %v297
  %v1146 = vunpack.c.l.b16 %v298
  %v1147 = vunpack.c.l.b16 %v299
  %v1148 = vunpack.c.l.b16 %v300
  %v1149 = vunpack.c.l.b16 %v301
  %v1150 = vunpack.c.l.b16 %v302
  %v1151 = vunpack.c.l.b16 %v303
  %v1152 = vunpack.c.l.b16 %v304
  %v1153 = vunpack.c.l.b16 %v305
  %v1154 = vunpack.c.l.b16 %v306
  %v1155 = vunpack.c.l.b16 %v307
  %v1156 = vunpack.c.l.b16 %v308
  %v1157 = vunpack.c.l.b16 %v309
  %v1158 = vunpack.c.l.b16 %v310
  %v1159 = vunpack.c.l.b16 %v311
  %v1160 = vunpack.c.l.b16 %v312
  %v1161 = vunpack.c.l.b16 %v313
  %v1162 = vunpack.c.l.b16 %v314
  %v1163 = vunpack.c.l.b16 %v315
  %v1164 = vunpack.c.l.b16 %v316
  %v1165 = vunpack.c.l.b16 %v317
  %v1166 = vunpack.c.l.b16 %v318
  %v1167 = vunpack.c.l.b16 %v319
  %v1168 = vunpack.c.l.b16 %v320
  %v1169 = vunpack.c.l.b16 %v321
  %v1170 = vunpack.c.l.b16 %v322
  %v1171 = vunpack.c.l.b16 %v323
  %v1172 = vunpack.c.l.b16 %v324
  %v1173 = vunpack.c.l.b16 %v325
  %v1174 = vunpack.c.l.b16 %v326
  %v1175 = vunpack.c.l.b16 %v327
  %v1176 = vunpack.c.l.b16 %v328
  %v1177 = vunpack.c.l.b16 %v329
  %v1178 = vunpack.c.l.b16 %v330
  %v1179 = vunpack.c.l.b16 %v331
  %v1180 = vunpack.c.l.b16 %v332
  %v1181 = vunpack.c.l.b16 %v333
  %v1182 = vunpack.c.l.b16 %v334
  %v1183 = vunpack.c.l.b16 %v335
  %v1184 = vunpack.c.l.b16 %v336
  %v1185 = vunpack.c.l.b16 %v337
  %v1186 = vunpack.c.l.b16 %v338
  %v1187 = vunpack.c.l.b16 %v339
  %v1188 = vunpack.c.l.b16 %v340
  %v1189 = vunpack.c.l.b16 %v341
  %v1190 = vunpack.c.l.b16 %v342
  %v1191 = vunpack.c.l.b16 %v343
  %v1192 = vunpack.c.l.b16 %v344
  %v1193 = vunpack.c.l.b16 %v345
  %v1194 = vunpack.c.l.b16 %v346
  %v1195 = vunpack.c.l.b16 %v347
  %v1196 = vunpack.c.l.b16 %v348
  %v1197 = vunpack.c.l.b16 %v349
  %v1198 = vunpack.c.l.b16 %v350
  %v1199 = vunpack.c.l.b16 %v351
  %v1200 = vunpack.c.l.b16 %v352
  %v1201 = vunpack.c.l.b16 %v353
  %v1202 = vunpack.c.l.b16 %v354
  %v1203 = vunpack.c.l.b16 %v355
  %v1204 = vunpack.c.l.b16 %v356
  %v1205 = vunpack.c.l.b16 %v357
  %v1206 = vunpack.c.l.b16 %v358
  %v1207 = vunpack.c.l.b16 %v359
  %v1208 = vunpack.c.l.b16 %v360
  %v1209 = vunpack.c.l.b16 %v361
  %v1210 = vunpack.c.l.b16 %v362
  %v1211 = vunpack.c.l.b16 %v363
  %v1212 = vunpack.c.l.b16 %v364
  %v1213 = vunpack.c.l.b16 %v365
  %v1214 = vunpack.c.l.b16 %v366
  %v1215 = vunpack.c.l.b16 %v367
  %v1216 = vunpack.c.l.b16 %v368
  %v1217 = vunpack.c.l.b16 %v369
  %v1218 = vunpack.c.l.b16 %v370
  %v1219 = vunpack.c.l.b16 %v371
  %v1220 = vunpack.c.l.b16 %v372
  %v1221 = vunpack.c.l.b16 %v373
  %v1222 = vunpack.c.l.b16 %v374
  %v1223 = vunpack.c.l.b16 %v375
  %v1224 = vunpack.c.l.b16 %v376
  %v1225 = vunpack.c.l.b16 %v377
  %v1226 = vunpack.c.l.b16 %v378
  %v1227 = vunpack.c.l.b16 %v379
  %v1228 = vunpack.c.l.b16 %v380
  %v1229 = vunpack.c.l.b16 %v381
  %v1230 = vunpack.c.l.b16 %v382
  %v1231 = vunpack.c.l.b16 %v383
  %v1232 = vunpack.c.l.b16 %v384
  %v1233 = vunpack.c.l.b16 %v385
  %v1234 = vunpack.c.l.b16 %v386
  %v1235 = vunpack.c.l.b16 %v387
  %v1236 = vunpack.c.l.b16 %v388
  %v1237 = vunpack.c.l.b16 %v389
  %v1238 = vunpack.c.l.b16 %v390
  %v1239 = vunpack.c.l.b16 %v391
  %v1240 = vunpack.c.l.b16 %v392
  %v1241 = vunpack.c.l.b16 %v393
  %v1242 = vunpack.c.l.b16 %v394
  %v1243 = vunpack.c.l.b16 %v395
  %v1244 = vunpack.c.l.b16 %v396
  %v1245 = vunpack.c.l.b16 %v397
  %v1246 = vunpack.c.l.b16 %v398
  %v1247 = vunpack.c.l.b16 %v399
  %v1248 = vunpack.c.l.b16 %v400
  %v1249 = vunpack.c.l.b16 %v401
  %v1250 = vunpack.c.l.b16 %v402
  %v1251 = vunpack.c.l.b16 %v403
  %v1252 = vunpack.c.l.b16 %v404
  %v1253 = vunpack.c.l.b16 %v405
  %v1254 = vunpack.c.l.b16 %v406
  %v1255 = vunpack.c.l.b16 %v407
  %v1256 = vunpack.c.l.b16 %v408
  %v1257 = vunpack.c.l.b16 %v409
  %v1258 = vunpack.c.l.b16 %v410
  %v1259 = vunpack.c.l.b16 %v411
  %v1260 = vunpack.c.l.b16 %v412
  %v1261 = vunpack.c.l.b16 %v413
  %v1262 = vunpack.c.l.b16 %v414
  %v1263 = vunpack.c.l.b16 %v415
  %v1264 = vunpack.c.l.b16 %v416
  %v1265 = vunpack.c.l.b16 %v417
  %v1266 = vunpack.c.l.b16 %v418
  %v1267 = vunpack.c.l.b16 %v419
  %v1268 = vunpack.c.l.b16 %v420
  %v1269 = vunpack.c.l.b16 %v421
  %v1270 = vunpack.c.l.b16 %v422
  %v1271 = vunpack.c.l.b16 %v423
  %v1272 = vunpack.c.l.b16 %v424
  %v1273 = vunpack.c.l.b16 %v425
  %v1274 = vunpack.c.l.b16 %v426
  %v1275 = vunpack.c.l.b16 %v427
  %v1276 = vunpack.c.l.b16 %v428
  %v1277 = vunpack.c.l.b16 %v429
  %v1278 = vunpack.c.l.b16 %v430
  %v1279 = vunpack.c.l.b16 %v431
  %v1280 = vunpack.c.l.b16 %v432
  %v1281 = vunpack.c.l.b16 %v433
  %v1282 = vunpack.c.l.b16 %v434
  %v1283 = vunpack.c.l.b16 %v435
  %v1284 = vunpack.c.l.b16 %v436
  %v1285 = vunpack.c.l.b16 %v437
  %v1286 = vunpack.c.l.b16 %v438
  %v1287 = vunpack.c.l.b16 %v439
  %v1288 = vunpack.c.l.b16 %v440
  %v1289 = vunpack.c.l.b16 %v441
  %v1290 = vunpack.c.l.b16 %v442
  %v1291 = vunpack.c.l.b16 %v443
  %v1292 = vunpack.c.l.b16 %v444
  %v1293 = vunpack.c.l.b16 %v445
  %v1294 = vunpack.c.l.b16 %v446
  %v1295 = vunpack.c.l.b16 %v447
  %v1296 = vunpack.c.l.b16 %v448
  %v1297 = vunpack.c.l.b16 %v449
  %v1298 = vunpack.c.l.b16 %v450
  %v1299 = vunpack.c.l.b16 %v451
  %v1300 = vunpack.c.l.b16 %v452
  %v1301 = vunpack.c.l.b16 %v453
  %v1302 = vunpack.c.l.b16 %v454
  %v1303 = vunpack.c.l.b16 %v455
  %v1304 = vunpack.c.l.b16 %v456
  %v1305 = vunpack.c.l.b16 %v457
  %v1306 = vunpack.c.l.b16 %v458
  %v1307 = vunpack.c.l.b16 %v459
  %v1308 = vunpack.c.l.b16 %v460
  %v1309 = vunpack.c.l.b16 %v461
  %v1310 = vunpack.c.l.b16 %v462
  %v1311 = vunpack.c.l.b16 %v463
  %v1312 = vunpack.c.l.b16 %v464
  %v1313 = vunpack.c.l.b16 %v465
  %v1314 = vunpack.c.l.b16 %v466
  %v1315 = vunpack.c.l.b16 %v467
  %v1316 = vunpack.c.l.b16 %v468
  %v1317 = vunpack.c.l.b16 %v469
  %v1318 = vunpack.c.l.b16 %v470
  %v1319 = vunpack.c.l.b16 %v471
  %v1320 = vunpack.c.l.b16 %v472
  %v1321 = vunpack.c.l.b16 %v473
  %v1322 = vunpack.c.l.b16 %v474
  %v1323 = vunpack.c.l.b16 %v475
  %v1324 = vunpack.c.l.b16 %v476
  %v1325 = vunpack.c.l.b16 %v477
  %v1326 = vunpack.c.l.b16 %v478
  %v1327 = vunpack.c.l.b16 %v479
  %v1328 = vunpack.c.l.b16 %v480
  %v1329 = vpack.c.b16 %v946, %v945
  %v1330 = vpack.c.b16 %v948, %v947
  %v1331 = vpack.c.b16 %v950, %v949
  %v1332 = vpack.c.b16 %v952, %v951
  %v1333 = vpack.c.b16 %v954, %v953
  %v1334 = vpack.c.b16 %v956, %v955
  %v1335 = vpack.c.b16 %v958, %v957
  %v1336 = vpack.c.b16 %v960, %v959
  %v1337 = vpack.c.b16 %v962, %v961
  %v1338 = vpack.c.b16 %v964, %v963
  %v1339 = vpack.c.b16 %v966, %v965
  %v1340 = vpack.c.b16 %v968, %v967
  %v1341 = vpack.c.b16 %v970, %v969
  %v1342 = vpack.c.b16 %v972, %v971
  %v1343 = vpack.c.b16 %v974, %v973
  %v1344 = vpack.c.b16 %v976, %v975
  %v1345 = vpack.c.b16 %v978, %v977
  %v1346 = vpack.c.b16 %v980, %v979
  %v1347 = vpack.c.b16 %v982, %v981
  %v1348 = vpack.c.b16 %v984, %v983
  %v1349 = vpack.c.b16 %v986, %v985
  %v1350 = vpack.c.b16 %v988, %v987
  %v1351 = vpack.c.b16 %v990, %v989
  %v1352 = vpack.c.b16 %v992, %v991
  %v1353 = vpack.c.b16 %v994, %v993
  %v1354 = vpack.c.b16 %v996, %v995
  %v1355 = vpack.c.b16 %v998, %v997
  %v1356 = vpack.c.b16 %v1000, %v999
  %v1357 = vpack.c.b16 %v1002, %v1001
  %v1358 = vpack.c.b16 %v1004, %v1003
  %v1359 = vpack.c.b16 %v1006, %v1005
  %v1360 = vpack.c.b16 %v1008, %v1007
  %v1361 = vpack.c.b16 %v1010, %v1009
  %v1362 = vpack.c.b16 %v1012, %v1011
  %v1363 = vpack.c.b16 %v1014, %v1013
  %v1364 = vpack.c.b16 %v1016, %v1015
  %v1365 = vpack.c.b16 %v1018, %v1017
  %v1366 = vpack.c.b16 %v1020, %v1019
  %v1367 = vpack.c.b16 %v1022, %v1021
  %v1368 = vpack.c.b16 %v1024, %v1023
  %v1369 = vpack.c.b16 %v1026, %v1025
  %v1370 = vpack.c.b16 %v1028, %v1027
  %v1371 = vpack.c.b16 %v1030, %v1029
  %v1372 = vpack.c.b16 %v1032, %v1031
  %v1373 = vpack.c.b16 %v1034, %v1033
  %v1374 = vpack.c.b16 %v1036, %v1035
  %v1375 = vpack.c.b16 %v1038, %v1037
  %v1376 = vpack.c.b16 %v1040, %v1039
  %v1377 = vpack.c.b16 %v1042, %v1041
  %v1378 = vpack.c.b16 %v1044, %v1043
  %v1379 = vpack.c.b16 %v1046, %v1045
  %v1380 = vpack.c.b16 %v1048, %v1047
  %v1381 = vpack.c.b16 %v1050, %v1049
  %v1382 = vpack.c.b16 %v1052, %v1051
  %v1383 = vpack.c.b16 %v1054, %v1053
  %v1384 = vpack.c.b16 %v1056, %v1055
  %v1385 = vpack.c.b16 %v1058, %v1057
  %v1386 = vpack.c.b16 %v1060, %v1059
  %v1387 = vpack.c.b16 %v1062, %v1061
  %v1388 = vpack.c.b16 %v1064, %v1063
  %v1389 = vpack.c.b16 %v1066, %v1065
  %v1390 = vpack.c.b16 %v1068, %v1067
  %v1391 = vpack.c.b16 %v1070, %v1069
  %v1392 = vpack.c.b16 %v1072, %v1071
  %v1393 = vpack.c.b16 %v1074, %v1073
  %v1394 = vpack.c.b16 %v1076, %v1075
  %v1395 = vpack.c.b16 %v1078, %v1077
  %v1396 = vpack.c.b16 %v1080, %v1079
  %v1397 = vpack.c.b16 %v1082, %v1081
  %v1398 = vpack.c.b16 %v1084, %v1083
  %v1399 = vpack.c.b16 %v1086, %v1085
  %v1400 = vpack.c.b16 %v1088, %v1087
  %v1401 = vpack.c.b16 %v1090, %v1089
  %v1402 = vpack.c.b16 %v1092, %v1091
  %v1403 = vpack.c.b16 %v1094, %v1093
  %v1404 = vpack.c.b16 %v1096, %v1095
  %v1405 = vpack.c.b16 %v1098, %v1097
  %v1406 = vpack.c.b16 %v1100, %v1099
  %v1407 = vpack.c.b16 %v1102, %v1101
  %v1408 = vpack.c.b16 %v1104, %v1103
  %v1409 = vpack.c.b16 %v1106, %v1105
  %v1410 = vpack.c.b16 %v1108, %v1107
  %v1411 = vpack.c.b16 %v1110, %v1109
  %v1412 = vpack.c.b16 %v1112, %v1111
  %v1413 = vpack.c.b16 %v1114, %v1113
  %v1414 = vpack.c.b16 %v1116, %v1115
  %v1415 = vpack.c.b16 %v1118, %v1117
  %v1416 = vpack.c.b16 %v1120, %v1119
  %v1417 = vpack.c.b16 %v1122, %v1121
  %v1418 = vpack.c.b16 %v1124, %v1123
  %v1419 = vpack.c.b16 %v1126, %v1125
  %v1420 = vpack.c.b16 %v1128, %v1127
  %v1421 = vpack.c.b16 %v1130, %v1129
  %v1422 = vpack.c.b16 %v1132, %v1131
  %v1423 = vpack.c.b16 %v1134, %v1133
  %v1424 = vpack.c.b16 %v1136, %v1135
  %v1425 = vpack.c.b16 %v1138, %v1137
  %v1426 = vpack.c.b16 %v1140, %v1139
  %v1427 = vpack.c.b16 %v1142, %v1141
  %v1428 = vpack.c.b16 %v1144, %v1143
  %v1429 = vpack.c.b16 %v1146, %v1145
  %v1430 = vpack.c.b16 %v1148, %v1147
  %v1431 = vpack.c.b16 %v1150, %v1149
  %v1432 = vpack.c.b16 %v1152, %v1151
  %v1433 = vpack.c.b16 %v1154, %v1153
  %v1434 = vpack.c.b16 %v1156, %v1155
  %v1435 = vpack.c.b16 %v1158, %v1157
  %v1436 = vpack.c.b16 %v1160, %v1159
  %v1437 = vpack.c.b16 %v1162, %v1161
  %v1438 = vpack.c.b16 %v1164, %v1163
  %v1439 = vpack.c.b16 %v1166, %v1165
  %v1440 = vpack.c.b16 %v1168, %v1167
  %v1441 = vpack.c.b16 %v1170, %v1169
  %v1442 = vpack.c.b16 %v1172, %v1171
  %v1443 = vpack.c.b16 %v1174, %v1173
  %v1444 = vpack.c.b16 %v1176, %v1175
  %v1445 = vpack.c.b16 %v1178, %v1177
  %v1446 = vpack.c.b16 %v1180, %v1179
  %v1447 = vpack.c.b16 %v1182, %v1181
  %v1448 = vpack.c.b16 %v1184, %v1183
  %v1449 = vpack.c.b16 %v1186, %v1185
  %v1450 = vpack.c.b16 %v1188, %v1187
  %v1451 = vpack.c.b16 %v1190, %v1189
  %v1452 = vpack.c.b16 %v1192, %v1191
  %v1453 = vpack.c.b16 %v1194, %v1193
  %v1454 = vpack.c.b16 %v1196, %v1195
  %v1455 = vpack.c.b16 %v1198, %v1197
  %v1456 = vpack.c.b16 %v1200, %v1199
  %v1457 = vpack.c.b16 %v1202, %v1201
  %v1458 = vpack.c.b16 %v1204, %v1203
  %v1459 = vpack.c.b16 %v1206, %v1205
  %v1460 = vpack.c.b16 %v1208, %v1207
  %v1461 = vpack.c.b16 %v1210, %v1209
  %v1462 = vpack.c.b16 %v1212, %v1211
  %v1463 = vpack.c.b16 %v1214, %v1213
  %v1464 = vpack.c.b16 %v1216, %v1215
  %v1465 = vpack.c.b16 %v1218, %v1217
  %v1466 = vpack.c.b16 %v1220, %v1219
  %v1467 = vpack.c.b16 %v1222, %v1221
  %v1468 = vpack.c.b16 %v1224, %v1223
  %v1469 = vpack.c.b16 %v1226, %v1225
  %v1470 = vpack.c.b16 %v1228, %v1227
  %v1471 = vpack.c.b16 %v1230, %v1229
  %v1472 = vpack.c.b16 %v1232, %v1231
  %v1473 = vpack.c.b16 %v1234, %v1233
  %v1474 = vpack.c.b16 %v1236, %v1235
  %v1475 = vpack.c.b16 %v1238, %v1237
  %v1476 = vpack.c.b16 %v1240, %v1239
  %v1477 = vpack.c.b16 %v1242, %v1241
  %v1478 = vpack.c.b16 %v1244, %v1243
  %v1479 = vpack.c.b16 %v1246, %v1245
  %v1480 = vpack.c.b16 %v1248, %v1247
  %v1481 = vpack.c.b16 %v1250, %v1249
  %v1482 = vpack.c.b16 %v1252, %v1251
  %v1483 = vpack.c.b16 %v1254, %v1253
  %v1484 = vpack.c.b16 %v1256, %v1255
  %v1485 = vpack.c.b16 %v1258, %v1257
  %v1486 = vpack.c.b16 %v1260, %v1259
  %v1487 = vpack.c.b16 %v1262, %v1261
  %v1488 = vpack.c.b16 %v1264, %v1263
  %v1489 = vpack.c.b16 %v1266, %v1265
  %v1490 = vpack.c.b16 %v1268, %v1267
  %v1491 = vpack.c.b16 %v1270, %v1269
  %v1492 = vpack.c.b16 %v1272, %v1271
  %v1493 = vpack.c.b16 %v1274, %v1273
  %v1494 = vpack.c.b16 %v1276, %v1275
  %v1495 = vpack.c.b16 %v1278, %v1277
  %v1496 = vpack.c.b16 %v1280, %v1279
  %v1497 = vpack.c.b16 %v1282, %v1281
  %v1498 = vpack.c.b16 %v1284, %v1283
  %v1499 = vpack.c.b16 %v1286, %v1285
  %v1500 = vpack.c.b16 %v1288, %v1287
  %v1501 = vpack.c.b16 %v1290, %v1289
  %v1502 = vpack.c.b16 %v1292, %v1291
  %v1503 = vpack.c.b16 %v1294, %v1293
  %v1504 = vpack.c.b16 %v1296, %v1295
  %v1505 = vpack.c.b16 %v1298, %v1297
  %v1506 = vpack.c.b16 %v1300, %v1299
  %v1507 = vpack.c.b16 %v1302, %v1301
  %v1508 = vpack.c.b16 %v1304, %v1303
  %v1509 = vpack.c.b16 %v1306, %v1305
  %v1510 = vpack.c.b16 %v1308, %v1307
  %v1511 = vpack.c.b16 %v1310, %v1309
  %v1512 = vpack.c.b16 %v1312, %v1311
  %v1513 = vpack.c.b16 %v1314, %v1313
  %v1514 = vpack.c.b16 %v1316, %v1315
  %v1515 = vpack.c.b16 %v1318, %v1317
  %v1516 = vpack.c.b16 %v1320, %v1319
  %v1517 = vpack.c.b16 %v1322, %v1321
  %v1518 = vpack.c.b16 %v1324, %v1323
  %v1519 = vpack.c.b16 %v1326, %v1325
  %v1520 = vpack.c.b16 %v1328, %v1327
  %1713 = vmatprep.subr.bf16.mxu0 0
  %1714 = vmatpush1.bf16.msra.mxu0 %v1329
  %1715 = vmatprep.subr.bf16.mxu0 0
  %1716 = vmatpush1.bf16.msra.mxu0 %v1330
  %1717 = vmatprep.subr.bf16.mxu0 0
  %1718 = vmatpush1.bf16.msra.mxu0 %v1331
  %1719 = vmatprep.subr.bf16.mxu0 0
  %1720 = vmatpush1.bf16.msra.mxu0 %v1332
  %1721 = vmatprep.subr.bf16.mxu0 0
  %1722 = vmatpush1.bf16.msra.mxu0 %v1333
  %1723 = vmatprep.subr.bf16.mxu0 0
  %1724 = vmatpush1.bf16.msra.mxu0 %v1334
  %1725 = vmatprep.subr.bf16.mxu0 0
  %1726 = vmatpush1.bf16.msra.mxu0 %v1335
  %1727 = vmatprep.subr.bf16.mxu0 0
  %1728 = vmatpush1.bf16.msra.mxu0 %v1336
  %1729 = vmatprep.subr.bf16.mxu0 0
  %1730 = vmatpush1.bf16.msra.mxu0 %v1337
  %1731 = vmatprep.subr.bf16.mxu0 0
  %1732 = vmatpush1.bf16.msra.mxu0 %v1338
  %1733 = vmatprep.subr.bf16.mxu0 0
  %1734 = vmatpush1.bf16.msra.mxu0 %v1339
  %1735 = vmatprep.subr.bf16.mxu0 0
  %1736 = vmatpush1.bf16.msra.mxu0 %v1340
  %1737 = vmatprep.subr.bf16.mxu0 0
  %1738 = vmatpush1.bf16.msra.mxu0 %v1341
  %1739 = vmatprep.subr.bf16.mxu0 0
  %1740 = vmatpush1.bf16.msra.mxu0 %v1342
  %1741 = vmatprep.subr.bf16.mxu0 0
  %1742 = vmatpush1.bf16.msra.mxu0 %v1343
  %1743 = vmatprep.subr.bf16.mxu0 0
  %1744 = vmatpush1.bf16.msra.mxu0 %v1344
  %1745 = vmatprep.mubr.bf16.mxu0 %v74
  %1746 = vmatmul.mubr.bf16.gmra.mrb[0].mxu0 %v73
  %v1747 = vpop.f32.mrb[0].mxu0
  %v1748 = vadd.f32 %v558, %v1747
  %v1749 = vpop.f32.mrb[0].mxu0
  %v1750 = vpop.f32.mrb[0].mxu0
  %v1751 = vpop.f32.mrb[0].mxu0
  %1752 = vdwg.mxu0
  %1753 = vmatprep.subr.bf16.mxu0 0
  %1754 = vmatpush1.bf16.msra.mxu0 %v1345
  %1755 = vmatprep.subr.bf16.mxu0 0
  %1756 = vmatpush1.bf16.msra.mxu0 %v1346
  %1757 = vmatprep.subr.bf16.mxu0 0
  %1758 = vmatpush1.bf16.msra.mxu0 %v1347
  %1759 = vmatprep.subr.bf16.mxu0 0
  %1760 = vmatpush1.bf16.msra.mxu0 %v1348
  %1761 = vmatprep.subr.bf16.mxu0 0
  %1762 = vmatpush1.bf16.msra.mxu0 %v1349
  %1763 = vmatprep.subr.bf16.mxu0 0
  %1764 = vmatpush1.bf16.msra.mxu0 %v1350
  %1765 = vmatprep.subr.bf16.mxu0 0
  %1766 = vmatpush1.bf16.msra.mxu0 %v1351
  %1767 = vmatprep.subr.bf16.mxu0 0
  %1768 = vmatpush1.bf16.msra.mxu0 %v1352
  %1769 = vmatprep.subr.bf16.mxu0 0
  %1770 = vmatpush1.bf16.msra.mxu0 %v1353
  %1771 = vmatprep.subr.bf16.mxu0 0
  %1772 = vmatpush1.bf16.msra.mxu0 %v1354
  %1773 = vmatprep.subr.bf16.mxu0 0
  %1774 = vmatpush1.bf16.msra.mxu0 %v1355
  %1775 = vmatprep.subr.bf16.mxu0 0
  %1776 = vmatpush1.bf16.msra.mxu0 %v1356
  %1777 = vmatprep.subr.bf16.mxu0 0
  %1778 = vmatpush1.bf16.msra.mxu0 %v1357
  %1779 = vmatprep.subr.bf16.mxu0 0
  %1780 = vmatpush1.bf16.msra.mxu0 %v1358
  %1781 = vmatprep.subr.bf16.mxu0 0
  %1782 = vmatpush1.bf16.msra.mxu0 %v1359
  %1783 = vmatprep.subr.bf16.mxu0 0
  %1784 = vmatpush1.bf16.msra.mxu0 %v1360
  %1785 = vmatprep.mubr.bf16.mxu0 %v76
  %1786 = vmatmul.mubr.bf16.gmra.mrb[0].mxu0 %v75
  %v1787 = vpop.f32.mrb[0].mxu0
  %v1788 = vadd.f32 %v1748, %v1787
  %v1789 = vpop.f32.mrb[0].mxu0
  %v1790 = vpop.f32.mrb[0].mxu0
  %v1791 = vpop.f32.mrb[0].mxu0
  %1792 = vdwg.mxu0
  %1793 = vmatprep.subr.bf16.mxu0 0
  %1794 = vmatpush1.bf16.msra.mxu0 %v1361
  %1795 = vmatprep.subr.bf16.mxu0 0
  %1796 = vmatpush1.bf16.msra.mxu0 %v1362
  %1797 = vmatprep.subr.bf16.mxu0 0
  %1798 = vmatpush1.bf16.msra.mxu0 %v1363
  %1799 = vmatprep.subr.bf16.mxu0 0
  %1800 = vmatpush1.bf16.msra.mxu0 %v1364
  %1801 = vmatprep.subr.bf16.mxu0 0
  %1802 = vmatpush1.bf16.msra.mxu0 %v1365
  %1803 = vmatprep.subr.bf16.mxu0 0
  %1804 = vmatpush1.bf16.msra.mxu0 %v1366
  %1805 = vmatprep.subr.bf16.mxu0 0
  %1806 = vmatpush1.bf16.msra.mxu0 %v1367
  %1807 = vmatprep.subr.bf16.mxu0 0
  %1808 = vmatpush1.bf16.msra.mxu0 %v1368
  %1809 = vmatprep.subr.bf16.mxu0 0
  %1810 = vmatpush1.bf16.msra.mxu0 %v1369
  %1811 = vmatprep.subr.bf16.mxu0 0
  %1812 = vmatpush1.bf16.msra.mxu0 %v1370
  %1813 = vmatprep.subr.bf16.mxu0 0
  %1814 = vmatpush1.bf16.msra.mxu0 %v1371
  %1815 = vmatprep.subr.bf16.mxu0 0
  %1816 = vmatpush1.bf16.msra.mxu0 %v1372
  %1817 = vmatprep.subr.bf16.mxu0 0
  %1818 = vmatpush1.bf16.msra.mxu0 %v1373
  %1819 = vmatprep.subr.bf16.mxu0 0
  %1820 = vmatpush1.bf16.msra.mxu0 %v1374
  %1821 = vmatprep.subr.bf16.mxu0 0
  %1822 = vmatpush1.bf16.msra.mxu0 %v1375
  %1823 = vmatprep.subr.bf16.mxu0 0
  %1824 = vmatpush1.bf16.msra.mxu0 %v1376
  %1825 = vmatprep.mubr.bf16.mxu0 %v78
  %1826 = vmatmul.mubr.bf16.gmra.mrb[0].mxu0 %v77
  %v1827 = vpop.f32.mrb[0].mxu0
  %v1828 = vadd.f32 %v1788, %v1827
  %v1829 = vpop.f32.mrb[0].mxu0
  %v1830 = vpop.f32.mrb[0].mxu0
  %v1831 = vpop.f32.mrb[0].mxu0
  %1832 = vdwg.mxu0
  %1833 = vmatprep.subr.bf16.mxu0 0
  %1834 = vmatpush1.bf16.msra.mxu0 %v1377
  %1835 = vmatprep.subr.bf16.mxu0 0
  %1836 = vmatpush1.bf16.msra.mxu0 %v1378
  %1837 = vmatprep.subr.bf16.mxu0 0
  %1838 = vmatpush1.bf16.msra.mxu0 %v1379
  %1839 = vmatprep.subr.bf16.mxu0 0
  %1840 = vmatpush1.bf16.msra.mxu0 %v1380
  %1841 = vmatprep.subr.bf16.mxu0 0
  %1842 = vmatpush1.bf16.msra.mxu0 %v1381
  %1843 = vmatprep.subr.bf16.mxu0 0
  %1844 = vmatpush1.bf16.msra.mxu0 %v1382
  %1845 = vmatprep.subr.bf16.mxu0 0
  %1846 = vmatpush1.bf16.msra.mxu0 %v1383
  %1847 = vmatprep.subr.bf16.mxu0 0
  %1848 = vmatpush1.bf16.msra.mxu0 %v1384
  %1849 = vmatprep.subr.bf16.mxu0 0
  %1850 = vmatpush1.bf16.msra.mxu0 %v1385
  %1851 = vmatprep.subr.bf16.mxu0 0
  %1852 = vmatpush1.bf16.msra.mxu0 %v1386
  %1853 = vmatprep.subr.bf16.mxu0 0
  %1854 = vmatpush1.bf16.msra.mxu0 %v1387
  %1855 = vmatprep.subr.bf16.mxu0 0
  %1856 = vmatpush1.bf16.msra.mxu0 %v1388
  %1857 = vmatprep.subr.bf16.mxu0 0
  %1858 = vmatpush1.bf16.msra.mxu0 %v1389
  %1859 = vmatprep.subr.bf16.mxu0 0
  %1860 = vmatpush1.bf16.msra.mxu0 %v1390
  %1861 = vmatprep.subr.bf16.mxu0 0
  %1862 = vmatpush1.bf16.msra.mxu0 %v1391
  %1863 = vmatprep.subr.bf16.mxu0 0
  %1864 = vmatpush1.bf16.msra.mxu0 %v1392
  %1865 = vmatprep.mubr.bf16.mxu0 %v80
  %1866 = vmatmul.mubr.bf16.gmra.mrb[0].mxu0 %v79
  %v1867 = vpop.f32.mrb[0].mxu0
  %v1868 = vadd.f32 %v1828, %v1867
  %v1869 = vpop.f32.mrb[0].mxu0
  %v1870 = vpop.f32.mrb[0].mxu0
  %v1871 = vpop.f32.mrb[0].mxu0
  %1872 = vdwg.mxu0
  %1873 = vmatprep.subr.bf16.mxu0 0
  %1874 = vmatpush1.bf16.msra.mxu0 %v1393
  %1875 = vmatprep.subr.bf16.mxu0 0
  %1876 = vmatpush1.bf16.msra.mxu0 %v1394
  %1877 = vmatprep.subr.bf16.mxu0 0
  %1878 = vmatpush1.bf16.msra.mxu0 %v1395
  %1879 = vmatprep.subr.bf16.mxu0 0
  %1880 = vmatpush1.bf16.msra.mxu0 %v1396
  %1881 = vmatprep.subr.bf16.mxu0 0
  %1882 = vmatpush1.bf16.msra.mxu0 %v1397
  %1883 = vmatprep.subr.bf16.mxu0 0
  %1884 = vmatpush1.bf16.msra.mxu0 %v1398
  %1885 = vmatprep.subr.bf16.mxu0 0
  %1886 = vmatpush1.bf16.msra.mxu0 %v1399
  %1887 = vmatprep.subr.bf16.mxu0 0
  %1888 = vmatpush1.bf16.msra.mxu0 %v1400
  %1889 = vmatprep.subr.bf16.mxu0 0
  %1890 = vmatpush1.bf16.msra.mxu0 %v1401
  %1891 = vmatprep.subr.bf16.mxu0 0
  %1892 = vmatpush1.bf16.msra.mxu0 %v1402
  %1893 = vmatprep.subr.bf16.mxu0 0
  %1894 = vmatpush1.bf16.msra.mxu0 %v1403
  %1895 = vmatprep.subr.bf16.mxu0 0
  %1896 = vmatpush1.bf16.msra.mxu0 %v1404
  %1897 = vmatprep.subr.bf16.mxu0 0
  %1898 = vmatpush1.bf16.msra.mxu0 %v1405
  %1899 = vmatprep.subr.bf16.mxu0 0
  %1900 = vmatpush1.bf16.msra.mxu0 %v1406
  %1901 = vmatprep.subr.bf16.mxu0 0
  %1902 = vmatpush1.bf16.msra.mxu0 %v1407
  %1903 = vmatprep.subr.bf16.mxu0 0
  %1904 = vmatpush1.bf16.msra.mxu0 %v1408
  %1905 = vmatprep.mubr.bf16.mxu0 %v82
  %1906 = vmatmul.mubr.bf16.gmra.mrb[0].mxu0 %v81
  %v1907 = vpop.f32.mrb[0].mxu0
  %v1908 = vadd.f32 %v1868, %v1907
  %v1909 = vpop.f32.mrb[0].mxu0
  %v1910 = vpop.f32.mrb[0].mxu0
  %v1911 = vpop.f32.mrb[0].mxu0
  %1912 = vdwg.mxu0
  %1913 = vmatprep.subr.bf16.mxu0 0
  %1914 = vmatpush1.bf16.msra.mxu0 %v1409
  %1915 = vmatprep.subr.bf16.mxu0 0
  %1916 = vmatpush1.bf16.msra.mxu0 %v1410
  %1917 = vmatprep.subr.bf16.mxu0 0
  %1918 = vmatpush1.bf16.msra.mxu0 %v1411
  %1919 = vmatprep.subr.bf16.mxu0 0
  %1920 = vmatpush1.bf16.msra.mxu0 %v1412
  %1921 = vmatprep.subr.bf16.mxu0 0
  %1922 = vmatpush1.bf16.msra.mxu0 %v1413
  %1923 = vmatprep.subr.bf16.mxu0 0
  %1924 = vmatpush1.bf16.msra.mxu0 %v1414
  %1925 = vmatprep.subr.bf16.mxu0 0
  %1926 = vmatpush1.bf16.msra.mxu0 %v1415
  %1927 = vmatprep.subr.bf16.mxu0 0
  %1928 = vmatpush1.bf16.msra.mxu0 %v1416
  %1929 = vmatprep.subr.bf16.mxu0 0
  %1930 = vmatpush1.bf16.msra.mxu0 %v1417
  %1931 = vmatprep.subr.bf16.mxu0 0
  %1932 = vmatpush1.bf16.msra.mxu0 %v1418
  %1933 = vmatprep.subr.bf16.mxu0 0
  %1934 = vmatpush1.bf16.msra.mxu0 %v1419
  %1935 = vmatprep.subr.bf16.mxu0 0
  %1936 = vmatpush1.bf16.msra.mxu0 %v1420
  %1937 = vmatprep.subr.bf16.mxu0 0
  %1938 = vmatpush1.bf16.msra.mxu0 %v1421
  %1939 = vmatprep.subr.bf16.mxu0 0
  %1940 = vmatpush1.bf16.msra.mxu0 %v1422
  %1941 = vmatprep.subr.bf16.mxu0 0
  %1942 = vmatpush1.bf16.msra.mxu0 %v1423
  %1943 = vmatprep.subr.bf16.mxu0 0
  %1944 = vmatpush1.bf16.msra.mxu0 %v1424
  %1945 = vmatprep.mubr.bf16.mxu0 %v84
  %1946 = vmatmul.mubr.bf16.gmra.mrb[0].mxu0 %v83
  %v1947 = vpop.f32.mrb[0].mxu0
  %v1948 = vadd.f32 %v1908, %v1947
  %v1949 = vpop.f32.mrb[0].mxu0
  %v1950 = vpop.f32.mrb[0].mxu0
  %v1951 = vpop.f32.mrb[0].mxu0
  %1952 = vdwg.mxu0
  %1953 = vmatprep.subr.bf16.mxu0 0
  %1954 = vmatpush1.bf16.msra.mxu0 %v1425
  %1955 = vmatprep.subr.bf16.mxu0 0
  %1956 = vmatpush1.bf16.msra.mxu0 %v1426
  %1957 = vmatprep.subr.bf16.mxu0 0
  %1958 = vmatpush1.bf16.msra.mxu0 %v1427
  %1959 = vmatprep.subr.bf16.mxu0 0
  %1960 = vmatpush1.bf16.msra.mxu0 %v1428
  %1961 = vmatprep.subr.bf16.mxu0 0
  %1962 = vmatpush1.bf16.msra.mxu0 %v1429
  %1963 = vmatprep.subr.bf16.mxu0 0
  %1964 = vmatpush1.bf16.msra.mxu0 %v1430
  %1965 = vmatprep.subr.bf16.mxu0 0
  %1966 = vmatpush1.bf16.msra.mxu0 %v1431
  %1967 = vmatprep.subr.bf16.mxu0 0
  %1968 = vmatpush1.bf16.msra.mxu0 %v1432
  %1969 = vmatprep.subr.bf16.mxu0 0
  %1970 = vmatpush1.bf16.msra.mxu0 %v1433
  %1971 = vmatprep.subr.bf16.mxu0 0
  %1972 = vmatpush1.bf16.msra.mxu0 %v1434
  %1973 = vmatprep.subr.bf16.mxu0 0
  %1974 = vmatpush1.bf16.msra.mxu0 %v1435
  %1975 = vmatprep.subr.bf16.mxu0 0
  %1976 = vmatpush1.bf16.msra.mxu0 %v1436
  %1977 = vmatprep.subr.bf16.mxu0 0
  %1978 = vmatpush1.bf16.msra.mxu0 %v1437
  %1979 = vmatprep.subr.bf16.mxu0 0
  %1980 = vmatpush1.bf16.msra.mxu0 %v1438
  %1981 = vmatprep.subr.bf16.mxu0 0
  %1982 = vmatpush1.bf16.msra.mxu0 %v1439
  %1983 = vmatprep.subr.bf16.mxu0 0
  %1984 = vmatpush1.bf16.msra.mxu0 %v1440
  %1985 = vmatprep.mubr.bf16.mxu0 %v86
  %1986 = vmatmul.mubr.bf16.gmra.mrb[0].mxu0 %v85
  %v1987 = vpop.f32.mrb[0].mxu0
  %v1988 = vadd.f32 %v1948, %v1987
  %v1989 = vpop.f32.mrb[0].mxu0
  %v1990 = vpop.f32.mrb[0].mxu0
  %v1991 = vpop.f32.mrb[0].mxu0
  %1992 = vdwg.mxu0
  %1993 = vmatprep.subr.bf16.mxu0 0
  %1994 = vmatpush1.bf16.msra.mxu0 %v1441
  %1995 = vmatprep.subr.bf16.mxu0 0
  %1996 = vmatpush1.bf16.msra.mxu0 %v1442
  %1997 = vmatprep.subr.bf16.mxu0 0
  %1998 = vmatpush1.bf16.msra.mxu0 %v1443
  %1999 = vmatprep.subr.bf16.mxu0 0
  %2000 = vmatpush1.bf16.msra.mxu0 %v1444
  %2001 = vmatprep.subr.bf16.mxu0 0
  %2002 = vmatpush1.bf16.msra.mxu0 %v1445
  %2003 = vmatprep.subr.bf16.mxu0 0
  %2004 = vmatpush1.bf16.msra.mxu0 %v1446
  %2005 = vmatprep.subr.bf16.mxu0 0
  %2006 = vmatpush1.bf16.msra.mxu0 %v1447
  %2007 = vmatprep.subr.bf16.mxu0 0
  %2008 = vmatpush1.bf16.msra.mxu0 %v1448
  %2009 = vmatprep.subr.bf16.mxu0 0
  %2010 = vmatpush1.bf16.msra.mxu0 %v1449
  %2011 = vmatprep.subr.bf16.mxu0 0
  %2012 = vmatpush1.bf16.msra.mxu0 %v1450
  %2013 = vmatprep.subr.bf16.mxu0 0
  %2014 = vmatpush1.bf16.msra.mxu0 %v1451
  %2015 = vmatprep.subr.bf16.mxu0 0
  %2016 = vmatpush1.bf16.msra.mxu0 %v1452
  %2017 = vmatprep.subr.bf16.mxu0 0
  %2018 = vmatpush1.bf16.msra.mxu0 %v1453
  %2019 = vmatprep.subr.bf16.mxu0 0
  %2020 = vmatpush1.bf16.msra.mxu0 %v1454
  %2021 = vmatprep.subr.bf16.mxu0 0
  %2022 = vmatpush1.bf16.msra.mxu0 %v1455
  %2023 = vmatprep.subr.bf16.mxu0 0
  %2024 = vmatpush1.bf16.msra.mxu0 %v1456
  %2025 = vmatprep.mubr.bf16.mxu0 %v88
  %2026 = vmatmul.mubr.bf16.gmra.mrb[0].mxu0 %v87
  %v2027 = vpop.f32.mrb[0].mxu0
  %v2028 = vadd.f32 %v1988, %v2027
  %v2029 = vpop.f32.mrb[0].mxu0
  %v2030 = vpop.f32.mrb[0].mxu0
  %v2031 = vpop.f32.mrb[0].mxu0
  %2032 = vdwg.mxu0
  %2033 = vmatprep.subr.bf16.mxu0 0
  %2034 = vmatpush1.bf16.msra.mxu0 %v1457
  %2035 = vmatprep.subr.bf16.mxu0 0
  %2036 = vmatpush1.bf16.msra.mxu0 %v1458
  %2037 = vmatprep.subr.bf16.mxu0 0
  %2038 = vmatpush1.bf16.msra.mxu0 %v1459
  %2039 = vmatprep.subr.bf16.mxu0 0
  %2040 = vmatpush1.bf16.msra.mxu0 %v1460
  %2041 = vmatprep.subr.bf16.mxu0 0
  %2042 = vmatpush1.bf16.msra.mxu0 %v1461
  %2043 = vmatprep.subr.bf16.mxu0 0
  %2044 = vmatpush1.bf16.msra.mxu0 %v1462
  %2045 = vmatprep.subr.bf16.mxu0 0
  %2046 = vmatpush1.bf16.msra.mxu0 %v1463
  %2047 = vmatprep.subr.bf16.mxu0 0
  %2048 = vmatpush1.bf16.msra.mxu0 %v1464
  %2049 = vmatprep.subr.bf16.mxu0 0
  %2050 = vmatpush1.bf16.msra.mxu0 %v1465
  %2051 = vmatprep.subr.bf16.mxu0 0
  %2052 = vmatpush1.bf16.msra.mxu0 %v1466
  %2053 = vmatprep.subr.bf16.mxu0 0
  %2054 = vmatpush1.bf16.msra.mxu0 %v1467
  %2055 = vmatprep.subr.bf16.mxu0 0
  %2056 = vmatpush1.bf16.msra.mxu0 %v1468
  %2057 = vmatprep.subr.bf16.mxu0 0
  %2058 = vmatpush1.bf16.msra.mxu0 %v1469
  %2059 = vmatprep.subr.bf16.mxu0 0
  %2060 = vmatpush1.bf16.msra.mxu0 %v1470
  %2061 = vmatprep.subr.bf16.mxu0 0
  %2062 = vmatpush1.bf16.msra.mxu0 %v1471
  %2063 = vmatprep.subr.bf16.mxu0 0
  %2064 = vmatpush1.bf16.msra.mxu0 %v1472
  %2065 = vmatprep.mubr.bf16.mxu0 %v90
  %2066 = vmatmul.mubr.bf16.gmra.mrb[0].mxu0 %v89
  %v2067 = vpop.f32.mrb[0].mxu0
  %v2068 = vadd.f32 %v2028, %v2067
  %v2069 = vpop.f32.mrb[0].mxu0
  %v2070 = vpop.f32.mrb[0].mxu0
  %v2071 = vpop.f32.mrb[0].mxu0
  %2072 = vdwg.mxu0
  %2073 = vmatprep.subr.bf16.mxu0 0
  %2074 = vmatpush1.bf16.msra.mxu0 %v1473
  %2075 = vmatprep.subr.bf16.mxu0 0
  %2076 = vmatpush1.bf16.msra.mxu0 %v1474
  %2077 = vmatprep.subr.bf16.mxu0 0
  %2078 = vmatpush1.bf16.msra.mxu0 %v1475
  %2079 = vmatprep.subr.bf16.mxu0 0
  %2080 = vmatpush1.bf16.msra.mxu0 %v1476
  %2081 = vmatprep.subr.bf16.mxu0 0
  %2082 = vmatpush1.bf16.msra.mxu0 %v1477
  %2083 = vmatprep.subr.bf16.mxu0 0
  %2084 = vmatpush1.bf16.msra.mxu0 %v1478
  %2085 = vmatprep.subr.bf16.mxu0 0
  %2086 = vmatpush1.bf16.msra.mxu0 %v1479
  %2087 = vmatprep.subr.bf16.mxu0 0
  %2088 = vmatpush1.bf16.msra.mxu0 %v1480
  %2089 = vmatprep.subr.bf16.mxu0 0
  %2090 = vmatpush1.bf16.msra.mxu0 %v1481
  %2091 = vmatprep.subr.bf16.mxu0 0
  %2092 = vmatpush1.bf16.msra.mxu0 %v1482
  %2093 = vmatprep.subr.bf16.mxu0 0
  %2094 = vmatpush1.bf16.msra.mxu0 %v1483
  %2095 = vmatprep.subr.bf16.mxu0 0
  %2096 = vmatpush1.bf16.msra.mxu0 %v1484
  %2097 = vmatprep.subr.bf16.mxu0 0
  %2098 = vmatpush1.bf16.msra.mxu0 %v1485
  %2099 = vmatprep.subr.bf16.mxu0 0
  %2100 = vmatpush1.bf16.msra.mxu0 %v1486
  %2101 = vmatprep.subr.bf16.mxu0 0
  %2102 = vmatpush1.bf16.msra.mxu0 %v1487
  %2103 = vmatprep.subr.bf16.mxu0 0
  %2104 = vmatpush1.bf16.msra.mxu0 %v1488
  %2105 = vmatprep.mubr.bf16.mxu0 %v92
  %2106 = vmatmul.mubr.bf16.gmra.mrb[0].mxu0 %v91
  %v2107 = vpop.f32.mrb[0].mxu0
  %v2108 = vadd.f32 %v2068, %v2107
  %v2109 = vpop.f32.mrb[0].mxu0
  %v2110 = vpop.f32.mrb[0].mxu0
  %v2111 = vpop.f32.mrb[0].mxu0
  %2112 = vdwg.mxu0
  %2113 = vmatprep.subr.bf16.mxu0 0
  %2114 = vmatpush1.bf16.msra.mxu0 %v1489
  %2115 = vmatprep.subr.bf16.mxu0 0
  %2116 = vmatpush1.bf16.msra.mxu0 %v1490
  %2117 = vmatprep.subr.bf16.mxu0 0
  %2118 = vmatpush1.bf16.msra.mxu0 %v1491
  %2119 = vmatprep.subr.bf16.mxu0 0
  %2120 = vmatpush1.bf16.msra.mxu0 %v1492
  %2121 = vmatprep.subr.bf16.mxu0 0
  %2122 = vmatpush1.bf16.msra.mxu0 %v1493
  %2123 = vmatprep.subr.bf16.mxu0 0
  %2124 = vmatpush1.bf16.msra.mxu0 %v1494
  %2125 = vmatprep.subr.bf16.mxu0 0
  %2126 = vmatpush1.bf16.msra.mxu0 %v1495
  %2127 = vmatprep.subr.bf16.mxu0 0
  %2128 = vmatpush1.bf16.msra.mxu0 %v1496
  %2129 = vmatprep.subr.bf16.mxu0 0
  %2130 = vmatpush1.bf16.msra.mxu0 %v1497
  %2131 = vmatprep.subr.bf16.mxu0 0
  %2132 = vmatpush1.bf16.msra.mxu0 %v1498
  %2133 = vmatprep.subr.bf16.mxu0 0
  %2134 = vmatpush1.bf16.msra.mxu0 %v1499
  %2135 = vmatprep.subr.bf16.mxu0 0
  %2136 = vmatpush1.bf16.msra.mxu0 %v1500
  %2137 = vmatprep.subr.bf16.mxu0 0
  %2138 = vmatpush1.bf16.msra.mxu0 %v1501
  %2139 = vmatprep.subr.bf16.mxu0 0
  %2140 = vmatpush1.bf16.msra.mxu0 %v1502
  %2141 = vmatprep.subr.bf16.mxu0 0
  %2142 = vmatpush1.bf16.msra.mxu0 %v1503
  %2143 = vmatprep.subr.bf16.mxu0 0
  %2144 = vmatpush1.bf16.msra.mxu0 %v1504
  %2145 = vmatprep.mubr.bf16.mxu0 %v94
  %2146 = vmatmul.mubr.bf16.gmra.mrb[0].mxu0 %v93
  %v2147 = vpop.f32.mrb[0].mxu0
  %v2148 = vadd.f32 %v2108, %v2147
  %v2149 = vpop.f32.mrb[0].mxu0
  %v2150 = vpop.f32.mrb[0].mxu0
  %v2151 = vpop.f32.mrb[0].mxu0
  %2152 = vdwg.mxu0
  %2153 = vmatprep.subr.bf16.mxu0 0
  %2154 = vmatpush1.bf16.msra.mxu0 %v1505
  %2155 = vmatprep.subr.bf16.mxu0 0
  %2156 = vmatpush1.bf16.msra.mxu0 %v1506
  %2157 = vmatprep.subr.bf16.mxu0 0
  %2158 = vmatpush1.bf16.msra.mxu0 %v1507
  %2159 = vmatprep.subr.bf16.mxu0 0
  %2160 = vmatpush1.bf16.msra.mxu0 %v1508
  %2161 = vmatprep.subr.bf16.mxu0 0
  %2162 = vmatpush1.bf16.msra.mxu0 %v1509
  %2163 = vmatprep.subr.bf16.mxu0 0
  %2164 = vmatpush1.bf16.msra.mxu0 %v1510
  %2165 = vmatprep.subr.bf16.mxu0 0
  %2166 = vmatpush1.bf16.msra.mxu0 %v1511
  %2167 = vmatprep.subr.bf16.mxu0 0
  %2168 = vmatpush1.bf16.msra.mxu0 %v1512
  %2169 = vmatprep.subr.bf16.mxu0 0
  %2170 = vmatpush1.bf16.msra.mxu0 %v1513
  %2171 = vmatprep.subr.bf16.mxu0 0
  %2172 = vmatpush1.bf16.msra.mxu0 %v1514
  %2173 = vmatprep.subr.bf16.mxu0 0
  %2174 = vmatpush1.bf16.msra.mxu0 %v1515
  %2175 = vmatprep.subr.bf16.mxu0 0
  %2176 = vmatpush1.bf16.msra.mxu0 %v1516
  %2177 = vmatprep.subr.bf16.mxu0 0
  %2178 = vmatpush1.bf16.msra.mxu0 %v1517
  %2179 = vmatprep.subr.bf16.mxu0 0
  %2180 = vmatpush1.bf16.msra.mxu0 %v1518
  %2181 = vmatprep.subr.bf16.mxu0 0
  %2182 = vmatpush1.bf16.msra.mxu0 %v1519
  %2183 = vmatprep.subr.bf16.mxu0 0
  %2184 = vmatpush1.bf16.msra.mxu0 %v1520
  %2185 = vmatprep.mubr.bf16.mxu0 %v96
  %2186 = vmatmul.mubr.bf16.gmra.mrb[0].mxu0 %v95
  %v2187 = vpop.f32.mrb[0].mxu0
  %v2188 = vadd.f32 %v2148, %v2187
  %v2189 = vpop.f32.mrb[0].mxu0
  %v2190 = vpop.f32.mrb[0].mxu0
  %v2191 = vpop.f32.mrb[0].mxu0
  %2192 = vdwg.mxu0
  %v2193 = vld [vmem:[%s5] sm:$0x1]
  %v2195 = vlaneseq
  %v2196 = vshrl.u32 %v2195, 7
  %v2197 = vsub.s32 0, %v2196
  %v2198 = vrot.slane %v2193, %v2197
  %v2200 = vadd.f32 %v2188, %v2198
  %v2201 = vmax.f32 %v2200, 0.0
  %v2202 = vld [vmem:[%s6] sm:$0xff]
  %v2203 = vld [vmem:[%s6 + $0x8] sm:$0xff]
  %v2204 = vld [vmem:[%s6 + $0x10] sm:$0xff]
  %v2205 = vld [vmem:[%s6 + $0x18] sm:$0xff]
  %v2206 = vld [vmem:[%s6 + $0x20] sm:$0xff]
  %v2207 = vld [vmem:[%s6 + $0x28] sm:$0xff]
  %v2208 = vld [vmem:[%s6 + $0x30] sm:$0xff]
  %v2209 = vld [vmem:[%s6 + $0x38] sm:$0xff]
  %v2210 = vld [vmem:[%s7] sm:$0x1]
  %v2212 = vlaneseq
  %v2213 = vshrl.u32 %v2212, 7
  %v2214 = vsub.s32 0, %v2213
  %v2215 = vrot.slane %v2210, %v2214
  %vm2217 = vcmask 523264
  %v2219 = vsel %vm2217, %v2201, 0
  %2221 = vmatprep.subr.mxu0 0.0
  %2222 = vmatpush1.msra.mxu0 %v2202
  %2223 = vmatprep.subr.mxu0 0.0
  %2224 = vmatpush1.msra.mxu0 %v2203
  %2225 = vmatprep.subr.mxu0 0.0
  %2226 = vmatpush1.msra.mxu0 %v2204
  %2227 = vmatprep.subr.mxu0 0.0
  %2228 = vmatpush1.msra.mxu0 %v2205
  %2229 = vmatprep.subr.mxu0 0.0
  %2230 = vmatpush1.msra.mxu0 %v2206
  %2231 = vmatprep.subr.mxu0 0.0
  %2232 = vmatpush1.msra.mxu0 %v2207
  %2233 = vmatprep.subr.mxu0 0.0
  %2234 = vmatpush1.msra.mxu0 %v2208
  %2235 = vmatprep.subr.mxu0 0.0
  %2236 = vmatpush1.msra.mxu0 %v2209
  %2237 = vmatprep.subr.mxu0 0.0
  %2238 = vmatpush1.msra.mxu0 0.0
  %2239 = vmatprep.subr.mxu0 0.0
  %2240 = vmatpush1.msra.mxu0 0.0
  %2241 = vmatprep.subr.mxu0 0.0
  %2242 = vmatpush1.msra.mxu0 0.0
  %2243 = vmatprep.subr.mxu0 0.0
  %2244 = vmatpush1.msra.mxu0 0.0
  %2245 = vmatprep.subr.mxu0 0.0
  %2246 = vmatpush1.msra.mxu0 0.0
  %2247 = vmatprep.subr.mxu0 0.0
  %2248 = vmatpush1.msra.mxu0 0.0
  %2249 = vmatprep.subr.mxu0 0.0
  %2250 = vmatpush1.msra.mxu0 0.0
  %2251 = vmatprep.subr.mxu0 0.0
  %2252 = vmatpush1.msra.mxu0 0.0
  %2253 = vmatprep.subr.mxu0 0.0
  %2254 = vmatpush1.msra.mxu0 0.0
  %2255 = vmatprep.subr.mxu0 0.0
  %2256 = vmatpush1.msra.mxu0 0.0
  %2257 = vmatprep.subr.mxu0 0.0
  %2258 = vmatpush1.msra.mxu0 0.0
  %2259 = vmatprep.subr.mxu0 0.0
  %2260 = vmatpush1.msra.mxu0 0.0
  %2261 = vmatprep.subr.mxu0 0.0
  %2262 = vmatpush1.msra.mxu0 0.0
  %2263 = vmatprep.subr.mxu0 0.0
  %2264 = vmatpush1.msra.mxu0 0.0
  %2265 = vmatprep.subr.mxu0 0.0
  %2266 = vmatpush1.msra.mxu0 0.0
  %2267 = vmatprep.subr.mxu0 0.0
  %2268 = vmatpush1.msra.mxu0 0.0
  %2269 = vmatprep.subr.mxu0 0.0
  %2270 = vmatpush1.msra.mxu0 0.0
  %2271 = vmatprep.subr.mxu0 0.0
  %2272 = vmatpush1.msra.mxu0 0.0
  %2273 = vmatprep.subr.mxu0 0.0
  %2274 = vmatpush1.msra.mxu0 0.0
  %2275 = vmatprep.subr.mxu0 0.0
  %2276 = vmatpush1.msra.mxu0 0.0
  %2277 = vmatprep.subr.mxu0 0.0
  %2278 = vmatpush1.msra.mxu0 0.0
  %2279 = vmatprep.subr.mxu0 0.0
  %2280 = vmatpush1.msra.mxu0 0.0
  %2281 = vmatprep.subr.mxu0 0.0
  %2282 = vmatpush1.msra.mxu0 0.0
  %2283 = vmatprep.subr.mxu0 0.0
  %2284 = vmatpush1.msra.mxu0 0.0
  %2285 = vmatprep.mubr.f32.mxu0 0.0
  %2286 = vmatmul.mubr.f32.gmra.mrb[0].mxu0 %v2219
  %v2287 = vpop.f32.mrb[0].mxu0
  %v2288 = vadd.f32 %v2215, %v2287
  %v2289 = vpop.f32.mrb[0].mxu0
  %2290 = vdwg.mxu0
  %vm2291 = vcmask 130048
  %2292 = vst.msk [vmem:[%s14] sm:$0xff] %vm2291, %v2288
  %2294 = vrot.lane.b32.xlu0 %v2288, 112
  %v2295 = vpop.permute.xlu0 %2294
  %2297 = vst.msk [vmem:[%s15] sm:$0xff] %vm2291, %v2295
  %v2298 = vld [vmem:[%s2] sm:$0xff]
  %v2299 = vmul.f32 %v2288, 0.5
  %v2300 = vmul.f32 %v2299, 1.442695
  %v2301 = vpow.pop %v2300
  %2303 = vrot.lane.b32.xlu0 %v2301, 112
  %v2304 = vpop.permute.xlu0 %2303
  %v2306 = vmul.f32 %v2298, %v2304
  %v2307 = vadd.f32 %v2306, %v2288
  %v2308 = vld [vmem:[%s8] sm:$0xff]
  %v2309 = vld [vmem:[%s8 + $0x8] sm:$0xff]
  %v2310 = vld [vmem:[%s9] sm:$0xff]
  %v2311 = vld [vmem:[%s9 + $0x8] sm:$0x3]
  %v2313 = vsel %vm487, %v2311, 0
  %2315 = vmatprep.subr.mxu0 0.0
  %2316 = vmatpush1.msra.mxu0 %v2310
  %2317 = vmatprep.subr.mxu0 0.0
  %2318 = vmatpush1.msra.mxu0 %v2313
  %2319 = vmatprep.subr.mxu0 0.0
  %2320 = vmatpush1.msra.mxu0 0.0
  %2321 = vmatprep.subr.mxu0 0.0
  %2322 = vmatpush1.msra.mxu0 0.0
  %2323 = vmatprep.subr.mxu0 0.0
  %2324 = vmatpush1.msra.mxu0 0.0
  %2325 = vmatprep.subr.mxu0 0.0
  %2326 = vmatpush1.msra.mxu0 0.0
  %2327 = vmatprep.subr.mxu0 0.0
  %2328 = vmatpush1.msra.mxu0 0.0
  %2329 = vmatprep.subr.mxu0 0.0
  %2330 = vmatpush1.msra.mxu0 0.0
  %2331 = vmatprep.subr.mxu0 0.0
  %2332 = vmatpush1.msra.mxu0 0.0
  %2333 = vmatprep.subr.mxu0 0.0
  %2334 = vmatpush1.msra.mxu0 0.0
  %2335 = vmatprep.subr.mxu0 0.0
  %2336 = vmatpush1.msra.mxu0 0.0
  %2337 = vmatprep.subr.mxu0 0.0
  %2338 = vmatpush1.msra.mxu0 0.0
  %2339 = vmatprep.subr.mxu0 0.0
  %2340 = vmatpush1.msra.mxu0 0.0
  %2341 = vmatprep.subr.mxu0 0.0
  %2342 = vmatpush1.msra.mxu0 0.0
  %2343 = vmatprep.subr.mxu0 0.0
  %2344 = vmatpush1.msra.mxu0 0.0
  %2345 = vmatprep.subr.mxu0 0.0
  %2346 = vmatpush1.msra.mxu0 0.0
  %2347 = vmatprep.subr.mxu0 0.0
  %2348 = vmatpush1.msra.mxu0 0.0
  %2349 = vmatprep.subr.mxu0 0.0
  %2350 = vmatpush1.msra.mxu0 0.0
  %2351 = vmatprep.subr.mxu0 0.0
  %2352 = vmatpush1.msra.mxu0 0.0
  %2353 = vmatprep.subr.mxu0 0.0
  %2354 = vmatpush1.msra.mxu0 0.0
  %2355 = vmatprep.subr.mxu0 0.0
  %2356 = vmatpush1.msra.mxu0 0.0
  %2357 = vmatprep.subr.mxu0 0.0
  %2358 = vmatpush1.msra.mxu0 0.0
  %2359 = vmatprep.subr.mxu0 0.0
  %2360 = vmatpush1.msra.mxu0 0.0
  %2361 = vmatprep.subr.mxu0 0.0
  %2362 = vmatpush1.msra.mxu0 0.0
  %2363 = vmatprep.subr.mxu0 0.0
  %2364 = vmatpush1.msra.mxu0 0.0
  %2365 = vmatprep.subr.mxu0 0.0
  %2366 = vmatpush1.msra.mxu0 0.0
  %2367 = vmatprep.subr.mxu0 0.0
  %2368 = vmatpush1.msra.mxu0 0.0
  %2369 = vmatprep.subr.mxu0 0.0
  %2370 = vmatpush1.msra.mxu0 0.0
  %2371 = vmatprep.subr.mxu0 0.0
  %2372 = vmatpush1.msra.mxu0 0.0
  %2373 = vmatprep.subr.mxu0 0.0
  %2374 = vmatpush1.msra.mxu0 0.0
  %2375 = vmatprep.subr.mxu0 0.0
  %2376 = vmatpush1.msra.mxu0 0.0
  %2377 = vmatprep.subr.mxu0 0.0
  %2378 = vmatpush1.msra.mxu0 0.0
  %2379 = vmatprep.mubr.f32.mxu0 0.0
  %2380 = vmatmul.mubr.f32.gmra.mrb[0].mxu0 %v485
  %v2381 = vpop.f32.mrb[0].mxu0
  %v2382 = vadd.f32 0.0, %v2381
  %v2383 = vpop.f32.mrb[0].mxu0
  %2384 = vdwg.mxu0
  %v2386 = vsel %vm2291, %v2307, 0
  %2388 = vmatprep.subr.mxu0 0.0
  %2389 = vmatpush1.msra.mxu0 %v2308
  %2390 = vmatprep.subr.mxu0 0.0
  %2391 = vmatpush1.msra.mxu0 %v2309
  %2392 = vmatprep.subr.mxu0 0.0
  %2393 = vmatpush1.msra.mxu0 0.0
  %2394 = vmatprep.subr.mxu0 0.0
  %2395 = vmatpush1.msra.mxu0 0.0
  %2396 = vmatprep.subr.mxu0 0.0
  %2397 = vmatpush1.msra.mxu0 0.0
  %2398 = vmatprep.subr.mxu0 0.0
  %2399 = vmatpush1.msra.mxu0 0.0
  %2400 = vmatprep.subr.mxu0 0.0
  %2401 = vmatpush1.msra.mxu0 0.0
  %2402 = vmatprep.subr.mxu0 0.0
  %2403 = vmatpush1.msra.mxu0 0.0
  %2404 = vmatprep.subr.mxu0 0.0
  %2405 = vmatpush1.msra.mxu0 0.0
  %2406 = vmatprep.subr.mxu0 0.0
  %2407 = vmatpush1.msra.mxu0 0.0
  %2408 = vmatprep.subr.mxu0 0.0
  %2409 = vmatpush1.msra.mxu0 0.0
  %2410 = vmatprep.subr.mxu0 0.0
  %2411 = vmatpush1.msra.mxu0 0.0
  %2412 = vmatprep.subr.mxu0 0.0
  %2413 = vmatpush1.msra.mxu0 0.0
  %2414 = vmatprep.subr.mxu0 0.0
  %2415 = vmatpush1.msra.mxu0 0.0
  %2416 = vmatprep.subr.mxu0 0.0
  %2417 = vmatpush1.msra.mxu0 0.0
  %2418 = vmatprep.subr.mxu0 0.0
  %2419 = vmatpush1.msra.mxu0 0.0
  %2420 = vmatprep.subr.mxu0 0.0
  %2421 = vmatpush1.msra.mxu0 0.0
  %2422 = vmatprep.subr.mxu0 0.0
  %2423 = vmatpush1.msra.mxu0 0.0
  %2424 = vmatprep.subr.mxu0 0.0
  %2425 = vmatpush1.msra.mxu0 0.0
  %2426 = vmatprep.subr.mxu0 0.0
  %2427 = vmatpush1.msra.mxu0 0.0
  %2428 = vmatprep.subr.mxu0 0.0
  %2429 = vmatpush1.msra.mxu0 0.0
  %2430 = vmatprep.subr.mxu0 0.0
  %2431 = vmatpush1.msra.mxu0 0.0
  %2432 = vmatprep.subr.mxu0 0.0
  %2433 = vmatpush1.msra.mxu0 0.0
  %2434 = vmatprep.subr.mxu0 0.0
  %2435 = vmatpush1.msra.mxu0 0.0
  %2436 = vmatprep.subr.mxu0 0.0
  %2437 = vmatpush1.msra.mxu0 0.0
  %2438 = vmatprep.subr.mxu0 0.0
  %2439 = vmatpush1.msra.mxu0 0.0
  %2440 = vmatprep.subr.mxu0 0.0
  %2441 = vmatpush1.msra.mxu0 0.0
  %2442 = vmatprep.subr.mxu0 0.0
  %2443 = vmatpush1.msra.mxu0 0.0
  %2444 = vmatprep.subr.mxu0 0.0
  %2445 = vmatpush1.msra.mxu0 0.0
  %2446 = vmatprep.subr.mxu0 0.0
  %2447 = vmatpush1.msra.mxu0 0.0
  %2448 = vmatprep.subr.mxu0 0.0
  %2449 = vmatpush1.msra.mxu0 0.0
  %2450 = vmatprep.subr.mxu0 0.0
  %2451 = vmatpush1.msra.mxu0 0.0
  %2452 = vmatprep.mubr.f32.mxu0 0.0
  %2453 = vmatmul.mubr.f32.gmra.mrb[0].mxu0 %v2386
  %v2454 = vpop.f32.mrb[0].mxu0
  %v2455 = vadd.f32 %v2382, %v2454
  %v2456 = vpop.f32.mrb[0].mxu0
  %2457 = vdwg.mxu0
  %v2458 = vld [vmem:[%s10] sm:$0x1]
  %v2460 = vlaneseq
  %v2461 = vshrl.u32 %v2460, 7
  %v2462 = vsub.s32 0, %v2461
  %v2463 = vrot.slane %v2458, %v2462
  %v2465 = vadd.f32 %v2455, %v2463
  %v2466 = vmax.f32 %v2465, 0.0
  %v2467 = vpack.c.bf16 %v2466, %v2466
  %v2468 = vld [vmem:[%s11] sm:$0xff]
  %v2469 = vld [vmem:[%s11 + $0x8] sm:$0xff]
  %v2470 = vld [vmem:[%s11 + $0x10] sm:$0xff]
  %v2471 = vld [vmem:[%s11 + $0x18] sm:$0xff]
  %v2472 = vld [vmem:[%s11 + $0x20] sm:$0xff]
  %v2473 = vld [vmem:[%s11 + $0x28] sm:$0xff]
  %v2474 = vld [vmem:[%s11 + $0x30] sm:$0xff]
  %v2475 = vld [vmem:[%s11 + $0x38] sm:$0xff]
  %v2476 = vld [vmem:[%s11 + $0x40] sm:$0xff]
  %v2477 = vld [vmem:[%s11 + $0x48] sm:$0xff]
  %v2478 = vld [vmem:[%s11 + $0x50] sm:$0xff]
  %v2479 = vld [vmem:[%s11 + $0x58] sm:$0xff]
  %v2480 = vld [vmem:[%s11 + $0x60] sm:$0xff]
  %v2481 = vld [vmem:[%s11 + $0x68] sm:$0xff]
  %v2482 = vld [vmem:[%s11 + $0x70] sm:$0xff]
  %v2483 = vld [vmem:[%s11 + $0x78] sm:$0xff]
  %v2484 = vld [vmem:[%s11 + $0x80] sm:$0xff]
  %v2485 = vld [vmem:[%s11 + $0x88] sm:$0xff]
  %v2486 = vld [vmem:[%s11 + $0x90] sm:$0xff]
  %v2487 = vld [vmem:[%s11 + $0x98] sm:$0xff]
  %v2488 = vld [vmem:[%s11 + $0xa0] sm:$0xff]
  %v2489 = vld [vmem:[%s11 + $0xa8] sm:$0xff]
  %v2490 = vld [vmem:[%s11 + $0xb0] sm:$0xff]
  %v2491 = vld [vmem:[%s11 + $0xb8] sm:$0xff]
  %v2492 = vld [vmem:[%s11 + $0xc0] sm:$0xff]
  %v2493 = vld [vmem:[%s11 + $0xc8] sm:$0xff]
  %v2494 = vld [vmem:[%s11 + $0xd0] sm:$0xff]
  %v2495 = vld [vmem:[%s11 + $0xd8] sm:$0xff]
  %v2496 = vld [vmem:[%s11 + $0xe0] sm:$0xff]
  %v2497 = vld [vmem:[%s11 + $0xe8] sm:$0xff]
  %v2498 = vld [vmem:[%s11 + $0xf0] sm:$0xff]
  %v2499 = vld [vmem:[%s11 + $0xf8] sm:$0xff]
  %v2500 = vld [vmem:[%s11 + $0x100] sm:$0xff]
  %v2501 = vld [vmem:[%s11 + $0x108] sm:$0xff]
  %v2502 = vld [vmem:[%s11 + $0x110] sm:$0xff]
  %v2503 = vld [vmem:[%s11 + $0x118] sm:$0xff]
  %v2504 = vld [vmem:[%s11 + $0x120] sm:$0xff]
  %v2505 = vld [vmem:[%s11 + $0x128] sm:$0xff]
  %v2506 = vld [vmem:[%s11 + $0x130] sm:$0xff]
  %v2507 = vld [vmem:[%s11 + $0x138] sm:$0xff]
  %v2508 = vld [vmem:[%s11 + $0x140] sm:$0xff]
  %v2509 = vld [vmem:[%s11 + $0x148] sm:$0xff]
  %v2510 = vld [vmem:[%s11 + $0x150] sm:$0xff]
  %v2511 = vld [vmem:[%s11 + $0x158] sm:$0xff]
  %v2512 = vld [vmem:[%s11 + $0x160] sm:$0xff]
  %v2513 = vld [vmem:[%s11 + $0x168] sm:$0xff]
  %v2514 = vld [vmem:[%s11 + $0x170] sm:$0xff]
  %v2515 = vld [vmem:[%s11 + $0x178] sm:$0xff]
  %v2516 = vld [vmem:[%s11 + $0x180] sm:$0xff]
  %v2517 = vld [vmem:[%s11 + $0x188] sm:$0xff]
  %v2518 = vld [vmem:[%s11 + $0x190] sm:$0xff]
  %v2519 = vld [vmem:[%s11 + $0x198] sm:$0xff]
  %v2520 = vld [vmem:[%s11 + $0x1a0] sm:$0xff]
  %v2521 = vld [vmem:[%s11 + $0x1a8] sm:$0xff]
  %v2522 = vld [vmem:[%s11 + $0x1b0] sm:$0xff]
  %v2523 = vld [vmem:[%s11 + $0x1b8] sm:$0xff]
  %v2524 = vld [vmem:[%s11 + $0x1c0] sm:$0xff]
  %v2525 = vld [vmem:[%s11 + $0x1c8] sm:$0xff]
  %v2526 = vld [vmem:[%s11 + $0x1d0] sm:$0xff]
  %v2527 = vld [vmem:[%s11 + $0x1d8] sm:$0xff]
  %v2528 = vld [vmem:[%s11 + $0x1e0] sm:$0xff]
  %v2529 = vld [vmem:[%s11 + $0x1e8] sm:$0xff]
  %v2530 = vld [vmem:[%s11 + $0x1f0] sm:$0xff]
  %v2531 = vld [vmem:[%s11 + $0x1f8] sm:$0xff]
  %v2532 = vld [vmem:[%s11 + $0x200] sm:$0xff]
  %v2533 = vld [vmem:[%s11 + $0x208] sm:$0xff]
  %v2534 = vld [vmem:[%s11 + $0x210] sm:$0xff]
  %v2535 = vld [vmem:[%s11 + $0x218] sm:$0xff]
  %v2536 = vld [vmem:[%s11 + $0x220] sm:$0xff]
  %v2537 = vld [vmem:[%s11 + $0x228] sm:$0xff]
  %v2538 = vld [vmem:[%s11 + $0x230] sm:$0xff]
  %v2539 = vld [vmem:[%s11 + $0x238] sm:$0xff]
  %v2540 = vld [vmem:[%s11 + $0x240] sm:$0xff]
  %v2541 = vld [vmem:[%s11 + $0x248] sm:$0xff]
  %v2542 = vld [vmem:[%s11 + $0x250] sm:$0xff]
  %v2543 = vld [vmem:[%s11 + $0x258] sm:$0xff]
  %v2544 = vld [vmem:[%s11 + $0x260] sm:$0xff]
  %v2545 = vld [vmem:[%s11 + $0x268] sm:$0xff]
  %v2546 = vld [vmem:[%s11 + $0x270] sm:$0xff]
  %v2547 = vld [vmem:[%s11 + $0x278] sm:$0xff]
  %v2548 = vld [vmem:[%s11 + $0x280] sm:$0xff]
  %v2549 = vld [vmem:[%s11 + $0x288] sm:$0xff]
  %v2550 = vld [vmem:[%s11 + $0x290] sm:$0xff]
  %v2551 = vld [vmem:[%s11 + $0x298] sm:$0xff]
  %v2552 = vld [vmem:[%s11 + $0x2a0] sm:$0xff]
  %v2553 = vld [vmem:[%s11 + $0x2a8] sm:$0xff]
  %v2554 = vld [vmem:[%s11 + $0x2b0] sm:$0xff]
  %v2555 = vld [vmem:[%s11 + $0x2b8] sm:$0xff]
  %v2556 = vld [vmem:[%s11 + $0x2c0] sm:$0xff]
  %v2557 = vld [vmem:[%s11 + $0x2c8] sm:$0xff]
  %v2558 = vld [vmem:[%s11 + $0x2d0] sm:$0xff]
  %v2559 = vld [vmem:[%s11 + $0x2d8] sm:$0xff]
  %v2560 = vld [vmem:[%s11 + $0x2e0] sm:$0xff]
  %v2561 = vld [vmem:[%s11 + $0x2e8] sm:$0xff]
  %v2562 = vld [vmem:[%s11 + $0x2f0] sm:$0xff]
  %v2563 = vld [vmem:[%s11 + $0x2f8] sm:$0xff]
  %v2564 = vld [vmem:[%s12] sm:$0xff]
  %v2565 = vld [vmem:[%s12 + $0x8] sm:$0xff]
  %v2566 = vld [vmem:[%s12 + $0x10] sm:$0xff]
  %v2570 = vlaneseq
  %v2571 = vshrl.u32 %v2570, 7
  %v2572 = vsub.s32 0, %v2571
  %v2573 = vrot.slane %v2564, %v2572
  %v2574 = vlaneseq
  %v2575 = vshrl.u32 %v2574, 7
  %v2576 = vsub.s32 1, %v2575
  %v2577 = vrot.slane %v2564, %v2576
  %v2578 = vlaneseq
  %v2579 = vshrl.u32 %v2578, 7
  %v2580 = vsub.s32 2, %v2579
  %v2581 = vrot.slane %v2564, %v2580
  %v2582 = vlaneseq
  %v2583 = vshrl.u32 %v2582, 7
  %v2584 = vsub.s32 3, %v2583
  %v2585 = vrot.slane %v2564, %v2584
  %v2586 = vlaneseq
  %v2587 = vshrl.u32 %v2586, 7
  %v2588 = vsub.s32 4, %v2587
  %v2589 = vrot.slane %v2564, %v2588
  %v2590 = vlaneseq
  %v2591 = vshrl.u32 %v2590, 7
  %v2592 = vsub.s32 5, %v2591
  %v2593 = vrot.slane %v2564, %v2592
  %v2594 = vlaneseq
  %v2595 = vshrl.u32 %v2594, 7
  %v2596 = vsub.s32 6, %v2595
  %v2597 = vrot.slane %v2564, %v2596
  %v2598 = vlaneseq
  %v2599 = vshrl.u32 %v2598, 7
  %v2600 = vsub.s32 7, %v2599
  %v2601 = vrot.slane %v2564, %v2600
  %v2602 = vlaneseq
  %v2603 = vshrl.u32 %v2602, 7
  %v2604 = vsub.s32 0, %v2603
  %v2605 = vrot.slane %v2565, %v2604
  %v2606 = vlaneseq
  %v2607 = vshrl.u32 %v2606, 7
  %v2608 = vsub.s32 1, %v2607
  %v2609 = vrot.slane %v2565, %v2608
  %v2610 = vlaneseq
  %v2611 = vshrl.u32 %v2610, 7
  %v2612 = vsub.s32 2, %v2611
  %v2613 = vrot.slane %v2565, %v2612
  %v2614 = vlaneseq
  %v2615 = vshrl.u32 %v2614, 7
  %v2616 = vsub.s32 3, %v2615
  %v2617 = vrot.slane %v2565, %v2616
  %v2618 = vlaneseq
  %v2619 = vshrl.u32 %v2618, 7
  %v2620 = vsub.s32 4, %v2619
  %v2621 = vrot.slane %v2565, %v2620
  %v2622 = vlaneseq
  %v2623 = vshrl.u32 %v2622, 7
  %v2624 = vsub.s32 5, %v2623
  %v2625 = vrot.slane %v2565, %v2624
  %v2626 = vlaneseq
  %v2627 = vshrl.u32 %v2626, 7
  %v2628 = vsub.s32 6, %v2627
  %v2629 = vrot.slane %v2565, %v2628
  %v2630 = vlaneseq
  %v2631 = vshrl.u32 %v2630, 7
  %v2632 = vsub.s32 7, %v2631
  %v2633 = vrot.slane %v2565, %v2632
  %v2634 = vlaneseq
  %v2635 = vshrl.u32 %v2634, 7
  %v2636 = vsub.s32 0, %v2635
  %v2637 = vrot.slane %v2566, %v2636
  %v2638 = vlaneseq
  %v2639 = vshrl.u32 %v2638, 7
  %v2640 = vsub.s32 1, %v2639
  %v2641 = vrot.slane %v2566, %v2640
  %v2642 = vlaneseq
  %v2643 = vshrl.u32 %v2642, 7
  %v2644 = vsub.s32 2, %v2643
  %v2645 = vrot.slane %v2566, %v2644
  %v2646 = vlaneseq
  %v2647 = vshrl.u32 %v2646, 7
  %v2648 = vsub.s32 3, %v2647
  %v2649 = vrot.slane %v2566, %v2648
  %v2650 = vlaneseq
  %v2651 = vshrl.u32 %v2650, 7
  %v2652 = vsub.s32 4, %v2651
  %v2653 = vrot.slane %v2566, %v2652
  %v2654 = vlaneseq
  %v2655 = vshrl.u32 %v2654, 7
  %v2656 = vsub.s32 5, %v2655
  %v2657 = vrot.slane %v2566, %v2656
  %v2658 = vlaneseq
  %v2659 = vshrl.u32 %v2658, 7
  %v2660 = vsub.s32 6, %v2659
  %v2661 = vrot.slane %v2566, %v2660
  %v2662 = vlaneseq
  %v2663 = vshrl.u32 %v2662, 7
  %v2664 = vsub.s32 7, %v2663
  %v2665 = vrot.slane %v2566, %v2664
  %v2786 = vunpack.c.l.b16 %v2468
  %v2787 = vunpack.c.h.b16 %v2468
  %v2788 = vunpack.c.l.b16 %v2469
  %v2789 = vunpack.c.h.b16 %v2469
  %v2790 = vunpack.c.l.b16 %v2470
  %v2791 = vunpack.c.h.b16 %v2470
  %v2792 = vunpack.c.l.b16 %v2471
  %v2793 = vunpack.c.h.b16 %v2471
  %v2794 = vunpack.c.l.b16 %v2472
  %v2795 = vunpack.c.h.b16 %v2472
  %v2796 = vunpack.c.l.b16 %v2473
  %v2797 = vunpack.c.h.b16 %v2473
  %v2798 = vunpack.c.l.b16 %v2474
  %v2799 = vunpack.c.h.b16 %v2474
  %v2800 = vunpack.c.l.b16 %v2475
  %v2801 = vunpack.c.h.b16 %v2475
  %v2802 = vunpack.c.l.b16 %v2476
  %v2803 = vunpack.c.h.b16 %v2476
  %v2804 = vunpack.c.l.b16 %v2477
  %v2805 = vunpack.c.h.b16 %v2477
  %v2806 = vunpack.c.l.b16 %v2478
  %v2807 = vunpack.c.h.b16 %v2478
  %v2808 = vunpack.c.l.b16 %v2479
  %v2809 = vunpack.c.h.b16 %v2479
  %v2810 = vunpack.c.l.b16 %v2480
  %v2811 = vunpack.c.h.b16 %v2480
  %v2812 = vunpack.c.l.b16 %v2481
  %v2813 = vunpack.c.h.b16 %v2481
  %v2814 = vunpack.c.l.b16 %v2482
  %v2815 = vunpack.c.h.b16 %v2482
  %v2816 = vunpack.c.l.b16 %v2483
  %v2817 = vunpack.c.h.b16 %v2483
  %v2818 = vunpack.c.l.b16 %v2484
  %v2819 = vunpack.c.h.b16 %v2484
  %v2820 = vunpack.c.l.b16 %v2485
  %v2821 = vunpack.c.h.b16 %v2485
  %v2822 = vunpack.c.l.b16 %v2486
  %v2823 = vunpack.c.h.b16 %v2486
  %v2824 = vunpack.c.l.b16 %v2487
  %v2825 = vunpack.c.h.b16 %v2487
  %v2826 = vunpack.c.l.b16 %v2488
  %v2827 = vunpack.c.h.b16 %v2488
  %v2828 = vunpack.c.l.b16 %v2489
  %v2829 = vunpack.c.h.b16 %v2489
  %v2830 = vunpack.c.l.b16 %v2490
  %v2831 = vunpack.c.h.b16 %v2490
  %v2832 = vunpack.c.l.b16 %v2491
  %v2833 = vunpack.c.h.b16 %v2491
  %v2834 = vunpack.c.l.b16 %v2492
  %v2835 = vunpack.c.h.b16 %v2492
  %v2836 = vunpack.c.l.b16 %v2493
  %v2837 = vunpack.c.h.b16 %v2493
  %v2838 = vunpack.c.l.b16 %v2494
  %v2839 = vunpack.c.h.b16 %v2494
  %v2840 = vunpack.c.l.b16 %v2495
  %v2841 = vunpack.c.h.b16 %v2495
  %v2842 = vunpack.c.l.b16 %v2496
  %v2843 = vunpack.c.h.b16 %v2496
  %v2844 = vunpack.c.l.b16 %v2497
  %v2845 = vunpack.c.h.b16 %v2497
  %v2846 = vunpack.c.l.b16 %v2498
  %v2847 = vunpack.c.h.b16 %v2498
  %v2848 = vunpack.c.l.b16 %v2499
  %v2849 = vunpack.c.h.b16 %v2499
  %v2850 = vunpack.c.l.b16 %v2500
  %v2851 = vunpack.c.h.b16 %v2500
  %v2852 = vunpack.c.l.b16 %v2501
  %v2853 = vunpack.c.h.b16 %v2501
  %v2854 = vunpack.c.l.b16 %v2502
  %v2855 = vunpack.c.h.b16 %v2502
  %v2856 = vunpack.c.l.b16 %v2503
  %v2857 = vunpack.c.h.b16 %v2503
  %v2858 = vunpack.c.l.b16 %v2504
  %v2859 = vunpack.c.h.b16 %v2504
  %v2860 = vunpack.c.l.b16 %v2505
  %v2861 = vunpack.c.h.b16 %v2505
  %v2862 = vunpack.c.l.b16 %v2506
  %v2863 = vunpack.c.h.b16 %v2506
  %v2864 = vunpack.c.l.b16 %v2507
  %v2865 = vunpack.c.h.b16 %v2507
  %v2866 = vunpack.c.l.b16 %v2508
  %v2867 = vunpack.c.h.b16 %v2508
  %v2868 = vunpack.c.l.b16 %v2509
  %v2869 = vunpack.c.h.b16 %v2509
  %v2870 = vunpack.c.l.b16 %v2510
  %v2871 = vunpack.c.h.b16 %v2510
  %v2872 = vunpack.c.l.b16 %v2511
  %v2873 = vunpack.c.h.b16 %v2511
  %v2874 = vunpack.c.l.b16 %v2512
  %v2875 = vunpack.c.h.b16 %v2512
  %v2876 = vunpack.c.l.b16 %v2513
  %v2877 = vunpack.c.h.b16 %v2513
  %v2878 = vunpack.c.l.b16 %v2514
  %v2879 = vunpack.c.h.b16 %v2514
  %v2880 = vunpack.c.l.b16 %v2515
  %v2881 = vunpack.c.h.b16 %v2515
  %v2882 = vunpack.c.l.b16 %v2516
  %v2883 = vunpack.c.h.b16 %v2516
  %v2884 = vunpack.c.l.b16 %v2517
  %v2885 = vunpack.c.h.b16 %v2517
  %v2886 = vunpack.c.l.b16 %v2518
  %v2887 = vunpack.c.h.b16 %v2518
  %v2888 = vunpack.c.l.b16 %v2519
  %v2889 = vunpack.c.h.b16 %v2519
  %v2890 = vunpack.c.l.b16 %v2520
  %v2891 = vunpack.c.h.b16 %v2520
  %v2892 = vunpack.c.l.b16 %v2521
  %v2893 = vunpack.c.h.b16 %v2521
  %v2894 = vunpack.c.l.b16 %v2522
  %v2895 = vunpack.c.h.b16 %v2522
  %v2896 = vunpack.c.l.b16 %v2523
  %v2897 = vunpack.c.h.b16 %v2523
  %v2898 = vunpack.c.l.b16 %v2524
  %v2899 = vunpack.c.h.b16 %v2524
  %v2900 = vunpack.c.l.b16 %v2525
  %v2901 = vunpack.c.h.b16 %v2525
  %v2902 = vunpack.c.l.b16 %v2526
  %v2903 = vunpack.c.h.b16 %v2526
  %v2904 = vunpack.c.l.b16 %v2527
  %v2905 = vunpack.c.h.b16 %v2527
  %v2906 = vunpack.c.l.b16 %v2528
  %v2907 = vunpack.c.h.b16 %v2528
  %v2908 = vunpack.c.l.b16 %v2529
  %v2909 = vunpack.c.h.b16 %v2529
  %v2910 = vunpack.c.l.b16 %v2530
  %v2911 = vunpack.c.h.b16 %v2530
  %v2912 = vunpack.c.l.b16 %v2531
  %v2913 = vunpack.c.h.b16 %v2531
  %v2914 = vunpack.c.l.b16 %v2532
  %v2915 = vunpack.c.h.b16 %v2532
  %v2916 = vunpack.c.l.b16 %v2533
  %v2917 = vunpack.c.h.b16 %v2533
  %v2918 = vunpack.c.l.b16 %v2534
  %v2919 = vunpack.c.h.b16 %v2534
  %v2920 = vunpack.c.l.b16 %v2535
  %v2921 = vunpack.c.h.b16 %v2535
  %v2922 = vunpack.c.l.b16 %v2536
  %v2923 = vunpack.c.h.b16 %v2536
  %v2924 = vunpack.c.l.b16 %v2537
  %v2925 = vunpack.c.h.b16 %v2537
  %v2926 = vunpack.c.l.b16 %v2538
  %v2927 = vunpack.c.h.b16 %v2538
  %v2928 = vunpack.c.l.b16 %v2539
  %v2929 = vunpack.c.h.b16 %v2539
  %v2930 = vunpack.c.l.b16 %v2540
  %v2931 = vunpack.c.h.b16 %v2540
  %v2932 = vunpack.c.l.b16 %v2541
  %v2933 = vunpack.c.h.b16 %v2541
  %v2934 = vunpack.c.l.b16 %v2542
  %v2935 = vunpack.c.h.b16 %v2542
  %v2936 = vunpack.c.l.b16 %v2543
  %v2937 = vunpack.c.h.b16 %v2543
  %v2938 = vunpack.c.l.b16 %v2544
  %v2939 = vunpack.c.h.b16 %v2544
  %v2940 = vunpack.c.l.b16 %v2545
  %v2941 = vunpack.c.h.b16 %v2545
  %v2942 = vunpack.c.l.b16 %v2546
  %v2943 = vunpack.c.h.b16 %v2546
  %v2944 = vunpack.c.l.b16 %v2547
  %v2945 = vunpack.c.h.b16 %v2547
  %v2946 = vunpack.c.l.b16 %v2548
  %v2947 = vunpack.c.h.b16 %v2548
  %v2948 = vunpack.c.l.b16 %v2549
  %v2949 = vunpack.c.h.b16 %v2549
  %v2950 = vunpack.c.l.b16 %v2550
  %v2951 = vunpack.c.h.b16 %v2550
  %v2952 = vunpack.c.l.b16 %v2551
  %v2953 = vunpack.c.h.b16 %v2551
  %v2954 = vunpack.c.l.b16 %v2552
  %v2955 = vunpack.c.h.b16 %v2552
  %v2956 = vunpack.c.l.b16 %v2553
  %v2957 = vunpack.c.h.b16 %v2553
  %v2958 = vunpack.c.l.b16 %v2554
  %v2959 = vunpack.c.h.b16 %v2554
  %v2960 = vunpack.c.l.b16 %v2555
  %v2961 = vunpack.c.h.b16 %v2555
  %v2962 = vunpack.c.l.b16 %v2556
  %v2963 = vunpack.c.h.b16 %v2556
  %v2964 = vunpack.c.l.b16 %v2557
  %v2965 = vunpack.c.h.b16 %v2557
  %v2966 = vunpack.c.l.b16 %v2558
  %v2967 = vunpack.c.h.b16 %v2558
  %v2968 = vunpack.c.l.b16 %v2559
  %v2969 = vunpack.c.h.b16 %v2559
  %v2970 = vunpack.c.l.b16 %v2560
  %v2971 = vunpack.c.h.b16 %v2560
  %v2972 = vunpack.c.l.b16 %v2561
  %v2973 = vunpack.c.h.b16 %v2561
  %v2974 = vunpack.c.l.b16 %v2562
  %v2975 = vunpack.c.h.b16 %v2562
  %v2976 = vunpack.c.l.b16 %v2563
  %v2977 = vunpack.c.h.b16 %v2563
  %v2978 = vpack.c.b16 %v2810, %v2786
  %v2979 = vpack.c.b16 %v2811, %v2787
  %v2980 = vpack.c.b16 %v2812, %v2788
  %v2981 = vpack.c.b16 %v2813, %v2789
  %v2982 = vpack.c.b16 %v2814, %v2790
  %v2983 = vpack.c.b16 %v2815, %v2791
  %v2984 = vpack.c.b16 %v2816, %v2792
  %v2985 = vpack.c.b16 %v2817, %v2793
  %v2986 = vpack.c.b16 %v2818, %v2794
  %v2987 = vpack.c.b16 %v2819, %v2795
  %v2988 = vpack.c.b16 %v2820, %v2796
  %v2989 = vpack.c.b16 %v2821, %v2797
  %v2990 = vpack.c.b16 %v2822, %v2798
  %v2991 = vpack.c.b16 %v2823, %v2799
  %v2992 = vpack.c.b16 %v2824, %v2800
  %v2993 = vpack.c.b16 %v2825, %v2801
  %v2994 = vpack.c.b16 %v2826, %v2802
  %v2995 = vpack.c.b16 %v2827, %v2803
  %v2996 = vpack.c.b16 %v2828, %v2804
  %v2997 = vpack.c.b16 %v2829, %v2805
  %v2998 = vpack.c.b16 %v2830, %v2806
  %v2999 = vpack.c.b16 %v2831, %v2807
  %v3000 = vpack.c.b16 %v2832, %v2808
  %v3001 = vpack.c.b16 %v2833, %v2809
  %v3002 = vpack.c.b16 %v2858, %v2834
  %v3003 = vpack.c.b16 %v2859, %v2835
  %v3004 = vpack.c.b16 %v2860, %v2836
  %v3005 = vpack.c.b16 %v2861, %v2837
  %v3006 = vpack.c.b16 %v2862, %v2838
  %v3007 = vpack.c.b16 %v2863, %v2839
  %v3008 = vpack.c.b16 %v2864, %v2840
  %v3009 = vpack.c.b16 %v2865, %v2841
  %v3010 = vpack.c.b16 %v2866, %v2842
  %v3011 = vpack.c.b16 %v2867, %v2843
  %v3012 = vpack.c.b16 %v2868, %v2844
  %v3013 = vpack.c.b16 %v2869, %v2845
  %v3014 = vpack.c.b16 %v2870, %v2846
  %v3015 = vpack.c.b16 %v2871, %v2847
  %v3016 = vpack.c.b16 %v2872, %v2848
  %v3017 = vpack.c.b16 %v2873, %v2849
  %v3018 = vpack.c.b16 %v2874, %v2850
  %v3019 = vpack.c.b16 %v2875, %v2851
  %v3020 = vpack.c.b16 %v2876, %v2852
  %v3021 = vpack.c.b16 %v2877, %v2853
  %v3022 = vpack.c.b16 %v2878, %v2854
  %v3023 = vpack.c.b16 %v2879, %v2855
  %v3024 = vpack.c.b16 %v2880, %v2856
  %v3025 = vpack.c.b16 %v2881, %v2857
  %v3026 = vpack.c.b16 %v2906, %v2882
  %v3027 = vpack.c.b16 %v2907, %v2883
  %v3028 = vpack.c.b16 %v2908, %v2884
  %v3029 = vpack.c.b16 %v2909, %v2885
  %v3030 = vpack.c.b16 %v2910, %v2886
  %v3031 = vpack.c.b16 %v2911, %v2887
  %v3032 = vpack.c.b16 %v2912, %v2888
  %v3033 = vpack.c.b16 %v2913, %v2889
  %v3034 = vpack.c.b16 %v2914, %v2890
  %v3035 = vpack.c.b16 %v2915, %v2891
  %v3036 = vpack.c.b16 %v2916, %v2892
  %v3037 = vpack.c.b16 %v2917, %v2893
  %v3038 = vpack.c.b16 %v2918, %v2894
  %v3039 = vpack.c.b16 %v2919, %v2895
  %v3040 = vpack.c.b16 %v2920, %v2896
  %v3041 = vpack.c.b16 %v2921, %v2897
  %v3042 = vpack.c.b16 %v2922, %v2898
  %v3043 = vpack.c.b16 %v2923, %v2899
  %v3044 = vpack.c.b16 %v2924, %v2900
  %v3045 = vpack.c.b16 %v2925, %v2901
  %v3046 = vpack.c.b16 %v2926, %v2902
  %v3047 = vpack.c.b16 %v2927, %v2903
  %v3048 = vpack.c.b16 %v2928, %v2904
  %v3049 = vpack.c.b16 %v2929, %v2905
  %v3050 = vpack.c.b16 %v2954, %v2930
  %v3051 = vpack.c.b16 %v2955, %v2931
  %v3052 = vpack.c.b16 %v2956, %v2932
  %v3053 = vpack.c.b16 %v2957, %v2933
  %v3054 = vpack.c.b16 %v2958, %v2934
  %v3055 = vpack.c.b16 %v2959, %v2935
  %v3056 = vpack.c.b16 %v2960, %v2936
  %v3057 = vpack.c.b16 %v2961, %v2937
  %v3058 = vpack.c.b16 %v2962, %v2938
  %v3059 = vpack.c.b16 %v2963, %v2939
  %v3060 = vpack.c.b16 %v2964, %v2940
  %v3061 = vpack.c.b16 %v2965, %v2941
  %v3062 = vpack.c.b16 %v2966, %v2942
  %v3063 = vpack.c.b16 %v2967, %v2943
  %v3064 = vpack.c.b16 %v2968, %v2944
  %v3065 = vpack.c.b16 %v2969, %v2945
  %v3066 = vpack.c.b16 %v2970, %v2946
  %v3067 = vpack.c.b16 %v2971, %v2947
  %v3068 = vpack.c.b16 %v2972, %v2948
  %v3069 = vpack.c.b16 %v2973, %v2949
  %v3070 = vpack.c.b16 %v2974, %v2950
  %v3071 = vpack.c.b16 %v2975, %v2951
  %v3072 = vpack.c.b16 %v2976, %v2952
  %v3073 = vpack.c.b16 %v2977, %v2953
  %v3171 = vsel %vm2217, %v2467, 0
  %3173 = vmatprep.subr.bf16.mxu0 %v2979
  %3174 = vmatpush1.bf16.msra.mxu0 %v2978
  %3175 = vmatprep.subr.bf16.mxu0 %v3003
  %3176 = vmatpush1.bf16.msra.mxu0 %v3002
  %3177 = vmatprep.subr.bf16.mxu0 %v3027
  %3178 = vmatpush1.bf16.msra.mxu0 %v3026
  %3179 = vmatprep.subr.bf16.mxu0 %v3051
  %3180 = vmatpush1.bf16.msra.mxu0 %v3050
  %3181 = vmatprep.subr.bf16.mxu0 0
  %3182 = vmatpush1.bf16.msra.mxu0 0
  %3183 = vmatprep.subr.bf16.mxu0 0
  %3184 = vmatpush1.bf16.msra.mxu0 0
  %3185 = vmatprep.subr.bf16.mxu0 0
  %3186 = vmatpush1.bf16.msra.mxu0 0
  %3187 = vmatprep.subr.bf16.mxu0 0
  %3188 = vmatpush1.bf16.msra.mxu0 0
  %3189 = vmatprep.subr.bf16.mxu0 0
  %3190 = vmatpush1.bf16.msra.mxu0 0
  %3191 = vmatprep.subr.bf16.mxu0 0
  %3192 = vmatpush1.bf16.msra.mxu0 0
  %3193 = vmatprep.subr.bf16.mxu0 0
  %3194 = vmatpush1.bf16.msra.mxu0 0
  %3195 = vmatprep.subr.bf16.mxu0 0
  %3196 = vmatpush1.bf16.msra.mxu0 0
  %3197 = vmatprep.subr.bf16.mxu0 0
  %3198 = vmatpush1.bf16.msra.mxu0 0
  %3199 = vmatprep.subr.bf16.mxu0 0
  %3200 = vmatpush1.bf16.msra.mxu0 0
  %3201 = vmatprep.subr.bf16.mxu0 0
  %3202 = vmatpush1.bf16.msra.mxu0 0
  %3203 = vmatprep.subr.bf16.mxu0 0
  %3204 = vmatpush1.bf16.msra.mxu0 0
  %3205 = vmatprep.mubr.bf16.mxu0 0
  %3206 = vmatmul.mubr.bf16.gmra.mrb[0].mxu0 %v3171
  %v3207 = vpop.f32.mrb[0].mxu0
  %v3208 = vadd.f32 %v2573, %v3207
  %v3209 = vpop.f32.mrb[0].mxu0
  %v3210 = vadd.f32 %v2577, %v3209
  %v3211 = vpop.f32.mrb[0].mxu0
  %v3212 = vpop.f32.mrb[0].mxu0
  %3213 = vdwg.mxu0
  %3214 = vmatprep.subr.bf16.mxu0 %v2981
  %3215 = vmatpush1.bf16.msra.mxu0 %v2980
  %3216 = vmatprep.subr.bf16.mxu0 %v3005
  %3217 = vmatpush1.bf16.msra.mxu0 %v3004
  %3218 = vmatprep.subr.bf16.mxu0 %v3029
  %3219 = vmatpush1.bf16.msra.mxu0 %v3028
  %3220 = vmatprep.subr.bf16.mxu0 %v3053
  %3221 = vmatpush1.bf16.msra.mxu0 %v3052
  %3222 = vmatprep.subr.bf16.mxu0 0
  %3223 = vmatpush1.bf16.msra.mxu0 0
  %3224 = vmatprep.subr.bf16.mxu0 0
  %3225 = vmatpush1.bf16.msra.mxu0 0
  %3226 = vmatprep.subr.bf16.mxu0 0
  %3227 = vmatpush1.bf16.msra.mxu0 0
  %3228 = vmatprep.subr.bf16.mxu0 0
  %3229 = vmatpush1.bf16.msra.mxu0 0
  %3230 = vmatprep.subr.bf16.mxu0 0
  %3231 = vmatpush1.bf16.msra.mxu0 0
  %3232 = vmatprep.subr.bf16.mxu0 0
  %3233 = vmatpush1.bf16.msra.mxu0 0
  %3234 = vmatprep.subr.bf16.mxu0 0
  %3235 = vmatpush1.bf16.msra.mxu0 0
  %3236 = vmatprep.subr.bf16.mxu0 0
  %3237 = vmatpush1.bf16.msra.mxu0 0
  %3238 = vmatprep.subr.bf16.mxu0 0
  %3239 = vmatpush1.bf16.msra.mxu0 0
  %3240 = vmatprep.subr.bf16.mxu0 0
  %3241 = vmatpush1.bf16.msra.mxu0 0
  %3242 = vmatprep.subr.bf16.mxu0 0
  %3243 = vmatpush1.bf16.msra.mxu0 0
  %3244 = vmatprep.subr.bf16.mxu0 0
  %3245 = vmatpush1.bf16.msra.mxu0 0
  %3246 = vmatprep.mubr.bf16.mxu0 0
  %3247 = vmatmul.mubr.bf16.gmra.mrb[0].mxu0 %v3171
  %v3248 = vpop.f32.mrb[0].mxu0
  %v3249 = vadd.f32 %v2581, %v3248
  %v3250 = vpop.f32.mrb[0].mxu0
  %v3251 = vadd.f32 %v2585, %v3250
  %v3252 = vpop.f32.mrb[0].mxu0
  %v3253 = vpop.f32.mrb[0].mxu0
  %3254 = vdwg.mxu0
  %3255 = vmatprep.subr.bf16.mxu0 %v2983
  %3256 = vmatpush1.bf16.msra.mxu0 %v2982
  %3257 = vmatprep.subr.bf16.mxu0 %v3007
  %3258 = vmatpush1.bf16.msra.mxu0 %v3006
  %3259 = vmatprep.subr.bf16.mxu0 %v3031
  %3260 = vmatpush1.bf16.msra.mxu0 %v3030
  %3261 = vmatprep.subr.bf16.mxu0 %v3055
  %3262 = vmatpush1.bf16.msra.mxu0 %v3054
  %3263 = vmatprep.subr.bf16.mxu0 0
  %3264 = vmatpush1.bf16.msra.mxu0 0
  %3265 = vmatprep.subr.bf16.mxu0 0
  %3266 = vmatpush1.bf16.msra.mxu0 0
  %3267 = vmatprep.subr.bf16.mxu0 0
  %3268 = vmatpush1.bf16.msra.mxu0 0
  %3269 = vmatprep.subr.bf16.mxu0 0
  %3270 = vmatpush1.bf16.msra.mxu0 0
  %3271 = vmatprep.subr.bf16.mxu0 0
  %3272 = vmatpush1.bf16.msra.mxu0 0
  %3273 = vmatprep.subr.bf16.mxu0 0
  %3274 = vmatpush1.bf16.msra.mxu0 0
  %3275 = vmatprep.subr.bf16.mxu0 0
  %3276 = vmatpush1.bf16.msra.mxu0 0
  %3277 = vmatprep.subr.bf16.mxu0 0
  %3278 = vmatpush1.bf16.msra.mxu0 0
  %3279 = vmatprep.subr.bf16.mxu0 0
  %3280 = vmatpush1.bf16.msra.mxu0 0
  %3281 = vmatprep.subr.bf16.mxu0 0
  %3282 = vmatpush1.bf16.msra.mxu0 0
  %3283 = vmatprep.subr.bf16.mxu0 0
  %3284 = vmatpush1.bf16.msra.mxu0 0
  %3285 = vmatprep.subr.bf16.mxu0 0
  %3286 = vmatpush1.bf16.msra.mxu0 0
  %3287 = vmatprep.mubr.bf16.mxu0 0
  %3288 = vmatmul.mubr.bf16.gmra.mrb[0].mxu0 %v3171
  %v3289 = vpop.f32.mrb[0].mxu0
  %v3290 = vadd.f32 %v2589, %v3289
  %v3291 = vpop.f32.mrb[0].mxu0
  %v3292 = vadd.f32 %v2593, %v3291
  %v3293 = vpop.f32.mrb[0].mxu0
  %v3294 = vpop.f32.mrb[0].mxu0
  %3295 = vdwg.mxu0
  %3296 = vmatprep.subr.bf16.mxu0 %v2985
  %3297 = vmatpush1.bf16.msra.mxu0 %v2984
  %3298 = vmatprep.subr.bf16.mxu0 %v3009
  %3299 = vmatpush1.bf16.msra.mxu0 %v3008
  %3300 = vmatprep.subr.bf16.mxu0 %v3033
  %3301 = vmatpush1.bf16.msra.mxu0 %v3032
  %3302 = vmatprep.subr.bf16.mxu0 %v3057
  %3303 = vmatpush1.bf16.msra.mxu0 %v3056
  %3304 = vmatprep.subr.bf16.mxu0 0
  %3305 = vmatpush1.bf16.msra.mxu0 0
  %3306 = vmatprep.subr.bf16.mxu0 0
  %3307 = vmatpush1.bf16.msra.mxu0 0
  %3308 = vmatprep.subr.bf16.mxu0 0
  %3309 = vmatpush1.bf16.msra.mxu0 0
  %3310 = vmatprep.subr.bf16.mxu0 0
  %3311 = vmatpush1.bf16.msra.mxu0 0
  %3312 = vmatprep.subr.bf16.mxu0 0
  %3313 = vmatpush1.bf16.msra.mxu0 0
  %3314 = vmatprep.subr.bf16.mxu0 0
  %3315 = vmatpush1.bf16.msra.mxu0 0
  %3316 = vmatprep.subr.bf16.mxu0 0
  %3317 = vmatpush1.bf16.msra.mxu0 0
  %3318 = vmatprep.subr.bf16.mxu0 0
  %3319 = vmatpush1.bf16.msra.mxu0 0
  %3320 = vmatprep.subr.bf16.mxu0 0
  %3321 = vmatpush1.bf16.msra.mxu0 0
  %3322 = vmatprep.subr.bf16.mxu0 0
  %3323 = vmatpush1.bf16.msra.mxu0 0
  %3324 = vmatprep.subr.bf16.mxu0 0
  %3325 = vmatpush1.bf16.msra.mxu0 0
  %3326 = vmatprep.subr.bf16.mxu0 0
  %3327 = vmatpush1.bf16.msra.mxu0 0
  %3328 = vmatprep.mubr.bf16.mxu0 0
  %3329 = vmatmul.mubr.bf16.gmra.mrb[0].mxu0 %v3171
  %v3330 = vpop.f32.mrb[0].mxu0
  %v3331 = vadd.f32 %v2597, %v3330
  %v3332 = vpop.f32.mrb[0].mxu0
  %v3333 = vadd.f32 %v2601, %v3332
  %v3334 = vpop.f32.mrb[0].mxu0
  %v3335 = vpop.f32.mrb[0].mxu0
  %3336 = vdwg.mxu0
  %3337 = vmatprep.subr.bf16.mxu0 %v2987
  %3338 = vmatpush1.bf16.msra.mxu0 %v2986
  %3339 = vmatprep.subr.bf16.mxu0 %v3011
  %3340 = vmatpush1.bf16.msra.mxu0 %v3010
  %3341 = vmatprep.subr.bf16.mxu0 %v3035
  %3342 = vmatpush1.bf16.msra.mxu0 %v3034
  %3343 = vmatprep.subr.bf16.mxu0 %v3059
  %3344 = vmatpush1.bf16.msra.mxu0 %v3058
  %3345 = vmatprep.subr.bf16.mxu0 0
  %3346 = vmatpush1.bf16.msra.mxu0 0
  %3347 = vmatprep.subr.bf16.mxu0 0
  %3348 = vmatpush1.bf16.msra.mxu0 0
  %3349 = vmatprep.subr.bf16.mxu0 0
  %3350 = vmatpush1.bf16.msra.mxu0 0
  %3351 = vmatprep.subr.bf16.mxu0 0
  %3352 = vmatpush1.bf16.msra.mxu0 0
  %3353 = vmatprep.subr.bf16.mxu0 0
  %3354 = vmatpush1.bf16.msra.mxu0 0
  %3355 = vmatprep.subr.bf16.mxu0 0
  %3356 = vmatpush1.bf16.msra.mxu0 0
  %3357 = vmatprep.subr.bf16.mxu0 0
  %3358 = vmatpush1.bf16.msra.mxu0 0
  %3359 = vmatprep.subr.bf16.mxu0 0
  %3360 = vmatpush1.bf16.msra.mxu0 0
  %3361 = vmatprep.subr.bf16.mxu0 0
  %3362 = vmatpush1.bf16.msra.mxu0 0
  %3363 = vmatprep.subr.bf16.mxu0 0
  %3364 = vmatpush1.bf16.msra.mxu0 0
  %3365 = vmatprep.subr.bf16.mxu0 0
  %3366 = vmatpush1.bf16.msra.mxu0 0
  %3367 = vmatprep.subr.bf16.mxu0 0
  %3368 = vmatpush1.bf16.msra.mxu0 0
  %3369 = vmatprep.mubr.bf16.mxu0 0
  %3370 = vmatmul.mubr.bf16.gmra.mrb[0].mxu0 %v3171
  %v3371 = vpop.f32.mrb[0].mxu0
  %v3372 = vadd.f32 %v2605, %v3371
  %v3373 = vpop.f32.mrb[0].mxu0
  %v3374 = vadd.f32 %v2609, %v3373
  %v3375 = vpop.f32.mrb[0].mxu0
  %v3376 = vpop.f32.mrb[0].mxu0
  %3377 = vdwg.mxu0
  %3378 = vmatprep.subr.bf16.mxu0 %v2989
  %3379 = vmatpush1.bf16.msra.mxu0 %v2988
  %3380 = vmatprep.subr.bf16.mxu0 %v3013
  %3381 = vmatpush1.bf16.msra.mxu0 %v3012
  %3382 = vmatprep.subr.bf16.mxu0 %v3037
  %3383 = vmatpush1.bf16.msra.mxu0 %v3036
  %3384 = vmatprep.subr.bf16.mxu0 %v3061
  %3385 = vmatpush1.bf16.msra.mxu0 %v3060
  %3386 = vmatprep.subr.bf16.mxu0 0
  %3387 = vmatpush1.bf16.msra.mxu0 0
  %3388 = vmatprep.subr.bf16.mxu0 0
  %3389 = vmatpush1.bf16.msra.mxu0 0
  %3390 = vmatprep.subr.bf16.mxu0 0
  %3391 = vmatpush1.bf16.msra.mxu0 0
  %3392 = vmatprep.subr.bf16.mxu0 0
  %3393 = vmatpush1.bf16.msra.mxu0 0
  %3394 = vmatprep.subr.bf16.mxu0 0
  %3395 = vmatpush1.bf16.msra.mxu0 0
  %3396 = vmatprep.subr.bf16.mxu0 0
  %3397 = vmatpush1.bf16.msra.mxu0 0
  %3398 = vmatprep.subr.bf16.mxu0 0
  %3399 = vmatpush1.bf16.msra.mxu0 0
  %3400 = vmatprep.subr.bf16.mxu0 0
  %3401 = vmatpush1.bf16.msra.mxu0 0
  %3402 = vmatprep.subr.bf16.mxu0 0
  %3403 = vmatpush1.bf16.msra.mxu0 0
  %3404 = vmatprep.subr.bf16.mxu0 0
  %3405 = vmatpush1.bf16.msra.mxu0 0
  %3406 = vmatprep.subr.bf16.mxu0 0
  %3407 = vmatpush1.bf16.msra.mxu0 0
  %3408 = vmatprep.subr.bf16.mxu0 0
  %3409 = vmatpush1.bf16.msra.mxu0 0
  %3410 = vmatprep.mubr.bf16.mxu0 0
  %3411 = vmatmul.mubr.bf16.gmra.mrb[0].mxu0 %v3171
  %v3412 = vpop.f32.mrb[0].mxu0
  %v3413 = vadd.f32 %v2613, %v3412
  %v3414 = vpop.f32.mrb[0].mxu0
  %v3415 = vadd.f32 %v2617, %v3414
  %v3416 = vpop.f32.mrb[0].mxu0
  %v3417 = vpop.f32.mrb[0].mxu0
  %3418 = vdwg.mxu0
  %3419 = vmatprep.subr.bf16.mxu0 %v2991
  %3420 = vmatpush1.bf16.msra.mxu0 %v2990
  %3421 = vmatprep.subr.bf16.mxu0 %v3015
  %3422 = vmatpush1.bf16.msra.mxu0 %v3014
  %3423 = vmatprep.subr.bf16.mxu0 %v3039
  %3424 = vmatpush1.bf16.msra.mxu0 %v3038
  %3425 = vmatprep.subr.bf16.mxu0 %v3063
  %3426 = vmatpush1.bf16.msra.mxu0 %v3062
  %3427 = vmatprep.subr.bf16.mxu0 0
  %3428 = vmatpush1.bf16.msra.mxu0 0
  %3429 = vmatprep.subr.bf16.mxu0 0
  %3430 = vmatpush1.bf16.msra.mxu0 0
  %3431 = vmatprep.subr.bf16.mxu0 0
  %3432 = vmatpush1.bf16.msra.mxu0 0
  %3433 = vmatprep.subr.bf16.mxu0 0
  %3434 = vmatpush1.bf16.msra.mxu0 0
  %3435 = vmatprep.subr.bf16.mxu0 0
  %3436 = vmatpush1.bf16.msra.mxu0 0
  %3437 = vmatprep.subr.bf16.mxu0 0
  %3438 = vmatpush1.bf16.msra.mxu0 0
  %3439 = vmatprep.subr.bf16.mxu0 0
  %3440 = vmatpush1.bf16.msra.mxu0 0
  %3441 = vmatprep.subr.bf16.mxu0 0
  %3442 = vmatpush1.bf16.msra.mxu0 0
  %3443 = vmatprep.subr.bf16.mxu0 0
  %3444 = vmatpush1.bf16.msra.mxu0 0
  %3445 = vmatprep.subr.bf16.mxu0 0
  %3446 = vmatpush1.bf16.msra.mxu0 0
  %3447 = vmatprep.subr.bf16.mxu0 0
  %3448 = vmatpush1.bf16.msra.mxu0 0
  %3449 = vmatprep.subr.bf16.mxu0 0
  %3450 = vmatpush1.bf16.msra.mxu0 0
  %3451 = vmatprep.mubr.bf16.mxu0 0
  %3452 = vmatmul.mubr.bf16.gmra.mrb[0].mxu0 %v3171
  %v3453 = vpop.f32.mrb[0].mxu0
  %v3454 = vadd.f32 %v2621, %v3453
  %v3455 = vpop.f32.mrb[0].mxu0
  %v3456 = vadd.f32 %v2625, %v3455
  %v3457 = vpop.f32.mrb[0].mxu0
  %v3458 = vpop.f32.mrb[0].mxu0
  %3459 = vdwg.mxu0
  %3460 = vmatprep.subr.bf16.mxu0 %v2993
  %3461 = vmatpush1.bf16.msra.mxu0 %v2992
  %3462 = vmatprep.subr.bf16.mxu0 %v3017
  %3463 = vmatpush1.bf16.msra.mxu0 %v3016
  %3464 = vmatprep.subr.bf16.mxu0 %v3041
  %3465 = vmatpush1.bf16.msra.mxu0 %v3040
  %3466 = vmatprep.subr.bf16.mxu0 %v3065
  %3467 = vmatpush1.bf16.msra.mxu0 %v3064
  %3468 = vmatprep.subr.bf16.mxu0 0
  %3469 = vmatpush1.bf16.msra.mxu0 0
  %3470 = vmatprep.subr.bf16.mxu0 0
  %3471 = vmatpush1.bf16.msra.mxu0 0
  %3472 = vmatprep.subr.bf16.mxu0 0
  %3473 = vmatpush1.bf16.msra.mxu0 0
  %3474 = vmatprep.subr.bf16.mxu0 0
  %3475 = vmatpush1.bf16.msra.mxu0 0
  %3476 = vmatprep.subr.bf16.mxu0 0
  %3477 = vmatpush1.bf16.msra.mxu0 0
  %3478 = vmatprep.subr.bf16.mxu0 0
  %3479 = vmatpush1.bf16.msra.mxu0 0
  %3480 = vmatprep.subr.bf16.mxu0 0
  %3481 = vmatpush1.bf16.msra.mxu0 0
  %3482 = vmatprep.subr.bf16.mxu0 0
  %3483 = vmatpush1.bf16.msra.mxu0 0
  %3484 = vmatprep.subr.bf16.mxu0 0
  %3485 = vmatpush1.bf16.msra.mxu0 0
  %3486 = vmatprep.subr.bf16.mxu0 0
  %3487 = vmatpush1.bf16.msra.mxu0 0
  %3488 = vmatprep.subr.bf16.mxu0 0
  %3489 = vmatpush1.bf16.msra.mxu0 0
  %3490 = vmatprep.subr.bf16.mxu0 0
  %3491 = vmatpush1.bf16.msra.mxu0 0
  %3492 = vmatprep.mubr.bf16.mxu0 0
  %3493 = vmatmul.mubr.bf16.gmra.mrb[0].mxu0 %v3171
  %v3494 = vpop.f32.mrb[0].mxu0
  %v3495 = vadd.f32 %v2629, %v3494
  %v3496 = vpop.f32.mrb[0].mxu0
  %v3497 = vadd.f32 %v2633, %v3496
  %v3498 = vpop.f32.mrb[0].mxu0
  %v3499 = vpop.f32.mrb[0].mxu0
  %3500 = vdwg.mxu0
  %3501 = vmatprep.subr.bf16.mxu0 %v2995
  %3502 = vmatpush1.bf16.msra.mxu0 %v2994
  %3503 = vmatprep.subr.bf16.mxu0 %v3019
  %3504 = vmatpush1.bf16.msra.mxu0 %v3018
  %3505 = vmatprep.subr.bf16.mxu0 %v3043
  %3506 = vmatpush1.bf16.msra.mxu0 %v3042
  %3507 = vmatprep.subr.bf16.mxu0 %v3067
  %3508 = vmatpush1.bf16.msra.mxu0 %v3066
  %3509 = vmatprep.subr.bf16.mxu0 0
  %3510 = vmatpush1.bf16.msra.mxu0 0
  %3511 = vmatprep.subr.bf16.mxu0 0
  %3512 = vmatpush1.bf16.msra.mxu0 0
  %3513 = vmatprep.subr.bf16.mxu0 0
  %3514 = vmatpush1.bf16.msra.mxu0 0
  %3515 = vmatprep.subr.bf16.mxu0 0
  %3516 = vmatpush1.bf16.msra.mxu0 0
  %3517 = vmatprep.subr.bf16.mxu0 0
  %3518 = vmatpush1.bf16.msra.mxu0 0
  %3519 = vmatprep.subr.bf16.mxu0 0
  %3520 = vmatpush1.bf16.msra.mxu0 0
  %3521 = vmatprep.subr.bf16.mxu0 0
  %3522 = vmatpush1.bf16.msra.mxu0 0
  %3523 = vmatprep.subr.bf16.mxu0 0
  %3524 = vmatpush1.bf16.msra.mxu0 0
  %3525 = vmatprep.subr.bf16.mxu0 0
  %3526 = vmatpush1.bf16.msra.mxu0 0
  %3527 = vmatprep.subr.bf16.mxu0 0
  %3528 = vmatpush1.bf16.msra.mxu0 0
  %3529 = vmatprep.subr.bf16.mxu0 0
  %3530 = vmatpush1.bf16.msra.mxu0 0
  %3531 = vmatprep.subr.bf16.mxu0 0
  %3532 = vmatpush1.bf16.msra.mxu0 0
  %3533 = vmatprep.mubr.bf16.mxu0 0
  %3534 = vmatmul.mubr.bf16.gmra.mrb[0].mxu0 %v3171
  %v3535 = vpop.f32.mrb[0].mxu0
  %v3536 = vadd.f32 %v2637, %v3535
  %v3537 = vpop.f32.mrb[0].mxu0
  %v3538 = vadd.f32 %v2641, %v3537
  %v3539 = vpop.f32.mrb[0].mxu0
  %v3540 = vpop.f32.mrb[0].mxu0
  %3541 = vdwg.mxu0
  %3542 = vmatprep.subr.bf16.mxu0 %v2997
  %3543 = vmatpush1.bf16.msra.mxu0 %v2996
  %3544 = vmatprep.subr.bf16.mxu0 %v3021
  %3545 = vmatpush1.bf16.msra.mxu0 %v3020
  %3546 = vmatprep.subr.bf16.mxu0 %v3045
  %3547 = vmatpush1.bf16.msra.mxu0 %v3044
  %3548 = vmatprep.subr.bf16.mxu0 %v3069
  %3549 = vmatpush1.bf16.msra.mxu0 %v3068
  %3550 = vmatprep.subr.bf16.mxu0 0
  %3551 = vmatpush1.bf16.msra.mxu0 0
  %3552 = vmatprep.subr.bf16.mxu0 0
  %3553 = vmatpush1.bf16.msra.mxu0 0
  %3554 = vmatprep.subr.bf16.mxu0 0
  %3555 = vmatpush1.bf16.msra.mxu0 0
  %3556 = vmatprep.subr.bf16.mxu0 0
  %3557 = vmatpush1.bf16.msra.mxu0 0
  %3558 = vmatprep.subr.bf16.mxu0 0
  %3559 = vmatpush1.bf16.msra.mxu0 0
  %3560 = vmatprep.subr.bf16.mxu0 0
  %3561 = vmatpush1.bf16.msra.mxu0 0
  %3562 = vmatprep.subr.bf16.mxu0 0
  %3563 = vmatpush1.bf16.msra.mxu0 0
  %3564 = vmatprep.subr.bf16.mxu0 0
  %3565 = vmatpush1.bf16.msra.mxu0 0
  %3566 = vmatprep.subr.bf16.mxu0 0
  %3567 = vmatpush1.bf16.msra.mxu0 0
  %3568 = vmatprep.subr.bf16.mxu0 0
  %3569 = vmatpush1.bf16.msra.mxu0 0
  %3570 = vmatprep.subr.bf16.mxu0 0
  %3571 = vmatpush1.bf16.msra.mxu0 0
  %3572 = vmatprep.subr.bf16.mxu0 0
  %3573 = vmatpush1.bf16.msra.mxu0 0
  %3574 = vmatprep.mubr.bf16.mxu0 0
  %3575 = vmatmul.mubr.bf16.gmra.mrb[0].mxu0 %v3171
  %v3576 = vpop.f32.mrb[0].mxu0
  %v3577 = vadd.f32 %v2645, %v3576
  %v3578 = vpop.f32.mrb[0].mxu0
  %v3579 = vadd.f32 %v2649, %v3578
  %v3580 = vpop.f32.mrb[0].mxu0
  %v3581 = vpop.f32.mrb[0].mxu0
  %3582 = vdwg.mxu0
  %3583 = vmatprep.subr.bf16.mxu0 %v2999
  %3584 = vmatpush1.bf16.msra.mxu0 %v2998
  %3585 = vmatprep.subr.bf16.mxu0 %v3023
  %3586 = vmatpush1.bf16.msra.mxu0 %v3022
  %3587 = vmatprep.subr.bf16.mxu0 %v3047
  %3588 = vmatpush1.bf16.msra.mxu0 %v3046
  %3589 = vmatprep.subr.bf16.mxu0 %v3071
  %3590 = vmatpush1.bf16.msra.mxu0 %v3070
  %3591 = vmatprep.subr.bf16.mxu0 0
  %3592 = vmatpush1.bf16.msra.mxu0 0
  %3593 = vmatprep.subr.bf16.mxu0 0
  %3594 = vmatpush1.bf16.msra.mxu0 0
  %3595 = vmatprep.subr.bf16.mxu0 0
  %3596 = vmatpush1.bf16.msra.mxu0 0
  %3597 = vmatprep.subr.bf16.mxu0 0
  %3598 = vmatpush1.bf16.msra.mxu0 0
  %3599 = vmatprep.subr.bf16.mxu0 0
  %3600 = vmatpush1.bf16.msra.mxu0 0
  %3601 = vmatprep.subr.bf16.mxu0 0
  %3602 = vmatpush1.bf16.msra.mxu0 0
  %3603 = vmatprep.subr.bf16.mxu0 0
  %3604 = vmatpush1.bf16.msra.mxu0 0
  %3605 = vmatprep.subr.bf16.mxu0 0
  %3606 = vmatpush1.bf16.msra.mxu0 0
  %3607 = vmatprep.subr.bf16.mxu0 0
  %3608 = vmatpush1.bf16.msra.mxu0 0
  %3609 = vmatprep.subr.bf16.mxu0 0
  %3610 = vmatpush1.bf16.msra.mxu0 0
  %3611 = vmatprep.subr.bf16.mxu0 0
  %3612 = vmatpush1.bf16.msra.mxu0 0
  %3613 = vmatprep.subr.bf16.mxu0 0
  %3614 = vmatpush1.bf16.msra.mxu0 0
  %3615 = vmatprep.mubr.bf16.mxu0 0
  %3616 = vmatmul.mubr.bf16.gmra.mrb[0].mxu0 %v3171
  %v3617 = vpop.f32.mrb[0].mxu0
  %v3618 = vadd.f32 %v2653, %v3617
  %v3619 = vpop.f32.mrb[0].mxu0
  %v3620 = vadd.f32 %v2657, %v3619
  %v3621 = vpop.f32.mrb[0].mxu0
  %v3622 = vpop.f32.mrb[0].mxu0
  %3623 = vdwg.mxu0
  %3624 = vmatprep.subr.bf16.mxu0 %v3001
  %3625 = vmatpush1.bf16.msra.mxu0 %v3000
  %3626 = vmatprep.subr.bf16.mxu0 %v3025
  %3627 = vmatpush1.bf16.msra.mxu0 %v3024
  %3628 = vmatprep.subr.bf16.mxu0 %v3049
  %3629 = vmatpush1.bf16.msra.mxu0 %v3048
  %3630 = vmatprep.subr.bf16.mxu0 %v3073
  %3631 = vmatpush1.bf16.msra.mxu0 %v3072
  %3632 = vmatprep.subr.bf16.mxu0 0
  %3633 = vmatpush1.bf16.msra.mxu0 0
  %3634 = vmatprep.subr.bf16.mxu0 0
  %3635 = vmatpush1.bf16.msra.mxu0 0
  %3636 = vmatprep.subr.bf16.mxu0 0
  %3637 = vmatpush1.bf16.msra.mxu0 0
  %3638 = vmatprep.subr.bf16.mxu0 0
  %3639 = vmatpush1.bf16.msra.mxu0 0
  %3640 = vmatprep.subr.bf16.mxu0 0
  %3641 = vmatpush1.bf16.msra.mxu0 0
  %3642 = vmatprep.subr.bf16.mxu0 0
  %3643 = vmatpush1.bf16.msra.mxu0 0
  %3644 = vmatprep.subr.bf16.mxu0 0
  %3645 = vmatpush1.bf16.msra.mxu0 0
  %3646 = vmatprep.subr.bf16.mxu0 0
  %3647 = vmatpush1.bf16.msra.mxu0 0
  %3648 = vmatprep.subr.bf16.mxu0 0
  %3649 = vmatpush1.bf16.msra.mxu0 0
  %3650 = vmatprep.subr.bf16.mxu0 0
  %3651 = vmatpush1.bf16.msra.mxu0 0
  %3652 = vmatprep.subr.bf16.mxu0 0
  %3653 = vmatpush1.bf16.msra.mxu0 0
  %3654 = vmatprep.subr.bf16.mxu0 0
  %3655 = vmatpush1.bf16.msra.mxu0 0
  %3656 = vmatprep.mubr.bf16.mxu0 0
  %3657 = vmatmul.mubr.bf16.gmra.mrb[0].mxu0 %v3171
  %v3658 = vpop.f32.mrb[0].mxu0
  %v3659 = vadd.f32 %v2661, %v3658
  %v3660 = vpop.f32.mrb[0].mxu0
  %v3661 = vadd.f32 %v2665, %v3660
  %v3662 = vpop.f32.mrb[0].mxu0
  %v3663 = vpop.f32.mrb[0].mxu0
  %3664 = vdwg.mxu0
  %v3665 = vxor.u32 %v3208, 2147483648
  %v3666 = vxor.u32 %v3210, 2147483648
  %v3667 = vxor.u32 %v3249, 2147483648
  %v3668 = vxor.u32 %v3251, 2147483648
  %v3669 = vxor.u32 %v3290, 2147483648
  %v3670 = vxor.u32 %v3292, 2147483648
  %v3671 = vxor.u32 %v3331, 2147483648
  %v3672 = vxor.u32 %v3333, 2147483648
  %v3673 = vxor.u32 %v3372, 2147483648
  %v3674 = vxor.u32 %v3374, 2147483648
  %v3675 = vxor.u32 %v3413, 2147483648
  %v3676 = vxor.u32 %v3415, 2147483648
  %v3677 = vxor.u32 %v3454, 2147483648
  %v3678 = vxor.u32 %v3456, 2147483648
  %v3679 = vxor.u32 %v3495, 2147483648
  %v3680 = vxor.u32 %v3497, 2147483648
  %v3681 = vxor.u32 %v3536, 2147483648
  %v3682 = vxor.u32 %v3538, 2147483648
  %v3683 = vxor.u32 %v3577, 2147483648
  %v3684 = vxor.u32 %v3579, 2147483648
  %v3685 = vxor.u32 %v3618, 2147483648
  %v3686 = vxor.u32 %v3620, 2147483648
  %v3687 = vxor.u32 %v3659, 2147483648
  %v3688 = vxor.u32 %v3661, 2147483648
  %v3689 = vmul.f32 %v3665, 1.442695
  %v3690 = vpow.pop %v3689
  %v3691 = vmul.f32 %v3666, 1.442695
  %v3692 = vpow.pop %v3691
  %v3693 = vmul.f32 %v3667, 1.442695
  %v3694 = vpow.pop %v3693
  %v3695 = vmul.f32 %v3668, 1.442695
  %v3696 = vpow.pop %v3695
  %v3697 = vmul.f32 %v3669, 1.442695
  %v3698 = vpow.pop %v3697
  %v3699 = vmul.f32 %v3670, 1.442695
  %v3700 = vpow.pop %v3699
  %v3701 = vmul.f32 %v3671, 1.442695
  %v3702 = vpow.pop %v3701
  %v3703 = vmul.f32 %v3672, 1.442695
  %v3704 = vpow.pop %v3703
  %v3705 = vmul.f32 %v3673, 1.442695
  %v3706 = vpow.pop %v3705
  %v3707 = vmul.f32 %v3674, 1.442695
  %v3708 = vpow.pop %v3707
  %v3709 = vmul.f32 %v3675, 1.442695
  %v3710 = vpow.pop %v3709
  %v3711 = vmul.f32 %v3676, 1.442695
  %v3712 = vpow.pop %v3711
  %v3713 = vmul.f32 %v3677, 1.442695
  %v3714 = vpow.pop %v3713
  %v3715 = vmul.f32 %v3678, 1.442695
  %v3716 = vpow.pop %v3715
  %v3717 = vmul.f32 %v3679, 1.442695
  %v3718 = vpow.pop %v3717
  %v3719 = vmul.f32 %v3680, 1.442695
  %v3720 = vpow.pop %v3719
  %v3721 = vmul.f32 %v3681, 1.442695
  %v3722 = vpow.pop %v3721
  %v3723 = vmul.f32 %v3682, 1.442695
  %v3724 = vpow.pop %v3723
  %v3725 = vmul.f32 %v3683, 1.442695
  %v3726 = vpow.pop %v3725
  %v3727 = vmul.f32 %v3684, 1.442695
  %v3728 = vpow.pop %v3727
  %v3729 = vmul.f32 %v3685, 1.442695
  %v3730 = vpow.pop %v3729
  %v3731 = vmul.f32 %v3686, 1.442695
  %v3732 = vpow.pop %v3731
  %v3733 = vmul.f32 %v3687, 1.442695
  %v3734 = vpow.pop %v3733
  %v3735 = vmul.f32 %v3688, 1.442695
  %v3736 = vpow.pop %v3735
  %v3737 = vadd.f32 %v3690, 1.0
  %v3738 = vadd.f32 %v3692, 1.0
  %v3739 = vadd.f32 %v3694, 1.0
  %v3740 = vadd.f32 %v3696, 1.0
  %v3741 = vadd.f32 %v3698, 1.0
  %v3742 = vadd.f32 %v3700, 1.0
  %v3743 = vadd.f32 %v3702, 1.0
  %v3744 = vadd.f32 %v3704, 1.0
  %v3745 = vadd.f32 %v3706, 1.0
  %v3746 = vadd.f32 %v3708, 1.0
  %v3747 = vadd.f32 %v3710, 1.0
  %v3748 = vadd.f32 %v3712, 1.0
  %v3749 = vadd.f32 %v3714, 1.0
  %v3750 = vadd.f32 %v3716, 1.0
  %v3751 = vadd.f32 %v3718, 1.0
  %v3752 = vadd.f32 %v3720, 1.0
  %v3753 = vadd.f32 %v3722, 1.0
  %v3754 = vadd.f32 %v3724, 1.0
  %v3755 = vadd.f32 %v3726, 1.0
  %v3756 = vadd.f32 %v3728, 1.0
  %v3757 = vadd.f32 %v3730, 1.0
  %v3758 = vadd.f32 %v3732, 1.0
  %v3759 = vadd.f32 %v3734, 1.0
  %v3760 = vadd.f32 %v3736, 1.0
  %v3761 = vrcp.pop %v3737
  %v3762 = vmul.f32 1.0, %v3761
  %v3763 = vrcp.pop %v3738
  %v3764 = vmul.f32 1.0, %v3763
  %v3765 = vrcp.pop %v3739
  %v3766 = vmul.f32 1.0, %v3765
  %v3767 = vrcp.pop %v3740
  %v3768 = vmul.f32 1.0, %v3767
  %v3769 = vrcp.pop %v3741
  %v3770 = vmul.f32 1.0, %v3769
  %v3771 = vrcp.pop %v3742
  %v3772 = vmul.f32 1.0, %v3771
  %v3773 = vrcp.pop %v3743
  %v3774 = vmul.f32 1.0, %v3773
  %v3775 = vrcp.pop %v3744
  %v3776 = vmul.f32 1.0, %v3775
  %v3777 = vrcp.pop %v3745
  %v3778 = vmul.f32 1.0, %v3777
  %v3779 = vrcp.pop %v3746
  %v3780 = vmul.f32 1.0, %v3779
  %v3781 = vrcp.pop %v3747
  %v3782 = vmul.f32 1.0, %v3781
  %v3783 = vrcp.pop %v3748
  %v3784 = vmul.f32 1.0, %v3783
  %v3785 = vrcp.pop %v3749
  %v3786 = vmul.f32 1.0, %v3785
  %v3787 = vrcp.pop %v3750
  %v3788 = vmul.f32 1.0, %v3787
  %v3789 = vrcp.pop %v3751
  %v3790 = vmul.f32 1.0, %v3789
  %v3791 = vrcp.pop %v3752
  %v3792 = vmul.f32 1.0, %v3791
  %v3793 = vrcp.pop %v3753
  %v3794 = vmul.f32 1.0, %v3793
  %v3795 = vrcp.pop %v3754
  %v3796 = vmul.f32 1.0, %v3795
  %v3797 = vrcp.pop %v3755
  %v3798 = vmul.f32 1.0, %v3797
  %v3799 = vrcp.pop %v3756
  %v3800 = vmul.f32 1.0, %v3799
  %v3801 = vrcp.pop %v3757
  %v3802 = vmul.f32 1.0, %v3801
  %v3803 = vrcp.pop %v3758
  %v3804 = vmul.f32 1.0, %v3803
  %v3805 = vrcp.pop %v3759
  %v3806 = vmul.f32 1.0, %v3805
  %v3807 = vrcp.pop %v3760
  %v3808 = vmul.f32 1.0, %v3807
  %3809 = vst [vmem:[%s13] sm:$0xff] %v3762
  %3810 = vst [vmem:[%s13 + $0x8] sm:$0xff] %v3764
  %3811 = vst [vmem:[%s13 + $0x10] sm:$0xff] %v3766
  %3812 = vst [vmem:[%s13 + $0x18] sm:$0xff] %v3768
  %3813 = vst [vmem:[%s13 + $0x20] sm:$0xff] %v3770
  %3814 = vst [vmem:[%s13 + $0x28] sm:$0xff] %v3772
  %3815 = vst [vmem:[%s13 + $0x30] sm:$0xff] %v3774
  %3816 = vst [vmem:[%s13 + $0x38] sm:$0xff] %v3776
  %3817 = vst [vmem:[%s13 + $0x40] sm:$0xff] %v3778
  %3818 = vst [vmem:[%s13 + $0x48] sm:$0xff] %v3780
  %3819 = vst [vmem:[%s13 + $0x50] sm:$0xff] %v3782
  %3820 = vst [vmem:[%s13 + $0x58] sm:$0xff] %v3784
  %3821 = vst [vmem:[%s13 + $0x60] sm:$0xff] %v3786
  %3822 = vst [vmem:[%s13 + $0x68] sm:$0xff] %v3788
  %3823 = vst [vmem:[%s13 + $0x70] sm:$0xff] %v3790
  %3824 = vst [vmem:[%s13 + $0x78] sm:$0xff] %v3792
  %3825 = vst [vmem:[%s13 + $0x80] sm:$0xff] %v3794
  %3826 = vst [vmem:[%s13 + $0x88] sm:$0xff] %v3796
  %3827 = vst [vmem:[%s13 + $0x90] sm:$0xff] %v3798
  %3828 = vst [vmem:[%s13 + $0x98] sm:$0xff] %v3800
  %3829 = vst [vmem:[%s13 + $0xa0] sm:$0xff] %v3802
  %3830 = vst [vmem:[%s13 + $0xa8] sm:$0xff] %v3804
  %3831 = vst [vmem:[%s13 + $0xb0] sm:$0xff] %v3806
  %3832 = vst [vmem:[%s13 + $0xb8] sm:$0xff] %v3808
  // Predicated region
  $region54: #{vae_forward.1} parent=0 // pred_check
    _
  $region55: #{vae_forward.1} parent=0 // pred_check_branch
    %3834 = sbr.rel (0) target = $region57
  $region56: #{vae_forward.1} parent=0 // pred_region
    _
  $region57: #{vae_forward.1} parent=0 // pred_fallthru
    _
  // Predicated region
  $region58: #{vae_forward.1} parent=0 // pred_check
    _
  $region59: #{vae_forward.1} parent=0 // pred_check_branch
    %3836 = sbr.rel (0) target = $region61
  $region60: #{vae_forward.1} parent=0 // pred_region
    _
  $region61: #{vae_forward.1} parent=0 // pred_fallthru
    _
  // Predicated region
  $region62: #{vae_forward.1} parent=0 // pred_check
    _
  $region63: #{vae_forward.1} parent=0 // pred_check_branch
    %3838 = sbr.rel (0) target = $region65
  $region64: #{vae_forward.1} parent=0 // pred_region
    _
  $region65: #{vae_forward.1} parent=0 // pred_fallthru
    _
  // Predicated region
  $region66: #{vae_forward.1} parent=0 // pred_check
    _
  $region67: #{vae_forward.1} parent=0 // pred_check_branch
    %3840 = sbr.rel (0) target = $region69
  $region68: #{vae_forward.1} parent=0 // pred_region
    _
  $region69: #{vae_forward.1} parent=0 // pred_fallthru
    _
  // Predicated region
  $region70: #{vae_forward.1} parent=0 // pred_check
    _
  $region71: #{vae_forward.1} parent=0 // pred_check_branch
    %3842 = sbr.rel (0) target = $region73
  $region72: #{vae_forward.1} parent=0 // pred_region
    _
  $region73: #{vae_forward.1} parent=0 // pred_fallthru
    _
  // Predicated region
  $region74: #{vae_forward.1} parent=0 // pred_check
    _
  $region75: #{vae_forward.1} parent=0 // pred_check_branch
    %3844 = sbr.rel (0) target = $region77
  $region76: #{vae_forward.1} parent=0 // pred_region
    _
  $region77: #{vae_forward.1} parent=0 // pred_fallthru
    _

</llo_original>
